<compile_context>
chip_gen: v7x
topology: tpu7x:2x2x1
jax: 0.10.0
libtpu: 0.0.40
codegen_flags: <defaults>
</compile_context>

<pallas_src>
import math

import jax
import jax.numpy as jnp
from jax.experimental import pallas as pl
from jax.experimental.pallas import tpu as pltpu

DEFAULT_SPLITS = (3,) * 5 + (2,) * 3  # sums to 21

# Rows per grid step.  Keeps (1 in + 8 out) double-buffered, lane-padded tiles
# under the default scoped-VMEM limit on every TPU generation (incl. v7x).
_ROW_TILE = 1024


def _make_split_kernel(splits, offsets):
    """Kernel: load the (TM, F) row tile once, write each static lane slice."""

    def kernel(x_ref, *out_refs):
        x = x_ref[...]  # single load of the whole tile
        for o_ref, start, size in zip(out_refs, offsets, splits):
            o_ref[...] = x[:, start:start + size]  # static slice -> vector copy

    return kernel


def split_layer(x, splits=None, row_tile=_ROW_TILE):
    """Pallas equivalent of SplitLayer.forward: tuple of slices along dim=-1."""
    if splits is None:
        splits = DEFAULT_SPLITS
    splits = tuple(int(s) for s in splits)
    feat = sum(splits)
    assert x.shape[-1] == feat, (
        f"last dim {x.shape[-1]} must equal sum(splits)={feat}"
    )

    offsets = []
    off = 0
    for s in splits:
        offsets.append(off)
        off += s
    offsets = tuple(offsets)

    lead = x.shape[:-1]
    rows = math.prod(lead) if lead else 1
    x2 = x.reshape(rows, feat)  # free (contiguous) reshape

    # Tile size: full array if it is small, else a fixed 8-aligned row tile.
    # (Block second-to-last dim must be divisible by 8 OR equal the full dim.)
    tm = rows if rows <= row_tile else row_tile
    grid = (pl.cdiv(rows, tm),)

    kernel = _make_split_kernel(splits, offsets)
    out_shapes = tuple(
        jax.ShapeDtypeStruct((rows, s), x.dtype) for s in splits
    )

    outs = pl.pallas_call(
        kernel,
        out_shape=out_shapes,
        grid=grid,
        in_specs=[pl.BlockSpec((tm, feat), lambda i: (i, 0))],
        out_specs=tuple(
            pl.BlockSpec((tm, s), lambda i: (i, 0)) for s in splits
        ),
        compiler_params=pltpu.CompilerParams(
            dimension_semantics=("parallel",),
        ),
    )(x2)

    return tuple(o.reshape(lead + (s,)) for o, s in zip(outs, splits))


if __name__ == "__main__":
    # SplitLayer has no parameters; only an input is needed.
    key = jax.random.PRNGKey(0)
    batch, seq, feat = 4, 512, sum(DEFAULT_SPLITS)  # rows = 2048 -> grid of 2
    x = jax.random.normal(key, (batch, seq, feat), dtype=jnp.float32)

    outs = split_layer(x)
    outs = jax.block_until_ready(outs)

    # Reference check against plain-JAX slicing (mirrors torch.split semantics).
    off = 0
    for o, s in zip(outs, DEFAULT_SPLITS):
        ref = x[..., off:off + s]
        assert o.shape == ref.shape, (o.shape, ref.shape)
        assert jnp.array_equal(o, ref), "mismatch in split output"
        off += s
    assert len(outs) == len(DEFAULT_SPLITS)

    print("KERNEL_OK")
</pallas_src>

<mosaic_0001>
module attributes {stable_mosaic.version = 11 : i64} {
  func.func @kernel(%arg0: i32, %arg1: memref<1024x21xf32, #tpu.memory_space<vmem>>, %arg2: memref<1024x3xf32, #tpu.memory_space<vmem>>, %arg3: memref<1024x3xf32, #tpu.memory_space<vmem>>, %arg4: memref<1024x3xf32, #tpu.memory_space<vmem>>, %arg5: memref<1024x3xf32, #tpu.memory_space<vmem>>, %arg6: memref<1024x3xf32, #tpu.memory_space<vmem>>, %arg7: memref<1024x2xf32, #tpu.memory_space<vmem>>, %arg8: memref<1024x2xf32, #tpu.memory_space<vmem>>, %arg9: memref<1024x2xf32, #tpu.memory_space<vmem>>) attributes {dimension_semantics = [#tpu.dimension_semantics<parallel>], iteration_bounds = array<i64: 2>, scalar_prefetch = 0 : i64, scratch_operands = 0 : i64, tpu.core_type = #tpu.core_type<tc>, window_params = [{transform_indices = @transform_0, window_bounds = array<i64: 1024, 21>}, {transform_indices = @transform_1, window_bounds = array<i64: 1024, 3>}, {transform_indices = @transform_2, window_bounds = array<i64: 1024, 3>}, {transform_indices = @transform_3, window_bounds = array<i64: 1024, 3>}, {transform_indices = @transform_4, window_bounds = array<i64: 1024, 3>}, {transform_indices = @transform_5, window_bounds = array<i64: 1024, 3>}, {transform_indices = @transform_6, window_bounds = array<i64: 1024, 2>}, {transform_indices = @transform_7, window_bounds = array<i64: 1024, 2>}, {transform_indices = @transform_8, window_bounds = array<i64: 1024, 2>}]} {
    %c0 = arith.constant 0 : index
    %c0_0 = arith.constant 0 : index
    %0 = vector.load %arg1[%c0, %c0_0] : memref<1024x21xf32, #tpu.memory_space<vmem>>, vector<1024x21xf32>
    %1 = vector.extract_strided_slice %0 {offsets = [0, 0], sizes = [1024, 3], strides = [1, 1]} : vector<1024x21xf32> to vector<1024x3xf32>
    %c0_1 = arith.constant 0 : index
    %c0_2 = arith.constant 0 : index
    %2 = vector.load %arg2[%c0_1, %c0_2] : memref<1024x3xf32, #tpu.memory_space<vmem>>, vector<1024x3xf32>
    tpu.vector_store %arg2[%c0_1, %c0_2], %1 {strides = array<i32>} : memref<1024x3xf32, #tpu.memory_space<vmem>>, vector<1024x3xf32>,
    %3 = vector.extract_strided_slice %0 {offsets = [0, 3], sizes = [1024, 3], strides = [1, 1]} : vector<1024x21xf32> to vector<1024x3xf32>
    %c0_3 = arith.constant 0 : index
    %c0_4 = arith.constant 0 : index
    %4 = vector.load %arg3[%c0_3, %c0_4] : memref<1024x3xf32, #tpu.memory_space<vmem>>, vector<1024x3xf32>
    tpu.vector_store %arg3[%c0_3, %c0_4], %3 {strides = array<i32>} : memref<1024x3xf32, #tpu.memory_space<vmem>>, vector<1024x3xf32>,
    %5 = vector.extract_strided_slice %0 {offsets = [0, 6], sizes = [1024, 3], strides = [1, 1]} : vector<1024x21xf32> to vector<1024x3xf32>
    %c0_5 = arith.constant 0 : index
    %c0_6 = arith.constant 0 : index
    %6 = vector.load %arg4[%c0_5, %c0_6] : memref<1024x3xf32, #tpu.memory_space<vmem>>, vector<1024x3xf32>
    tpu.vector_store %arg4[%c0_5, %c0_6], %5 {strides = array<i32>} : memref<1024x3xf32, #tpu.memory_space<vmem>>, vector<1024x3xf32>,
    %7 = vector.extract_strided_slice %0 {offsets = [0, 9], sizes = [1024, 3], strides = [1, 1]} : vector<1024x21xf32> to vector<1024x3xf32>
    %c0_7 = arith.constant 0 : index
    %c0_8 = arith.constant 0 : index
    %8 = vector.load %arg5[%c0_7, %c0_8] : memref<1024x3xf32, #tpu.memory_space<vmem>>, vector<1024x3xf32>
    tpu.vector_store %arg5[%c0_7, %c0_8], %7 {strides = array<i32>} : memref<1024x3xf32, #tpu.memory_space<vmem>>, vector<1024x3xf32>,
    %9 = vector.extract_strided_slice %0 {offsets = [0, 12], sizes = [1024, 3], strides = [1, 1]} : vector<1024x21xf32> to vector<1024x3xf32>
    %c0_9 = arith.constant 0 : index
    %c0_10 = arith.constant 0 : index
    %10 = vector.load %arg6[%c0_9, %c0_10] : memref<1024x3xf32, #tpu.memory_space<vmem>>, vector<1024x3xf32>
    tpu.vector_store %arg6[%c0_9, %c0_10], %9 {strides = array<i32>} : memref<1024x3xf32, #tpu.memory_space<vmem>>, vector<1024x3xf32>,
    %11 = vector.extract_strided_slice %0 {offsets = [0, 15], sizes = [1024, 2], strides = [1, 1]} : vector<1024x21xf32> to vector<1024x2xf32>
    %c0_11 = arith.constant 0 : index
    %c0_12 = arith.constant 0 : index
    %12 = vector.load %arg7[%c0_11, %c0_12] : memref<1024x2xf32, #tpu.memory_space<vmem>>, vector<1024x2xf32>
    tpu.vector_store %arg7[%c0_11, %c0_12], %11 {strides = array<i32>} : memref<1024x2xf32, #tpu.memory_space<vmem>>, vector<1024x2xf32>,
    %13 = vector.extract_strided_slice %0 {offsets = [0, 17], sizes = [1024, 2], strides = [1, 1]} : vector<1024x21xf32> to vector<1024x2xf32>
    %c0_13 = arith.constant 0 : index
    %c0_14 = arith.constant 0 : index
    %14 = vector.load %arg8[%c0_13, %c0_14] : memref<1024x2xf32, #tpu.memory_space<vmem>>, vector<1024x2xf32>
    tpu.vector_store %arg8[%c0_13, %c0_14], %13 {strides = array<i32>} : memref<1024x2xf32, #tpu.memory_space<vmem>>, vector<1024x2xf32>,
    %15 = vector.extract_strided_slice %0 {offsets = [0, 19], sizes = [1024, 2], strides = [1, 1]} : vector<1024x21xf32> to vector<1024x2xf32>
    %c0_15 = arith.constant 0 : index
    %c0_16 = arith.constant 0 : index
    %16 = vector.load %arg9[%c0_15, %c0_16] : memref<1024x2xf32, #tpu.memory_space<vmem>>, vector<1024x2xf32>
    tpu.vector_store %arg9[%c0_15, %c0_16], %15 {strides = array<i32>} : memref<1024x2xf32, #tpu.memory_space<vmem>>, vector<1024x2xf32>,
    return
  }
  func.func @transform_0(%arg0: i32) -> (i32, i32) {
    %c0_i32 = arith.constant 0 : i32
    %c0_i32_0 = arith.constant 0 : i32
    return %arg0, %c0_i32 : i32, i32
  }
  func.func @transform_1(%arg0: i32) -> (i32, i32) {
    %c0_i32 = arith.constant 0 : i32
    %c0_i32_0 = arith.constant 0 : i32
    return %arg0, %c0_i32 : i32, i32
  }
  func.func @transform_2(%arg0: i32) -> (i32, i32) {
    %c0_i32 = arith.constant 0 : i32
    %c0_i32_0 = arith.constant 0 : i32
    return %arg0, %c0_i32 : i32, i32
  }
  func.func @transform_3(%arg0: i32) -> (i32, i32) {
    %c0_i32 = arith.constant 0 : i32
    %c0_i32_0 = arith.constant 0 : i32
    return %arg0, %c0_i32 : i32, i32
  }
  func.func @transform_4(%arg0: i32) -> (i32, i32) {
    %c0_i32 = arith.constant 0 : i32
    %c0_i32_0 = arith.constant 0 : i32
    return %arg0, %c0_i32 : i32, i32
  }
  func.func @transform_5(%arg0: i32) -> (i32, i32) {
    %c0_i32 = arith.constant 0 : i32
    %c0_i32_0 = arith.constant 0 : i32
    return %arg0, %c0_i32 : i32, i32
  }
  func.func @transform_6(%arg0: i32) -> (i32, i32) {
    %c0_i32 = arith.constant 0 : i32
    %c0_i32_0 = arith.constant 0 : i32
    return %arg0, %c0_i32 : i32, i32
  }
  func.func @transform_7(%arg0: i32) -> (i32, i32) {
    %c0_i32 = arith.constant 0 : i32
    %c0_i32_0 = arith.constant 0 : i32
    return %arg0, %c0_i32 : i32, i32
  }
  func.func @transform_8(%arg0: i32) -> (i32, i32) {
    %c0_i32 = arith.constant 0 : i32
    %c0_i32_0 = arith.constant 0 : i32
    return %arg0, %c0_i32 : i32, i32
  }
}

</mosaic_0001>

<llo_original>
// kernel: tpu_custom_call.1
$region0: #{tpu_custom_call.1}
  #allocation0 [shape = 'u32[]', space=smem, size = 0x4, offset = 0x4, fixed_abs, tag = 'smem constant byte address 0x4 - core index']
  #allocation1 [shape = 'u32[144,128]{1,0:T(1,128)}', space=vmem, size = 0x12000, scoped, tag = 'internal scratch']
  %s0 = inlined_call_operand.vmem [shape: f32[2048,21], index: 0, kind: input, shape index: {}]
  %s1 = inlined_call_operand.vmem [shape: f32[2048,3], index: 1, kind: output, shape index: {0}]
  %s2 = inlined_call_operand.vmem [shape: f32[2048,3], index: 2, kind: output, shape index: {1}]
  %s3 = inlined_call_operand.vmem [shape: f32[2048,3], index: 3, kind: output, shape index: {2}]
  %s4 = inlined_call_operand.vmem [shape: f32[2048,3], index: 4, kind: output, shape index: {3}]
  %s5 = inlined_call_operand.vmem [shape: f32[2048,3], index: 5, kind: output, shape index: {4}]
  %s6 = inlined_call_operand.vmem [shape: f32[2048,2], index: 6, kind: output, shape index: {5}]
  %s7 = inlined_call_operand.vmem [shape: f32[2048,2], index: 7, kind: output, shape index: {6}]
  %s8 = inlined_call_operand.vmem [shape: f32[2048,2], index: 8, kind: output, shape index: {7}]
  %9 = xla_tuple %s1, %s2, %s3, %s4, %s5, %s6, %s7, %s8
  %s10 = sld [smem:[#allocation0]]
  $region93: #{tpu_custom_call.1} parent=0
    _
  %s12 = ssub.s32 1, %s10
  %s13 = scalar_select 0, %s12, %s10
  loop: start=0, step=1, limit=4
  $region2: #{tpu_custom_call.1} parent=0 // loop_pre_header
    _
  $region3: #{tpu_custom_call.1} parent=0 // loop_header
    %s15 = sphi 0, %s19
    %p16 = scmp.ge.s32.totalorder %s15, 4
    %s25 = sphi 0, %s27
    %s28 = sphi 0, %s25
    %s29 = sphi 0, %s28
    %s45 = sphi 0, %s29
    %s51 = sphi 0, %s53
    %s54 = sphi 0, %s51
    %s55 = sphi 0, %s54
    %s71 = sphi 0, %s55
    %s77 = sphi 0, %s79
    %s80 = sphi 0, %s77
    %s81 = sphi 0, %s80
    %s97 = sphi 0, %s81
    %s103 = sphi 0, %s105
    %s106 = sphi 0, %s103
    %s107 = sphi 0, %s106
    %s123 = sphi 0, %s107
    %s129 = sphi 0, %s131
    %s132 = sphi 0, %s129
    %s133 = sphi 0, %s132
    %s149 = sphi 0, %s133
    %s155 = sphi 0, %s157
    %s158 = sphi 0, %s155
    %s159 = sphi 0, %s158
    %s175 = sphi 0, %s159
    %s181 = sphi 0, %s183
    %s184 = sphi 0, %s181
    %s185 = sphi 0, %s184
    %s201 = sphi 0, %s185
    %s207 = sphi 0, %s209
    %s210 = sphi 0, %s207
    %s211 = sphi 0, %s210
    %s227 = sphi 0, %s211
    %s233 = sphi 0, %s235
    %s236 = sphi 0, %s233
    %s237 = sphi 0, %s236
    %s253 = sphi 0, %s237
  $region4: #{tpu_custom_call.1} parent=0 // loop_header_branch
    %18 = sbr.rel (%p16) target = $region8
  $region5: #{tpu_custom_call.1} parent=0 // loop_body
    %s20 = ssub.s32 %s15, 1
    %s21 = ssub.s32 %s15, 2
    %s22 = sadd.s32 %s15, 1
    %s23 = ssub.s32 %s15, %s22
    %p24 = scmp.eq.s32.totalorder %s23, 0
    %s26 = sadd.s32 %s25, 1
    %s27 = scalar_select %p24, %s25, %s26
    %p30 = pneg %p24
    %p31 = scmp.eq.s32.totalorder %s15, 1
    %p32 = por %p30, %p31
    %p33 = scmp.ne.s32.totalorder %s25, %s28
    %p34 = scmp.eq.s32.totalorder %s15, 0
    %p35 = por %p33, %p34
    %p36 = scmp.ne.s32.totalorder %s25, %s28
    %p37 = scmp.eq.s32.totalorder %s20, 1
    %p38 = por %p36, %p37
    %p39 = scmp.ne.s32.totalorder %s28, %s29
    %p40 = scmp.eq.s32.totalorder %s20, 0
    %p41 = por %p39, %p40
    %p42 = scmp.ne.s32.totalorder %s28, %s29
    %p43 = scmp.eq.s32.totalorder %s21, 1
    %p44 = por %p42, %p43
    %p46 = scmp.ne.s32.totalorder %s29, %s45
    %p47 = scmp.eq.s32.totalorder %s21, 0
    %p48 = por %p46, %p47
    %s49 = ssub.s32 %s15, %s22
    %p50 = scmp.eq.s32.totalorder %s49, 0
    %s52 = sadd.s32 %s51, 1
    %s53 = scalar_select %p50, %s51, %s52
    %p56 = pneg %p50
    %p57 = scmp.eq.s32.totalorder %s15, 1
    %p58 = por %p56, %p57
    %p59 = scmp.ne.s32.totalorder %s51, %s54
    %p60 = scmp.eq.s32.totalorder %s15, 0
    %p61 = por %p59, %p60
    %p62 = scmp.ne.s32.totalorder %s51, %s54
    %p63 = scmp.eq.s32.totalorder %s20, 1
    %p64 = por %p62, %p63
    %p65 = scmp.ne.s32.totalorder %s54, %s55
    %p66 = scmp.eq.s32.totalorder %s20, 0
    %p67 = por %p65, %p66
    %p68 = scmp.ne.s32.totalorder %s54, %s55
    %p69 = scmp.eq.s32.totalorder %s21, 1
    %p70 = por %p68, %p69
    %p72 = scmp.ne.s32.totalorder %s55, %s71
    %p73 = scmp.eq.s32.totalorder %s21, 0
    %p74 = por %p72, %p73
    %s75 = ssub.s32 %s15, %s22
    %p76 = scmp.eq.s32.totalorder %s75, 0
    %s78 = sadd.s32 %s77, 1
    %s79 = scalar_select %p76, %s77, %s78
    %p82 = pneg %p76
    %p83 = scmp.eq.s32.totalorder %s15, 1
    %p84 = por %p82, %p83
    %p85 = scmp.ne.s32.totalorder %s77, %s80
    %p86 = scmp.eq.s32.totalorder %s15, 0
    %p87 = por %p85, %p86
    %p88 = scmp.ne.s32.totalorder %s77, %s80
    %p89 = scmp.eq.s32.totalorder %s20, 1
    %p90 = por %p88, %p89
    %p91 = scmp.ne.s32.totalorder %s80, %s81
    %p92 = scmp.eq.s32.totalorder %s20, 0
    %p93 = por %p91, %p92
    %p94 = scmp.ne.s32.totalorder %s80, %s81
    %p95 = scmp.eq.s32.totalorder %s21, 1
    %p96 = por %p94, %p95
    %p98 = scmp.ne.s32.totalorder %s81, %s97
    %p99 = scmp.eq.s32.totalorder %s21, 0
    %p100 = por %p98, %p99
    %s101 = ssub.s32 %s15, %s22
    %p102 = scmp.eq.s32.totalorder %s101, 0
    %s104 = sadd.s32 %s103, 1
    %s105 = scalar_select %p102, %s103, %s104
    %p108 = pneg %p102
    %p109 = scmp.eq.s32.totalorder %s15, 1
    %p110 = por %p108, %p109
    %p111 = scmp.ne.s32.totalorder %s103, %s106
    %p112 = scmp.eq.s32.totalorder %s15, 0
    %p113 = por %p111, %p112
    %p114 = scmp.ne.s32.totalorder %s103, %s106
    %p115 = scmp.eq.s32.totalorder %s20, 1
    %p116 = por %p114, %p115
    %p117 = scmp.ne.s32.totalorder %s106, %s107
    %p118 = scmp.eq.s32.totalorder %s20, 0
    %p119 = por %p117, %p118
    %p120 = scmp.ne.s32.totalorder %s106, %s107
    %p121 = scmp.eq.s32.totalorder %s21, 1
    %p122 = por %p120, %p121
    %p124 = scmp.ne.s32.totalorder %s107, %s123
    %p125 = scmp.eq.s32.totalorder %s21, 0
    %p126 = por %p124, %p125
    %s127 = ssub.s32 %s15, %s22
    %p128 = scmp.eq.s32.totalorder %s127, 0
    %s130 = sadd.s32 %s129, 1
    %s131 = scalar_select %p128, %s129, %s130
    %p134 = pneg %p128
    %p135 = scmp.eq.s32.totalorder %s15, 1
    %p136 = por %p134, %p135
    %p137 = scmp.ne.s32.totalorder %s129, %s132
    %p138 = scmp.eq.s32.totalorder %s15, 0
    %p139 = por %p137, %p138
    %p140 = scmp.ne.s32.totalorder %s129, %s132
    %p141 = scmp.eq.s32.totalorder %s20, 1
    %p142 = por %p140, %p141
    %p143 = scmp.ne.s32.totalorder %s132, %s133
    %p144 = scmp.eq.s32.totalorder %s20, 0
    %p145 = por %p143, %p144
    %p146 = scmp.ne.s32.totalorder %s132, %s133
    %p147 = scmp.eq.s32.totalorder %s21, 1
    %p148 = por %p146, %p147
    %p150 = scmp.ne.s32.totalorder %s133, %s149
    %p151 = scmp.eq.s32.totalorder %s21, 0
    %p152 = por %p150, %p151
    %s153 = ssub.s32 %s15, %s22
    %p154 = scmp.eq.s32.totalorder %s153, 0
    %s156 = sadd.s32 %s155, 1
    %s157 = scalar_select %p154, %s155, %s156
    %p160 = pneg %p154
    %p161 = scmp.eq.s32.totalorder %s15, 1
    %p162 = por %p160, %p161
    %p163 = scmp.ne.s32.totalorder %s155, %s158
    %p164 = scmp.eq.s32.totalorder %s15, 0
    %p165 = por %p163, %p164
    %p166 = scmp.ne.s32.totalorder %s155, %s158
    %p167 = scmp.eq.s32.totalorder %s20, 1
    %p168 = por %p166, %p167
    %p169 = scmp.ne.s32.totalorder %s158, %s159
    %p170 = scmp.eq.s32.totalorder %s20, 0
    %p171 = por %p169, %p170
    %p172 = scmp.ne.s32.totalorder %s158, %s159
    %p173 = scmp.eq.s32.totalorder %s21, 1
    %p174 = por %p172, %p173
    %p176 = scmp.ne.s32.totalorder %s159, %s175
    %p177 = scmp.eq.s32.totalorder %s21, 0
    %p178 = por %p176, %p177
    %s179 = ssub.s32 %s15, %s22
    %p180 = scmp.eq.s32.totalorder %s179, 0
    %s182 = sadd.s32 %s181, 1
    %s183 = scalar_select %p180, %s181, %s182
    %p186 = pneg %p180
    %p187 = scmp.eq.s32.totalorder %s15, 1
    %p188 = por %p186, %p187
    %p189 = scmp.ne.s32.totalorder %s181, %s184
    %p190 = scmp.eq.s32.totalorder %s15, 0
    %p191 = por %p189, %p190
    %p192 = scmp.ne.s32.totalorder %s181, %s184
    %p193 = scmp.eq.s32.totalorder %s20, 1
    %p194 = por %p192, %p193
    %p195 = scmp.ne.s32.totalorder %s184, %s185
    %p196 = scmp.eq.s32.totalorder %s20, 0
    %p197 = por %p195, %p196
    %p198 = scmp.ne.s32.totalorder %s184, %s185
    %p199 = scmp.eq.s32.totalorder %s21, 1
    %p200 = por %p198, %p199
    %p202 = scmp.ne.s32.totalorder %s185, %s201
    %p203 = scmp.eq.s32.totalorder %s21, 0
    %p204 = por %p202, %p203
    %s205 = ssub.s32 %s15, %s22
    %p206 = scmp.eq.s32.totalorder %s205, 0
    %s208 = sadd.s32 %s207, 1
    %s209 = scalar_select %p206, %s207, %s208
    %p212 = pneg %p206
    %p213 = scmp.eq.s32.totalorder %s15, 1
    %p214 = por %p212, %p213
    %p215 = scmp.ne.s32.totalorder %s207, %s210
    %p216 = scmp.eq.s32.totalorder %s15, 0
    %p217 = por %p215, %p216
    %p218 = scmp.ne.s32.totalorder %s207, %s210
    %p219 = scmp.eq.s32.totalorder %s20, 1
    %p220 = por %p218, %p219
    %p221 = scmp.ne.s32.totalorder %s210, %s211
    %p222 = scmp.eq.s32.totalorder %s20, 0
    %p223 = por %p221, %p222
    %p224 = scmp.ne.s32.totalorder %s210, %s211
    %p225 = scmp.eq.s32.totalorder %s21, 1
    %p226 = por %p224, %p225
    %p228 = scmp.ne.s32.totalorder %s211, %s227
    %p229 = scmp.eq.s32.totalorder %s21, 0
    %p230 = por %p228, %p229
    %s231 = ssub.s32 %s15, %s22
    %p232 = scmp.eq.s32.totalorder %s231, 0
    %s234 = sadd.s32 %s233, 1
    %s235 = scalar_select %p232, %s233, %s234
    %p238 = pneg %p232
    %p239 = scmp.eq.s32.totalorder %s15, 1
    %p240 = por %p238, %p239
    %p241 = scmp.ne.s32.totalorder %s233, %s236
    %p242 = scmp.eq.s32.totalorder %s15, 0
    %p243 = por %p241, %p242
    %p244 = scmp.ne.s32.totalorder %s233, %s236
    %p245 = scmp.eq.s32.totalorder %s20, 1
    %p246 = por %p244, %p245
    %p247 = scmp.ne.s32.totalorder %s236, %s237
    %p248 = scmp.eq.s32.totalorder %s20, 0
    %p249 = por %p247, %p248
    %p250 = scmp.ne.s32.totalorder %s236, %s237
    %p251 = scmp.eq.s32.totalorder %s21, 1
    %p252 = por %p250, %p251
    %p254 = scmp.ne.s32.totalorder %s237, %s253
    %p255 = scmp.eq.s32.totalorder %s21, 0
    %p256 = por %p254, %p255
    %p257 = scmp.le.s32.totalorder 1, %s15
    %p258 = scmp.lt.s32.totalorder %s15, 3
    %p259 = pnand %p257, %p258
    %p260 = pneg %p259
    // Predicated region
    $region9: #{tpu_custom_call.1} parent=5 // pred_check
      _
    $region10: #{tpu_custom_call.1} parent=5 // pred_check_branch
      %262 = sbr.rel (%p259) target = $region12
    $region11: #{tpu_custom_call.1} parent=5 // pred_region
      %s263 = ssub.s32 %s15, 1
    $region12: #{tpu_custom_call.1} parent=5 // pred_fallthru
      _
    %p264 = scmp.lt.s32.totalorder %s15, 2
    // Predicated region
    $region13: #{tpu_custom_call.1} parent=5 // pred_check
      %p265 = pneg %p264
    $region14: #{tpu_custom_call.1} parent=5 // pred_check_branch
      %267 = sbr.rel (%p265) target = $region16
    $region15: #{tpu_custom_call.1} parent=5 // pred_region
      // Predicated region
      $region17: #{tpu_custom_call.1} parent=15 // pred_check
        %p268 = pneg %p35
      $region18: #{tpu_custom_call.1} parent=15 // pred_check_branch
        %270 = sbr.rel (%p268) target = $region20
      $region19: #{tpu_custom_call.1} parent=15 // pred_region
        %s271 = smul.u32 128, %s15
        %p272 = scmp.lt.s32.totalorder %s271, 255
        %s273 = scalar_select %p272, %s271, 255
        %s274 = smul.addr %s273, 8
        %s275 = scalar_lea.vmem %s0, %s274
        %s276 = smul.u32 128, %s15
      $region20: #{tpu_custom_call.1} parent=15 // pred_fallthru
        _
    $region16: #{tpu_custom_call.1} parent=5 // pred_fallthru
      _
    %p277 = scmp.le.s32.totalorder 1, %s15
    %p278 = scmp.lt.s32.totalorder %s15, 3
    %p279 = pnand %p277, %p278
    %p280 = pneg %p279
    // Predicated region
    $region21: #{tpu_custom_call.1} parent=5 // pred_check
      _
    $region22: #{tpu_custom_call.1} parent=5 // pred_check_branch
      %282 = sbr.rel (%p279) target = $region24
    $region23: #{tpu_custom_call.1} parent=5 // pred_region
      %s283 = ssub.s32 %s15, 1
      %s284 = smul.u32 128, %s20
      %p285 = scmp.lt.s32.totalorder %s284, 255
      %s286 = scalar_select %p285, %s284, 255
      %s287 = smul.addr %s286, 8
      %s288 = scalar_lea.vmem %s0, %s287
      %p289 = pneg %p41
      %p290 = pneg %p38
      %p291 = pneg %p67
      %p292 = pneg %p64
      %s293 = smul.u32 128, %s20
      %p294 = scmp.lt.s32.totalorder %s293, 255
      %s295 = scalar_select %p294, %s293, 255
      %s296 = smul.addr %s295, 8
      %s297 = scalar_lea.vmem %s1, %s296
      %p298 = pneg %p93
      %p299 = pneg %p90
      %s300 = smul.u32 128, %s20
      %p301 = scmp.lt.s32.totalorder %s300, 255
      %s302 = scalar_select %p301, %s300, 255
      %s303 = smul.addr %s302, 8
      %s304 = scalar_lea.vmem %s2, %s303
      %p305 = pneg %p119
      %p306 = pneg %p116
      %s307 = smul.u32 128, %s20
      %p308 = scmp.lt.s32.totalorder %s307, 255
      %s309 = scalar_select %p308, %s307, 255
      %s310 = smul.addr %s309, 8
      %s311 = scalar_lea.vmem %s3, %s310
      %p312 = pneg %p145
      %p313 = pneg %p142
      %s314 = smul.u32 128, %s20
      %p315 = scmp.lt.s32.totalorder %s314, 255
      %s316 = scalar_select %p315, %s314, 255
      %s317 = smul.addr %s316, 8
      %s318 = scalar_lea.vmem %s4, %s317
      %p319 = pneg %p171
      %p320 = pneg %p168
      %s321 = smul.u32 128, %s20
      %p322 = scmp.lt.s32.totalorder %s321, 255
      %s323 = scalar_select %p322, %s321, 255
      %s324 = smul.addr %s323, 8
      %s325 = scalar_lea.vmem %s5, %s324
      %p326 = pneg %p197
      %p327 = pneg %p194
      %s328 = smul.u32 128, %s20
      %p329 = scmp.lt.s32.totalorder %s328, 255
      %s330 = scalar_select %p329, %s328, 255
      %s331 = smul.addr %s330, 8
      %s332 = scalar_lea.vmem %s6, %s331
      %p333 = pneg %p223
      %p334 = pneg %p220
      %s335 = smul.u32 128, %s20
      %p336 = scmp.lt.s32.totalorder %s335, 255
      %s337 = scalar_select %p336, %s335, 255
      %s338 = smul.addr %s337, 8
      %s339 = scalar_lea.vmem %s7, %s338
      %p340 = pneg %p249
      %p341 = pneg %p246
      %s342 = smul.u32 128, %s20
      %p343 = scmp.lt.s32.totalorder %s342, 255
      %s344 = scalar_select %p343, %s342, 255
      %s345 = smul.addr %s344, 8
      %s346 = scalar_lea.vmem %s8, %s345
      %s347 = smul.u32 128, %s20
      %p348 = scmp.lt.s32.totalorder %s347, 255
      %s349 = scalar_select %p348, %s347, 255
      %s350 = smul.addr %s349, 8
      %s351 = scalar_lea.vmem %s0, %s350
      %s352 = smul.u32 128, %s20
      %s353 = smul.u32 128, %s20
      %p354 = scmp.lt.s32.totalorder %s353, 255
      %s355 = scalar_select %p354, %s353, 255
      %s356 = smul.addr %s355, 8
      %s357 = scalar_lea.vmem %s1, %s356
      %s358 = smul.u32 128, %s20
      %s359 = smul.u32 128, %s20
      %p360 = scmp.lt.s32.totalorder %s359, 255
      %s361 = scalar_select %p360, %s359, 255
      %s362 = smul.addr %s361, 8
      %s363 = scalar_lea.vmem %s2, %s362
      %s364 = smul.u32 128, %s20
      %s365 = smul.u32 128, %s20
      %p366 = scmp.lt.s32.totalorder %s365, 255
      %s367 = scalar_select %p366, %s365, 255
      %s368 = smul.addr %s367, 8
      %s369 = scalar_lea.vmem %s3, %s368
      %s370 = smul.u32 128, %s20
      %s371 = smul.u32 128, %s20
      %p372 = scmp.lt.s32.totalorder %s371, 255
      %s373 = scalar_select %p372, %s371, 255
      %s374 = smul.addr %s373, 8
      %s375 = scalar_lea.vmem %s4, %s374
      %s376 = smul.u32 128, %s20
      %s377 = smul.u32 128, %s20
      %p378 = scmp.lt.s32.totalorder %s377, 255
      %s379 = scalar_select %p378, %s377, 255
      %s380 = smul.addr %s379, 8
      %s381 = scalar_lea.vmem %s5, %s380
      %s382 = smul.u32 128, %s20
      %s383 = smul.u32 128, %s20
      %p384 = scmp.lt.s32.totalorder %s383, 255
      %s385 = scalar_select %p384, %s383, 255
      %s386 = smul.addr %s385, 8
      %s387 = scalar_lea.vmem %s6, %s386
      %s388 = smul.u32 128, %s20
      %s389 = smul.u32 128, %s20
      %p390 = scmp.lt.s32.totalorder %s389, 255
      %s391 = scalar_select %p390, %s389, 255
      %s392 = smul.addr %s391, 8
      %s393 = scalar_lea.vmem %s7, %s392
      %s394 = smul.u32 128, %s20
      %s395 = smul.u32 128, %s20
      %p396 = scmp.lt.s32.totalorder %s395, 255
      %s397 = scalar_select %p396, %s395, 255
      %s398 = smul.addr %s397, 8
      %s399 = scalar_lea.vmem %s8, %s398
      %s400 = smul.u32 128, %s20
      %v401 = vld [vmem:[%s351] sm:$0xff]
      %v402 = vld [vmem:[%s351 + $0x8] sm:$0xff]
      %v403 = vld [vmem:[%s351 + $0x10] sm:$0xff]
      %v404 = vld [vmem:[%s351 + $0x18] sm:$0xff]
      %v405 = vld [vmem:[%s351 + $0x20] sm:$0xff]
      %v406 = vld [vmem:[%s351 + $0x28] sm:$0xff]
      %v407 = vld [vmem:[%s351 + $0x30] sm:$0xff]
      %v408 = vld [vmem:[%s351 + $0x38] sm:$0xff]
      %v409 = vld [vmem:[%s351 + $0x40] sm:$0xff]
      %v410 = vld [vmem:[%s351 + $0x48] sm:$0xff]
      %v411 = vld [vmem:[%s351 + $0x50] sm:$0xff]
      %v412 = vld [vmem:[%s351 + $0x58] sm:$0xff]
      %v413 = vld [vmem:[%s351 + $0x60] sm:$0xff]
      %v414 = vld [vmem:[%s351 + $0x68] sm:$0xff]
      %v415 = vld [vmem:[%s351 + $0x70] sm:$0xff]
      %v416 = vld [vmem:[%s351 + $0x78] sm:$0xff]
      %v417 = vld [vmem:[%s351 + $0x80] sm:$0xff]
      %v418 = vld [vmem:[%s351 + $0x88] sm:$0xff]
      %v419 = vld [vmem:[%s351 + $0x90] sm:$0xff]
      %v420 = vld [vmem:[%s351 + $0x98] sm:$0xff]
      %v421 = vld [vmem:[%s351 + $0xa0] sm:$0xff]
      %v422 = vld [vmem:[%s351 + $0xa8] sm:$0xff]
      %v423 = vld [vmem:[%s351 + $0xb0] sm:$0xff]
      %v424 = vld [vmem:[%s351 + $0xb8] sm:$0xff]
      %v425 = vld [vmem:[%s351 + $0xc0] sm:$0xff]
      %v426 = vld [vmem:[%s351 + $0xc8] sm:$0xff]
      %v427 = vld [vmem:[%s351 + $0xd0] sm:$0xff]
      %v428 = vld [vmem:[%s351 + $0xd8] sm:$0xff]
      %v429 = vld [vmem:[%s351 + $0xe0] sm:$0xff]
      %v430 = vld [vmem:[%s351 + $0xe8] sm:$0xff]
      %v431 = vld [vmem:[%s351 + $0xf0] sm:$0xff]
      %v432 = vld [vmem:[%s351 + $0xf8] sm:$0xff]
      %v433 = vld [vmem:[%s351 + $0x100] sm:$0xff]
      %v434 = vld [vmem:[%s351 + $0x108] sm:$0xff]
      %v435 = vld [vmem:[%s351 + $0x110] sm:$0xff]
      %v436 = vld [vmem:[%s351 + $0x118] sm:$0xff]
      %v437 = vld [vmem:[%s351 + $0x120] sm:$0xff]
      %v438 = vld [vmem:[%s351 + $0x128] sm:$0xff]
      %v439 = vld [vmem:[%s351 + $0x130] sm:$0xff]
      %v440 = vld [vmem:[%s351 + $0x138] sm:$0xff]
      %v441 = vld [vmem:[%s351 + $0x140] sm:$0xff]
      %v442 = vld [vmem:[%s351 + $0x148] sm:$0xff]
      %v443 = vld [vmem:[%s351 + $0x150] sm:$0xff]
      %v444 = vld [vmem:[%s351 + $0x158] sm:$0xff]
      %v445 = vld [vmem:[%s351 + $0x160] sm:$0xff]
      %v446 = vld [vmem:[%s351 + $0x168] sm:$0xff]
      %v447 = vld [vmem:[%s351 + $0x170] sm:$0xff]
      %v448 = vld [vmem:[%s351 + $0x178] sm:$0xff]
      %v449 = vld [vmem:[%s351 + $0x180] sm:$0xff]
      %v450 = vld [vmem:[%s351 + $0x188] sm:$0xff]
      %v451 = vld [vmem:[%s351 + $0x190] sm:$0xff]
      %v452 = vld [vmem:[%s351 + $0x198] sm:$0xff]
      %v453 = vld [vmem:[%s351 + $0x1a0] sm:$0xff]
      %v454 = vld [vmem:[%s351 + $0x1a8] sm:$0xff]
      %v455 = vld [vmem:[%s351 + $0x1b0] sm:$0xff]
      %v456 = vld [vmem:[%s351 + $0x1b8] sm:$0xff]
      %v457 = vld [vmem:[%s351 + $0x1c0] sm:$0xff]
      %v458 = vld [vmem:[%s351 + $0x1c8] sm:$0xff]
      %v459 = vld [vmem:[%s351 + $0x1d0] sm:$0xff]
      %v460 = vld [vmem:[%s351 + $0x1d8] sm:$0xff]
      %v461 = vld [vmem:[%s351 + $0x1e0] sm:$0xff]
      %v462 = vld [vmem:[%s351 + $0x1e8] sm:$0xff]
      %v463 = vld [vmem:[%s351 + $0x1f0] sm:$0xff]
      %v464 = vld [vmem:[%s351 + $0x1f8] sm:$0xff]
      %v465 = vld [vmem:[%s351 + $0x200] sm:$0xff]
      %v466 = vld [vmem:[%s351 + $0x208] sm:$0xff]
      %v467 = vld [vmem:[%s351 + $0x210] sm:$0xff]
      %v468 = vld [vmem:[%s351 + $0x218] sm:$0xff]
      %v469 = vld [vmem:[%s351 + $0x220] sm:$0xff]
      %v470 = vld [vmem:[%s351 + $0x228] sm:$0xff]
      %v471 = vld [vmem:[%s351 + $0x230] sm:$0xff]
      %v472 = vld [vmem:[%s351 + $0x238] sm:$0xff]
      %v473 = vld [vmem:[%s351 + $0x240] sm:$0xff]
      %v474 = vld [vmem:[%s351 + $0x248] sm:$0xff]
      %v475 = vld [vmem:[%s351 + $0x250] sm:$0xff]
      %v476 = vld [vmem:[%s351 + $0x258] sm:$0xff]
      %v477 = vld [vmem:[%s351 + $0x260] sm:$0xff]
      %v478 = vld [vmem:[%s351 + $0x268] sm:$0xff]
      %v479 = vld [vmem:[%s351 + $0x270] sm:$0xff]
      %v480 = vld [vmem:[%s351 + $0x278] sm:$0xff]
      %v481 = vld [vmem:[%s351 + $0x280] sm:$0xff]
      %v482 = vld [vmem:[%s351 + $0x288] sm:$0xff]
      %v483 = vld [vmem:[%s351 + $0x290] sm:$0xff]
      %v484 = vld [vmem:[%s351 + $0x298] sm:$0xff]
      %v485 = vld [vmem:[%s351 + $0x2a0] sm:$0xff]
      %v486 = vld [vmem:[%s351 + $0x2a8] sm:$0xff]
      %v487 = vld [vmem:[%s351 + $0x2b0] sm:$0xff]
      %v488 = vld [vmem:[%s351 + $0x2b8] sm:$0xff]
      %v489 = vld [vmem:[%s351 + $0x2c0] sm:$0xff]
      %v490 = vld [vmem:[%s351 + $0x2c8] sm:$0xff]
      %v491 = vld [vmem:[%s351 + $0x2d0] sm:$0xff]
      %v492 = vld [vmem:[%s351 + $0x2d8] sm:$0xff]
      %v493 = vld [vmem:[%s351 + $0x2e0] sm:$0xff]
      %v494 = vld [vmem:[%s351 + $0x2e8] sm:$0xff]
      %v495 = vld [vmem:[%s351 + $0x2f0] sm:$0xff]
      %v496 = vld [vmem:[%s351 + $0x2f8] sm:$0xff]
      %v497 = vld [vmem:[%s351 + $0x300] sm:$0xff]
      %v498 = vld [vmem:[%s351 + $0x308] sm:$0xff]
      %v499 = vld [vmem:[%s351 + $0x310] sm:$0xff]
      %v500 = vld [vmem:[%s351 + $0x318] sm:$0xff]
      %v501 = vld [vmem:[%s351 + $0x320] sm:$0xff]
      %v502 = vld [vmem:[%s351 + $0x328] sm:$0xff]
      %v503 = vld [vmem:[%s351 + $0x330] sm:$0xff]
      %v504 = vld [vmem:[%s351 + $0x338] sm:$0xff]
      %v505 = vld [vmem:[%s351 + $0x340] sm:$0xff]
      %v506 = vld [vmem:[%s351 + $0x348] sm:$0xff]
      %v507 = vld [vmem:[%s351 + $0x350] sm:$0xff]
      %v508 = vld [vmem:[%s351 + $0x358] sm:$0xff]
      %v509 = vld [vmem:[%s351 + $0x360] sm:$0xff]
      %v510 = vld [vmem:[%s351 + $0x368] sm:$0xff]
      %v511 = vld [vmem:[%s351 + $0x370] sm:$0xff]
      %v512 = vld [vmem:[%s351 + $0x378] sm:$0xff]
      %v513 = vld [vmem:[%s351 + $0x380] sm:$0xff]
      %v514 = vld [vmem:[%s351 + $0x388] sm:$0xff]
      %v515 = vld [vmem:[%s351 + $0x390] sm:$0xff]
      %v516 = vld [vmem:[%s351 + $0x398] sm:$0xff]
      %v517 = vld [vmem:[%s351 + $0x3a0] sm:$0xff]
      %v518 = vld [vmem:[%s351 + $0x3a8] sm:$0xff]
      %v519 = vld [vmem:[%s351 + $0x3b0] sm:$0xff]
      %v520 = vld [vmem:[%s351 + $0x3b8] sm:$0xff]
      %v521 = vld [vmem:[%s351 + $0x3c0] sm:$0xff]
      %v522 = vld [vmem:[%s351 + $0x3c8] sm:$0xff]
      %v523 = vld [vmem:[%s351 + $0x3d0] sm:$0xff]
      %v524 = vld [vmem:[%s351 + $0x3d8] sm:$0xff]
      %v525 = vld [vmem:[%s351 + $0x3e0] sm:$0xff]
      %v526 = vld [vmem:[%s351 + $0x3e8] sm:$0xff]
      %v527 = vld [vmem:[%s351 + $0x3f0] sm:$0xff]
      %v528 = vld [vmem:[%s351 + $0x3f8] sm:$0xff]
      %vm529 = vcmask 23552
      %530 = vst.msk [vmem:[%s357] sm:$0xff] %vm529, %v401
      %531 = vst.msk [vmem:[%s357 + $0x8] sm:$0xff] %vm529, %v402
      %532 = vst.msk [vmem:[%s357 + $0x10] sm:$0xff] %vm529, %v403
      %533 = vst.msk [vmem:[%s357 + $0x18] sm:$0xff] %vm529, %v404
      %534 = vst.msk [vmem:[%s357 + $0x20] sm:$0xff] %vm529, %v405
      %535 = vst.msk [vmem:[%s357 + $0x28] sm:$0xff] %vm529, %v406
      %536 = vst.msk [vmem:[%s357 + $0x30] sm:$0xff] %vm529, %v407
      %537 = vst.msk [vmem:[%s357 + $0x38] sm:$0xff] %vm529, %v408
      %538 = vst.msk [vmem:[%s357 + $0x40] sm:$0xff] %vm529, %v409
      %539 = vst.msk [vmem:[%s357 + $0x48] sm:$0xff] %vm529, %v410
      %540 = vst.msk [vmem:[%s357 + $0x50] sm:$0xff] %vm529, %v411
      %541 = vst.msk [vmem:[%s357 + $0x58] sm:$0xff] %vm529, %v412
      %542 = vst.msk [vmem:[%s357 + $0x60] sm:$0xff] %vm529, %v413
      %543 = vst.msk [vmem:[%s357 + $0x68] sm:$0xff] %vm529, %v414
      %544 = vst.msk [vmem:[%s357 + $0x70] sm:$0xff] %vm529, %v415
      %545 = vst.msk [vmem:[%s357 + $0x78] sm:$0xff] %vm529, %v416
      %546 = vst.msk [vmem:[%s357 + $0x80] sm:$0xff] %vm529, %v417
      %547 = vst.msk [vmem:[%s357 + $0x88] sm:$0xff] %vm529, %v418
      %548 = vst.msk [vmem:[%s357 + $0x90] sm:$0xff] %vm529, %v419
      %549 = vst.msk [vmem:[%s357 + $0x98] sm:$0xff] %vm529, %v420
      %550 = vst.msk [vmem:[%s357 + $0xa0] sm:$0xff] %vm529, %v421
      %551 = vst.msk [vmem:[%s357 + $0xa8] sm:$0xff] %vm529, %v422
      %552 = vst.msk [vmem:[%s357 + $0xb0] sm:$0xff] %vm529, %v423
      %553 = vst.msk [vmem:[%s357 + $0xb8] sm:$0xff] %vm529, %v424
      %554 = vst.msk [vmem:[%s357 + $0xc0] sm:$0xff] %vm529, %v425
      %555 = vst.msk [vmem:[%s357 + $0xc8] sm:$0xff] %vm529, %v426
      %556 = vst.msk [vmem:[%s357 + $0xd0] sm:$0xff] %vm529, %v427
      %557 = vst.msk [vmem:[%s357 + $0xd8] sm:$0xff] %vm529, %v428
      %558 = vst.msk [vmem:[%s357 + $0xe0] sm:$0xff] %vm529, %v429
      %559 = vst.msk [vmem:[%s357 + $0xe8] sm:$0xff] %vm529, %v430
      %560 = vst.msk [vmem:[%s357 + $0xf0] sm:$0xff] %vm529, %v431
      %561 = vst.msk [vmem:[%s357 + $0xf8] sm:$0xff] %vm529, %v432
      %562 = vst.msk [vmem:[%s357 + $0x100] sm:$0xff] %vm529, %v433
      %563 = vst.msk [vmem:[%s357 + $0x108] sm:$0xff] %vm529, %v434
      %564 = vst.msk [vmem:[%s357 + $0x110] sm:$0xff] %vm529, %v435
      %565 = vst.msk [vmem:[%s357 + $0x118] sm:$0xff] %vm529, %v436
      %566 = vst.msk [vmem:[%s357 + $0x120] sm:$0xff] %vm529, %v437
      %567 = vst.msk [vmem:[%s357 + $0x128] sm:$0xff] %vm529, %v438
      %568 = vst.msk [vmem:[%s357 + $0x130] sm:$0xff] %vm529, %v439
      %569 = vst.msk [vmem:[%s357 + $0x138] sm:$0xff] %vm529, %v440
      %570 = vst.msk [vmem:[%s357 + $0x140] sm:$0xff] %vm529, %v441
      %571 = vst.msk [vmem:[%s357 + $0x148] sm:$0xff] %vm529, %v442
      %572 = vst.msk [vmem:[%s357 + $0x150] sm:$0xff] %vm529, %v443
      %573 = vst.msk [vmem:[%s357 + $0x158] sm:$0xff] %vm529, %v444
      %574 = vst.msk [vmem:[%s357 + $0x160] sm:$0xff] %vm529, %v445
      %575 = vst.msk [vmem:[%s357 + $0x168] sm:$0xff] %vm529, %v446
      %576 = vst.msk [vmem:[%s357 + $0x170] sm:$0xff] %vm529, %v447
      %577 = vst.msk [vmem:[%s357 + $0x178] sm:$0xff] %vm529, %v448
      %578 = vst.msk [vmem:[%s357 + $0x180] sm:$0xff] %vm529, %v449
      %579 = vst.msk [vmem:[%s357 + $0x188] sm:$0xff] %vm529, %v450
      %580 = vst.msk [vmem:[%s357 + $0x190] sm:$0xff] %vm529, %v451
      %581 = vst.msk [vmem:[%s357 + $0x198] sm:$0xff] %vm529, %v452
      %582 = vst.msk [vmem:[%s357 + $0x1a0] sm:$0xff] %vm529, %v453
      %583 = vst.msk [vmem:[%s357 + $0x1a8] sm:$0xff] %vm529, %v454
      %584 = vst.msk [vmem:[%s357 + $0x1b0] sm:$0xff] %vm529, %v455
      %585 = vst.msk [vmem:[%s357 + $0x1b8] sm:$0xff] %vm529, %v456
      %586 = vst.msk [vmem:[%s357 + $0x1c0] sm:$0xff] %vm529, %v457
      %587 = vst.msk [vmem:[%s357 + $0x1c8] sm:$0xff] %vm529, %v458
      %588 = vst.msk [vmem:[%s357 + $0x1d0] sm:$0xff] %vm529, %v459
      %589 = vst.msk [vmem:[%s357 + $0x1d8] sm:$0xff] %vm529, %v460
      %590 = vst.msk [vmem:[%s357 + $0x1e0] sm:$0xff] %vm529, %v461
      %591 = vst.msk [vmem:[%s357 + $0x1e8] sm:$0xff] %vm529, %v462
      %592 = vst.msk [vmem:[%s357 + $0x1f0] sm:$0xff] %vm529, %v463
      %593 = vst.msk [vmem:[%s357 + $0x1f8] sm:$0xff] %vm529, %v464
      %594 = vst.msk [vmem:[%s357 + $0x200] sm:$0xff] %vm529, %v465
      %595 = vst.msk [vmem:[%s357 + $0x208] sm:$0xff] %vm529, %v466
      %596 = vst.msk [vmem:[%s357 + $0x210] sm:$0xff] %vm529, %v467
      %597 = vst.msk [vmem:[%s357 + $0x218] sm:$0xff] %vm529, %v468
      %598 = vst.msk [vmem:[%s357 + $0x220] sm:$0xff] %vm529, %v469
      %599 = vst.msk [vmem:[%s357 + $0x228] sm:$0xff] %vm529, %v470
      %600 = vst.msk [vmem:[%s357 + $0x230] sm:$0xff] %vm529, %v471
      %601 = vst.msk [vmem:[%s357 + $0x238] sm:$0xff] %vm529, %v472
      %602 = vst.msk [vmem:[%s357 + $0x240] sm:$0xff] %vm529, %v473
      %603 = vst.msk [vmem:[%s357 + $0x248] sm:$0xff] %vm529, %v474
      %604 = vst.msk [vmem:[%s357 + $0x250] sm:$0xff] %vm529, %v475
      %605 = vst.msk [vmem:[%s357 + $0x258] sm:$0xff] %vm529, %v476
      %606 = vst.msk [vmem:[%s357 + $0x260] sm:$0xff] %vm529, %v477
      %607 = vst.msk [vmem:[%s357 + $0x268] sm:$0xff] %vm529, %v478
      %608 = vst.msk [vmem:[%s357 + $0x270] sm:$0xff] %vm529, %v479
      %609 = vst.msk [vmem:[%s357 + $0x278] sm:$0xff] %vm529, %v480
      %610 = vst.msk [vmem:[%s357 + $0x280] sm:$0xff] %vm529, %v481
      %611 = vst.msk [vmem:[%s357 + $0x288] sm:$0xff] %vm529, %v482
      %612 = vst.msk [vmem:[%s357 + $0x290] sm:$0xff] %vm529, %v483
      %613 = vst.msk [vmem:[%s357 + $0x298] sm:$0xff] %vm529, %v484
      %614 = vst.msk [vmem:[%s357 + $0x2a0] sm:$0xff] %vm529, %v485
      %615 = vst.msk [vmem:[%s357 + $0x2a8] sm:$0xff] %vm529, %v486
      %616 = vst.msk [vmem:[%s357 + $0x2b0] sm:$0xff] %vm529, %v487
      %617 = vst.msk [vmem:[%s357 + $0x2b8] sm:$0xff] %vm529, %v488
      %618 = vst.msk [vmem:[%s357 + $0x2c0] sm:$0xff] %vm529, %v489
      %619 = vst.msk [vmem:[%s357 + $0x2c8] sm:$0xff] %vm529, %v490
      %620 = vst.msk [vmem:[%s357 + $0x2d0] sm:$0xff] %vm529, %v491
      %621 = vst.msk [vmem:[%s357 + $0x2d8] sm:$0xff] %vm529, %v492
      %622 = vst.msk [vmem:[%s357 + $0x2e0] sm:$0xff] %vm529, %v493
      %623 = vst.msk [vmem:[%s357 + $0x2e8] sm:$0xff] %vm529, %v494
      %624 = vst.msk [vmem:[%s357 + $0x2f0] sm:$0xff] %vm529, %v495
      %625 = vst.msk [vmem:[%s357 + $0x2f8] sm:$0xff] %vm529, %v496
      %626 = vst.msk [vmem:[%s357 + $0x300] sm:$0xff] %vm529, %v497
      %627 = vst.msk [vmem:[%s357 + $0x308] sm:$0xff] %vm529, %v498
      %628 = vst.msk [vmem:[%s357 + $0x310] sm:$0xff] %vm529, %v499
      %629 = vst.msk [vmem:[%s357 + $0x318] sm:$0xff] %vm529, %v500
      %630 = vst.msk [vmem:[%s357 + $0x320] sm:$0xff] %vm529, %v501
      %631 = vst.msk [vmem:[%s357 + $0x328] sm:$0xff] %vm529, %v502
      %632 = vst.msk [vmem:[%s357 + $0x330] sm:$0xff] %vm529, %v503
      %633 = vst.msk [vmem:[%s357 + $0x338] sm:$0xff] %vm529, %v504
      %634 = vst.msk [vmem:[%s357 + $0x340] sm:$0xff] %vm529, %v505
      %635 = vst.msk [vmem:[%s357 + $0x348] sm:$0xff] %vm529, %v506
      %636 = vst.msk [vmem:[%s357 + $0x350] sm:$0xff] %vm529, %v507
      %637 = vst.msk [vmem:[%s357 + $0x358] sm:$0xff] %vm529, %v508
      %638 = vst.msk [vmem:[%s357 + $0x360] sm:$0xff] %vm529, %v509
      %639 = vst.msk [vmem:[%s357 + $0x368] sm:$0xff] %vm529, %v510
      %640 = vst.msk [vmem:[%s357 + $0x370] sm:$0xff] %vm529, %v511
      %641 = vst.msk [vmem:[%s357 + $0x378] sm:$0xff] %vm529, %v512
      %642 = vst.msk [vmem:[%s357 + $0x380] sm:$0xff] %vm529, %v513
      %643 = vst.msk [vmem:[%s357 + $0x388] sm:$0xff] %vm529, %v514
      %644 = vst.msk [vmem:[%s357 + $0x390] sm:$0xff] %vm529, %v515
      %645 = vst.msk [vmem:[%s357 + $0x398] sm:$0xff] %vm529, %v516
      %646 = vst.msk [vmem:[%s357 + $0x3a0] sm:$0xff] %vm529, %v517
      %647 = vst.msk [vmem:[%s357 + $0x3a8] sm:$0xff] %vm529, %v518
      %648 = vst.msk [vmem:[%s357 + $0x3b0] sm:$0xff] %vm529, %v519
      %649 = vst.msk [vmem:[%s357 + $0x3b8] sm:$0xff] %vm529, %v520
      %650 = vst.msk [vmem:[%s357 + $0x3c0] sm:$0xff] %vm529, %v521
      %651 = vst.msk [vmem:[%s357 + $0x3c8] sm:$0xff] %vm529, %v522
      %652 = vst.msk [vmem:[%s357 + $0x3d0] sm:$0xff] %vm529, %v523
      %653 = vst.msk [vmem:[%s357 + $0x3d8] sm:$0xff] %vm529, %v524
      %654 = vst.msk [vmem:[%s357 + $0x3e0] sm:$0xff] %vm529, %v525
      %655 = vst.msk [vmem:[%s357 + $0x3e8] sm:$0xff] %vm529, %v526
      %656 = vst.msk [vmem:[%s357 + $0x3f0] sm:$0xff] %vm529, %v527
      %657 = vst.msk [vmem:[%s357 + $0x3f8] sm:$0xff] %vm529, %v528
      %786 = vrot.lane.b32.xlu0 %v401, 125
      %v787 = vpop.permute.xlu0 %786
      %788 = vrot.lane.b32.xlu0 %v402, 125
      %v789 = vpop.permute.xlu0 %788
      %790 = vrot.lane.b32.xlu0 %v403, 125
      %v791 = vpop.permute.xlu0 %790
      %792 = vrot.lane.b32.xlu0 %v404, 125
      %v793 = vpop.permute.xlu0 %792
      %794 = vrot.lane.b32.xlu0 %v405, 125
      %v795 = vpop.permute.xlu0 %794
      %796 = vrot.lane.b32.xlu0 %v406, 125
      %v797 = vpop.permute.xlu0 %796
      %798 = vrot.lane.b32.xlu0 %v407, 125
      %v799 = vpop.permute.xlu0 %798
      %800 = vrot.lane.b32.xlu0 %v408, 125
      %v801 = vpop.permute.xlu0 %800
      %802 = vrot.lane.b32.xlu0 %v409, 125
      %v803 = vpop.permute.xlu0 %802
      %804 = vrot.lane.b32.xlu0 %v410, 125
      %v805 = vpop.permute.xlu0 %804
      %806 = vrot.lane.b32.xlu0 %v411, 125
      %v807 = vpop.permute.xlu0 %806
      %808 = vrot.lane.b32.xlu0 %v412, 125
      %v809 = vpop.permute.xlu0 %808
      %810 = vrot.lane.b32.xlu0 %v413, 125
      %v811 = vpop.permute.xlu0 %810
      %812 = vrot.lane.b32.xlu0 %v414, 125
      %v813 = vpop.permute.xlu0 %812
      %814 = vrot.lane.b32.xlu0 %v415, 125
      %v815 = vpop.permute.xlu0 %814
      %816 = vrot.lane.b32.xlu0 %v416, 125
      %v817 = vpop.permute.xlu0 %816
      %818 = vrot.lane.b32.xlu0 %v417, 125
      %v819 = vpop.permute.xlu0 %818
      %820 = vrot.lane.b32.xlu0 %v418, 125
      %v821 = vpop.permute.xlu0 %820
      %822 = vrot.lane.b32.xlu0 %v419, 125
      %v823 = vpop.permute.xlu0 %822
      %824 = vrot.lane.b32.xlu0 %v420, 125
      %v825 = vpop.permute.xlu0 %824
      %826 = vrot.lane.b32.xlu0 %v421, 125
      %v827 = vpop.permute.xlu0 %826
      %828 = vrot.lane.b32.xlu0 %v422, 125
      %v829 = vpop.permute.xlu0 %828
      %830 = vrot.lane.b32.xlu0 %v423, 125
      %v831 = vpop.permute.xlu0 %830
      %832 = vrot.lane.b32.xlu0 %v424, 125
      %v833 = vpop.permute.xlu0 %832
      %834 = vrot.lane.b32.xlu0 %v425, 125
      %v835 = vpop.permute.xlu0 %834
      %836 = vrot.lane.b32.xlu0 %v426, 125
      %v837 = vpop.permute.xlu0 %836
      %838 = vrot.lane.b32.xlu0 %v427, 125
      %v839 = vpop.permute.xlu0 %838
      %840 = vrot.lane.b32.xlu0 %v428, 125
      %v841 = vpop.permute.xlu0 %840
      %842 = vrot.lane.b32.xlu0 %v429, 125
      %v843 = vpop.permute.xlu0 %842
      %844 = vrot.lane.b32.xlu0 %v430, 125
      %v845 = vpop.permute.xlu0 %844
      %846 = vrot.lane.b32.xlu0 %v431, 125
      %v847 = vpop.permute.xlu0 %846
      %848 = vrot.lane.b32.xlu0 %v432, 125
      %v849 = vpop.permute.xlu0 %848
      %850 = vrot.lane.b32.xlu0 %v433, 125
      %v851 = vpop.permute.xlu0 %850
      %852 = vrot.lane.b32.xlu0 %v434, 125
      %v853 = vpop.permute.xlu0 %852
      %854 = vrot.lane.b32.xlu0 %v435, 125
      %v855 = vpop.permute.xlu0 %854
      %856 = vrot.lane.b32.xlu0 %v436, 125
      %v857 = vpop.permute.xlu0 %856
      %858 = vrot.lane.b32.xlu0 %v437, 125
      %v859 = vpop.permute.xlu0 %858
      %860 = vrot.lane.b32.xlu0 %v438, 125
      %v861 = vpop.permute.xlu0 %860
      %862 = vrot.lane.b32.xlu0 %v439, 125
      %v863 = vpop.permute.xlu0 %862
      %864 = vrot.lane.b32.xlu0 %v440, 125
      %v865 = vpop.permute.xlu0 %864
      %866 = vrot.lane.b32.xlu0 %v441, 125
      %v867 = vpop.permute.xlu0 %866
      %868 = vrot.lane.b32.xlu0 %v442, 125
      %v869 = vpop.permute.xlu0 %868
      %870 = vrot.lane.b32.xlu0 %v443, 125
      %v871 = vpop.permute.xlu0 %870
      %872 = vrot.lane.b32.xlu0 %v444, 125
      %v873 = vpop.permute.xlu0 %872
      %874 = vrot.lane.b32.xlu0 %v445, 125
      %v875 = vpop.permute.xlu0 %874
      %876 = vrot.lane.b32.xlu0 %v446, 125
      %v877 = vpop.permute.xlu0 %876
      %878 = vrot.lane.b32.xlu0 %v447, 125
      %v879 = vpop.permute.xlu0 %878
      %880 = vrot.lane.b32.xlu0 %v448, 125
      %v881 = vpop.permute.xlu0 %880
      %882 = vrot.lane.b32.xlu0 %v449, 125
      %v883 = vpop.permute.xlu0 %882
      %884 = vrot.lane.b32.xlu0 %v450, 125
      %v885 = vpop.permute.xlu0 %884
      %886 = vrot.lane.b32.xlu0 %v451, 125
      %v887 = vpop.permute.xlu0 %886
      %888 = vrot.lane.b32.xlu0 %v452, 125
      %v889 = vpop.permute.xlu0 %888
      %890 = vrot.lane.b32.xlu0 %v453, 125
      %v891 = vpop.permute.xlu0 %890
      %892 = vrot.lane.b32.xlu0 %v454, 125
      %v893 = vpop.permute.xlu0 %892
      %894 = vrot.lane.b32.xlu0 %v455, 125
      %v895 = vpop.permute.xlu0 %894
      %896 = vrot.lane.b32.xlu0 %v456, 125
      %v897 = vpop.permute.xlu0 %896
      %898 = vrot.lane.b32.xlu0 %v457, 125
      %v899 = vpop.permute.xlu0 %898
      %900 = vrot.lane.b32.xlu0 %v458, 125
      %v901 = vpop.permute.xlu0 %900
      %902 = vrot.lane.b32.xlu0 %v459, 125
      %v903 = vpop.permute.xlu0 %902
      %904 = vrot.lane.b32.xlu0 %v460, 125
      %v905 = vpop.permute.xlu0 %904
      %906 = vrot.lane.b32.xlu0 %v461, 125
      %v907 = vpop.permute.xlu0 %906
      %908 = vrot.lane.b32.xlu0 %v462, 125
      %v909 = vpop.permute.xlu0 %908
      %910 = vrot.lane.b32.xlu0 %v463, 125
      %v911 = vpop.permute.xlu0 %910
      %912 = vrot.lane.b32.xlu0 %v464, 125
      %v913 = vpop.permute.xlu0 %912
      %914 = vrot.lane.b32.xlu0 %v465, 125
      %v915 = vpop.permute.xlu0 %914
      %916 = vrot.lane.b32.xlu0 %v466, 125
      %v917 = vpop.permute.xlu0 %916
      %918 = vrot.lane.b32.xlu0 %v467, 125
      %v919 = vpop.permute.xlu0 %918
      %920 = vrot.lane.b32.xlu0 %v468, 125
      %v921 = vpop.permute.xlu0 %920
      %922 = vrot.lane.b32.xlu0 %v469, 125
      %v923 = vpop.permute.xlu0 %922
      %924 = vrot.lane.b32.xlu0 %v470, 125
      %v925 = vpop.permute.xlu0 %924
      %926 = vrot.lane.b32.xlu0 %v471, 125
      %v927 = vpop.permute.xlu0 %926
      %928 = vrot.lane.b32.xlu0 %v472, 125
      %v929 = vpop.permute.xlu0 %928
      %930 = vrot.lane.b32.xlu0 %v473, 125
      %v931 = vpop.permute.xlu0 %930
      %932 = vrot.lane.b32.xlu0 %v474, 125
      %v933 = vpop.permute.xlu0 %932
      %934 = vrot.lane.b32.xlu0 %v475, 125
      %v935 = vpop.permute.xlu0 %934
      %936 = vrot.lane.b32.xlu0 %v476, 125
      %v937 = vpop.permute.xlu0 %936
      %938 = vrot.lane.b32.xlu0 %v477, 125
      %v939 = vpop.permute.xlu0 %938
      %940 = vrot.lane.b32.xlu0 %v478, 125
      %v941 = vpop.permute.xlu0 %940
      %942 = vrot.lane.b32.xlu0 %v479, 125
      %v943 = vpop.permute.xlu0 %942
      %944 = vrot.lane.b32.xlu0 %v480, 125
      %v945 = vpop.permute.xlu0 %944
      %946 = vrot.lane.b32.xlu0 %v481, 125
      %v947 = vpop.permute.xlu0 %946
      %948 = vrot.lane.b32.xlu0 %v482, 125
      %v949 = vpop.permute.xlu0 %948
      %950 = vrot.lane.b32.xlu0 %v483, 125
      %v951 = vpop.permute.xlu0 %950
      %952 = vrot.lane.b32.xlu0 %v484, 125
      %v953 = vpop.permute.xlu0 %952
      %954 = vrot.lane.b32.xlu0 %v485, 125
      %v955 = vpop.permute.xlu0 %954
      %956 = vrot.lane.b32.xlu0 %v486, 125
      %v957 = vpop.permute.xlu0 %956
      %958 = vrot.lane.b32.xlu0 %v487, 125
      %v959 = vpop.permute.xlu0 %958
      %960 = vrot.lane.b32.xlu0 %v488, 125
      %v961 = vpop.permute.xlu0 %960
      %962 = vrot.lane.b32.xlu0 %v489, 125
      %v963 = vpop.permute.xlu0 %962
      %964 = vrot.lane.b32.xlu0 %v490, 125
      %v965 = vpop.permute.xlu0 %964
      %966 = vrot.lane.b32.xlu0 %v491, 125
      %v967 = vpop.permute.xlu0 %966
      %968 = vrot.lane.b32.xlu0 %v492, 125
      %v969 = vpop.permute.xlu0 %968
      %970 = vrot.lane.b32.xlu0 %v493, 125
      %v971 = vpop.permute.xlu0 %970
      %972 = vrot.lane.b32.xlu0 %v494, 125
      %v973 = vpop.permute.xlu0 %972
      %974 = vrot.lane.b32.xlu0 %v495, 125
      %v975 = vpop.permute.xlu0 %974
      %976 = vrot.lane.b32.xlu0 %v496, 125
      %v977 = vpop.permute.xlu0 %976
      %978 = vrot.lane.b32.xlu0 %v497, 125
      %v979 = vpop.permute.xlu0 %978
      %980 = vrot.lane.b32.xlu0 %v498, 125
      %v981 = vpop.permute.xlu0 %980
      %982 = vrot.lane.b32.xlu0 %v499, 125
      %v983 = vpop.permute.xlu0 %982
      %984 = vrot.lane.b32.xlu0 %v500, 125
      %v985 = vpop.permute.xlu0 %984
      %986 = vrot.lane.b32.xlu0 %v501, 125
      %v987 = vpop.permute.xlu0 %986
      %988 = vrot.lane.b32.xlu0 %v502, 125
      %v989 = vpop.permute.xlu0 %988
      %990 = vrot.lane.b32.xlu0 %v503, 125
      %v991 = vpop.permute.xlu0 %990
      %992 = vrot.lane.b32.xlu0 %v504, 125
      %v993 = vpop.permute.xlu0 %992
      %994 = vrot.lane.b32.xlu0 %v505, 125
      %v995 = vpop.permute.xlu0 %994
      %996 = vrot.lane.b32.xlu0 %v506, 125
      %v997 = vpop.permute.xlu0 %996
      %998 = vrot.lane.b32.xlu0 %v507, 125
      %v999 = vpop.permute.xlu0 %998
      %1000 = vrot.lane.b32.xlu0 %v508, 125
      %v1001 = vpop.permute.xlu0 %1000
      %1002 = vrot.lane.b32.xlu0 %v509, 125
      %v1003 = vpop.permute.xlu0 %1002
      %1004 = vrot.lane.b32.xlu0 %v510, 125
      %v1005 = vpop.permute.xlu0 %1004
      %1006 = vrot.lane.b32.xlu0 %v511, 125
      %v1007 = vpop.permute.xlu0 %1006
      %1008 = vrot.lane.b32.xlu0 %v512, 125
      %v1009 = vpop.permute.xlu0 %1008
      %1010 = vrot.lane.b32.xlu0 %v513, 125
      %v1011 = vpop.permute.xlu0 %1010
      %1012 = vrot.lane.b32.xlu0 %v514, 125
      %v1013 = vpop.permute.xlu0 %1012
      %1014 = vrot.lane.b32.xlu0 %v515, 125
      %v1015 = vpop.permute.xlu0 %1014
      %1016 = vrot.lane.b32.xlu0 %v516, 125
      %v1017 = vpop.permute.xlu0 %1016
      %1018 = vrot.lane.b32.xlu0 %v517, 125
      %v1019 = vpop.permute.xlu0 %1018
      %1020 = vrot.lane.b32.xlu0 %v518, 125
      %v1021 = vpop.permute.xlu0 %1020
      %1022 = vrot.lane.b32.xlu0 %v519, 125
      %v1023 = vpop.permute.xlu0 %1022
      %1024 = vrot.lane.b32.xlu0 %v520, 125
      %v1025 = vpop.permute.xlu0 %1024
      %1026 = vrot.lane.b32.xlu0 %v521, 125
      %v1027 = vpop.permute.xlu0 %1026
      %1028 = vrot.lane.b32.xlu0 %v522, 125
      %v1029 = vpop.permute.xlu0 %1028
      %1030 = vrot.lane.b32.xlu0 %v523, 125
      %v1031 = vpop.permute.xlu0 %1030
      %1032 = vrot.lane.b32.xlu0 %v524, 125
      %v1033 = vpop.permute.xlu0 %1032
      %1034 = vrot.lane.b32.xlu0 %v525, 125
      %v1035 = vpop.permute.xlu0 %1034
      %1036 = vrot.lane.b32.xlu0 %v526, 125
      %v1037 = vpop.permute.xlu0 %1036
      %1038 = vrot.lane.b32.xlu0 %v527, 125
      %v1039 = vpop.permute.xlu0 %1038
      %1040 = vrot.lane.b32.xlu0 %v528, 125
      %v1041 = vpop.permute.xlu0 %1040
      %1170 = vst.msk [vmem:[%s363] sm:$0xff] %vm529, %v787
      %1171 = vst.msk [vmem:[%s363 + $0x8] sm:$0xff] %vm529, %v789
      %1172 = vst.msk [vmem:[%s363 + $0x10] sm:$0xff] %vm529, %v791
      %1173 = vst.msk [vmem:[%s363 + $0x18] sm:$0xff] %vm529, %v793
      %1174 = vst.msk [vmem:[%s363 + $0x20] sm:$0xff] %vm529, %v795
      %1175 = vst.msk [vmem:[%s363 + $0x28] sm:$0xff] %vm529, %v797
      %1176 = vst.msk [vmem:[%s363 + $0x30] sm:$0xff] %vm529, %v799
      %1177 = vst.msk [vmem:[%s363 + $0x38] sm:$0xff] %vm529, %v801
      %1178 = vst.msk [vmem:[%s363 + $0x40] sm:$0xff] %vm529, %v803
      %1179 = vst.msk [vmem:[%s363 + $0x48] sm:$0xff] %vm529, %v805
      %1180 = vst.msk [vmem:[%s363 + $0x50] sm:$0xff] %vm529, %v807
      %1181 = vst.msk [vmem:[%s363 + $0x58] sm:$0xff] %vm529, %v809
      %1182 = vst.msk [vmem:[%s363 + $0x60] sm:$0xff] %vm529, %v811
      %1183 = vst.msk [vmem:[%s363 + $0x68] sm:$0xff] %vm529, %v813
      %1184 = vst.msk [vmem:[%s363 + $0x70] sm:$0xff] %vm529, %v815
      %1185 = vst.msk [vmem:[%s363 + $0x78] sm:$0xff] %vm529, %v817
      %1186 = vst.msk [vmem:[%s363 + $0x80] sm:$0xff] %vm529, %v819
      %1187 = vst.msk [vmem:[%s363 + $0x88] sm:$0xff] %vm529, %v821
      %1188 = vst.msk [vmem:[%s363 + $0x90] sm:$0xff] %vm529, %v823
      %1189 = vst.msk [vmem:[%s363 + $0x98] sm:$0xff] %vm529, %v825
      %1190 = vst.msk [vmem:[%s363 + $0xa0] sm:$0xff] %vm529, %v827
      %1191 = vst.msk [vmem:[%s363 + $0xa8] sm:$0xff] %vm529, %v829
      %1192 = vst.msk [vmem:[%s363 + $0xb0] sm:$0xff] %vm529, %v831
      %1193 = vst.msk [vmem:[%s363 + $0xb8] sm:$0xff] %vm529, %v833
      %1194 = vst.msk [vmem:[%s363 + $0xc0] sm:$0xff] %vm529, %v835
      %1195 = vst.msk [vmem:[%s363 + $0xc8] sm:$0xff] %vm529, %v837
      %1196 = vst.msk [vmem:[%s363 + $0xd0] sm:$0xff] %vm529, %v839
      %1197 = vst.msk [vmem:[%s363 + $0xd8] sm:$0xff] %vm529, %v841
      %1198 = vst.msk [vmem:[%s363 + $0xe0] sm:$0xff] %vm529, %v843
      %1199 = vst.msk [vmem:[%s363 + $0xe8] sm:$0xff] %vm529, %v845
      %1200 = vst.msk [vmem:[%s363 + $0xf0] sm:$0xff] %vm529, %v847
      %1201 = vst.msk [vmem:[%s363 + $0xf8] sm:$0xff] %vm529, %v849
      %1202 = vst.msk [vmem:[%s363 + $0x100] sm:$0xff] %vm529, %v851
      %1203 = vst.msk [vmem:[%s363 + $0x108] sm:$0xff] %vm529, %v853
      %1204 = vst.msk [vmem:[%s363 + $0x110] sm:$0xff] %vm529, %v855
      %1205 = vst.msk [vmem:[%s363 + $0x118] sm:$0xff] %vm529, %v857
      %1206 = vst.msk [vmem:[%s363 + $0x120] sm:$0xff] %vm529, %v859
      %1207 = vst.msk [vmem:[%s363 + $0x128] sm:$0xff] %vm529, %v861
      %1208 = vst.msk [vmem:[%s363 + $0x130] sm:$0xff] %vm529, %v863
      %1209 = vst.msk [vmem:[%s363 + $0x138] sm:$0xff] %vm529, %v865
      %1210 = vst.msk [vmem:[%s363 + $0x140] sm:$0xff] %vm529, %v867
      %1211 = vst.msk [vmem:[%s363 + $0x148] sm:$0xff] %vm529, %v869
      %1212 = vst.msk [vmem:[%s363 + $0x150] sm:$0xff] %vm529, %v871
      %1213 = vst.msk [vmem:[%s363 + $0x158] sm:$0xff] %vm529, %v873
      %1214 = vst.msk [vmem:[%s363 + $0x160] sm:$0xff] %vm529, %v875
      %1215 = vst.msk [vmem:[%s363 + $0x168] sm:$0xff] %vm529, %v877
      %1216 = vst.msk [vmem:[%s363 + $0x170] sm:$0xff] %vm529, %v879
      %1217 = vst.msk [vmem:[%s363 + $0x178] sm:$0xff] %vm529, %v881
      %1218 = vst.msk [vmem:[%s363 + $0x180] sm:$0xff] %vm529, %v883
      %1219 = vst.msk [vmem:[%s363 + $0x188] sm:$0xff] %vm529, %v885
      %1220 = vst.msk [vmem:[%s363 + $0x190] sm:$0xff] %vm529, %v887
      %1221 = vst.msk [vmem:[%s363 + $0x198] sm:$0xff] %vm529, %v889
      %1222 = vst.msk [vmem:[%s363 + $0x1a0] sm:$0xff] %vm529, %v891
      %1223 = vst.msk [vmem:[%s363 + $0x1a8] sm:$0xff] %vm529, %v893
      %1224 = vst.msk [vmem:[%s363 + $0x1b0] sm:$0xff] %vm529, %v895
      %1225 = vst.msk [vmem:[%s363 + $0x1b8] sm:$0xff] %vm529, %v897
      %1226 = vst.msk [vmem:[%s363 + $0x1c0] sm:$0xff] %vm529, %v899
      %1227 = vst.msk [vmem:[%s363 + $0x1c8] sm:$0xff] %vm529, %v901
      %1228 = vst.msk [vmem:[%s363 + $0x1d0] sm:$0xff] %vm529, %v903
      %1229 = vst.msk [vmem:[%s363 + $0x1d8] sm:$0xff] %vm529, %v905
      %1230 = vst.msk [vmem:[%s363 + $0x1e0] sm:$0xff] %vm529, %v907
      %1231 = vst.msk [vmem:[%s363 + $0x1e8] sm:$0xff] %vm529, %v909
      %1232 = vst.msk [vmem:[%s363 + $0x1f0] sm:$0xff] %vm529, %v911
      %1233 = vst.msk [vmem:[%s363 + $0x1f8] sm:$0xff] %vm529, %v913
      %1234 = vst.msk [vmem:[%s363 + $0x200] sm:$0xff] %vm529, %v915
      %1235 = vst.msk [vmem:[%s363 + $0x208] sm:$0xff] %vm529, %v917
      %1236 = vst.msk [vmem:[%s363 + $0x210] sm:$0xff] %vm529, %v919
      %1237 = vst.msk [vmem:[%s363 + $0x218] sm:$0xff] %vm529, %v921
      %1238 = vst.msk [vmem:[%s363 + $0x220] sm:$0xff] %vm529, %v923
      %1239 = vst.msk [vmem:[%s363 + $0x228] sm:$0xff] %vm529, %v925
      %1240 = vst.msk [vmem:[%s363 + $0x230] sm:$0xff] %vm529, %v927
      %1241 = vst.msk [vmem:[%s363 + $0x238] sm:$0xff] %vm529, %v929
      %1242 = vst.msk [vmem:[%s363 + $0x240] sm:$0xff] %vm529, %v931
      %1243 = vst.msk [vmem:[%s363 + $0x248] sm:$0xff] %vm529, %v933
      %1244 = vst.msk [vmem:[%s363 + $0x250] sm:$0xff] %vm529, %v935
      %1245 = vst.msk [vmem:[%s363 + $0x258] sm:$0xff] %vm529, %v937
      %1246 = vst.msk [vmem:[%s363 + $0x260] sm:$0xff] %vm529, %v939
      %1247 = vst.msk [vmem:[%s363 + $0x268] sm:$0xff] %vm529, %v941
      %1248 = vst.msk [vmem:[%s363 + $0x270] sm:$0xff] %vm529, %v943
      %1249 = vst.msk [vmem:[%s363 + $0x278] sm:$0xff] %vm529, %v945
      %1250 = vst.msk [vmem:[%s363 + $0x280] sm:$0xff] %vm529, %v947
      %1251 = vst.msk [vmem:[%s363 + $0x288] sm:$0xff] %vm529, %v949
      %1252 = vst.msk [vmem:[%s363 + $0x290] sm:$0xff] %vm529, %v951
      %1253 = vst.msk [vmem:[%s363 + $0x298] sm:$0xff] %vm529, %v953
      %1254 = vst.msk [vmem:[%s363 + $0x2a0] sm:$0xff] %vm529, %v955
      %1255 = vst.msk [vmem:[%s363 + $0x2a8] sm:$0xff] %vm529, %v957
      %1256 = vst.msk [vmem:[%s363 + $0x2b0] sm:$0xff] %vm529, %v959
      %1257 = vst.msk [vmem:[%s363 + $0x2b8] sm:$0xff] %vm529, %v961
      %1258 = vst.msk [vmem:[%s363 + $0x2c0] sm:$0xff] %vm529, %v963
      %1259 = vst.msk [vmem:[%s363 + $0x2c8] sm:$0xff] %vm529, %v965
      %1260 = vst.msk [vmem:[%s363 + $0x2d0] sm:$0xff] %vm529, %v967
      %1261 = vst.msk [vmem:[%s363 + $0x2d8] sm:$0xff] %vm529, %v969
      %1262 = vst.msk [vmem:[%s363 + $0x2e0] sm:$0xff] %vm529, %v971
      %1263 = vst.msk [vmem:[%s363 + $0x2e8] sm:$0xff] %vm529, %v973
      %1264 = vst.msk [vmem:[%s363 + $0x2f0] sm:$0xff] %vm529, %v975
      %1265 = vst.msk [vmem:[%s363 + $0x2f8] sm:$0xff] %vm529, %v977
      %1266 = vst.msk [vmem:[%s363 + $0x300] sm:$0xff] %vm529, %v979
      %1267 = vst.msk [vmem:[%s363 + $0x308] sm:$0xff] %vm529, %v981
      %1268 = vst.msk [vmem:[%s363 + $0x310] sm:$0xff] %vm529, %v983
      %1269 = vst.msk [vmem:[%s363 + $0x318] sm:$0xff] %vm529, %v985
      %1270 = vst.msk [vmem:[%s363 + $0x320] sm:$0xff] %vm529, %v987
      %1271 = vst.msk [vmem:[%s363 + $0x328] sm:$0xff] %vm529, %v989
      %1272 = vst.msk [vmem:[%s363 + $0x330] sm:$0xff] %vm529, %v991
      %1273 = vst.msk [vmem:[%s363 + $0x338] sm:$0xff] %vm529, %v993
      %1274 = vst.msk [vmem:[%s363 + $0x340] sm:$0xff] %vm529, %v995
      %1275 = vst.msk [vmem:[%s363 + $0x348] sm:$0xff] %vm529, %v997
      %1276 = vst.msk [vmem:[%s363 + $0x350] sm:$0xff] %vm529, %v999
      %1277 = vst.msk [vmem:[%s363 + $0x358] sm:$0xff] %vm529, %v1001
      %1278 = vst.msk [vmem:[%s363 + $0x360] sm:$0xff] %vm529, %v1003
      %1279 = vst.msk [vmem:[%s363 + $0x368] sm:$0xff] %vm529, %v1005
      %1280 = vst.msk [vmem:[%s363 + $0x370] sm:$0xff] %vm529, %v1007
      %1281 = vst.msk [vmem:[%s363 + $0x378] sm:$0xff] %vm529, %v1009
      %1282 = vst.msk [vmem:[%s363 + $0x380] sm:$0xff] %vm529, %v1011
      %1283 = vst.msk [vmem:[%s363 + $0x388] sm:$0xff] %vm529, %v1013
      %1284 = vst.msk [vmem:[%s363 + $0x390] sm:$0xff] %vm529, %v1015
      %1285 = vst.msk [vmem:[%s363 + $0x398] sm:$0xff] %vm529, %v1017
      %1286 = vst.msk [vmem:[%s363 + $0x3a0] sm:$0xff] %vm529, %v1019
      %1287 = vst.msk [vmem:[%s363 + $0x3a8] sm:$0xff] %vm529, %v1021
      %1288 = vst.msk [vmem:[%s363 + $0x3b0] sm:$0xff] %vm529, %v1023
      %1289 = vst.msk [vmem:[%s363 + $0x3b8] sm:$0xff] %vm529, %v1025
      %1290 = vst.msk [vmem:[%s363 + $0x3c0] sm:$0xff] %vm529, %v1027
      %1291 = vst.msk [vmem:[%s363 + $0x3c8] sm:$0xff] %vm529, %v1029
      %1292 = vst.msk [vmem:[%s363 + $0x3d0] sm:$0xff] %vm529, %v1031
      %1293 = vst.msk [vmem:[%s363 + $0x3d8] sm:$0xff] %vm529, %v1033
      %1294 = vst.msk [vmem:[%s363 + $0x3e0] sm:$0xff] %vm529, %v1035
      %1295 = vst.msk [vmem:[%s363 + $0x3e8] sm:$0xff] %vm529, %v1037
      %1296 = vst.msk [vmem:[%s363 + $0x3f0] sm:$0xff] %vm529, %v1039
      %1297 = vst.msk [vmem:[%s363 + $0x3f8] sm:$0xff] %vm529, %v1041
      %1298 = vrot.lane.b32.xlu0 %v401, 122
      %v1299 = vpop.permute.xlu0 %1298
      %1300 = vrot.lane.b32.xlu0 %v402, 122
      %v1301 = vpop.permute.xlu0 %1300
      %1302 = vrot.lane.b32.xlu0 %v403, 122
      %v1303 = vpop.permute.xlu0 %1302
      %1304 = vrot.lane.b32.xlu0 %v404, 122
      %v1305 = vpop.permute.xlu0 %1304
      %1306 = vrot.lane.b32.xlu0 %v405, 122
      %v1307 = vpop.permute.xlu0 %1306
      %1308 = vrot.lane.b32.xlu0 %v406, 122
      %v1309 = vpop.permute.xlu0 %1308
      %1310 = vrot.lane.b32.xlu0 %v407, 122
      %v1311 = vpop.permute.xlu0 %1310
      %1312 = vrot.lane.b32.xlu0 %v408, 122
      %v1313 = vpop.permute.xlu0 %1312
      %1314 = vrot.lane.b32.xlu0 %v409, 122
      %v1315 = vpop.permute.xlu0 %1314
      %1316 = vrot.lane.b32.xlu0 %v410, 122
      %v1317 = vpop.permute.xlu0 %1316
      %1318 = vrot.lane.b32.xlu0 %v411, 122
      %v1319 = vpop.permute.xlu0 %1318
      %1320 = vrot.lane.b32.xlu0 %v412, 122
      %v1321 = vpop.permute.xlu0 %1320
      %1322 = vrot.lane.b32.xlu0 %v413, 122
      %v1323 = vpop.permute.xlu0 %1322
      %1324 = vrot.lane.b32.xlu0 %v414, 122
      %v1325 = vpop.permute.xlu0 %1324
      %1326 = vrot.lane.b32.xlu0 %v415, 122
      %v1327 = vpop.permute.xlu0 %1326
      %1328 = vrot.lane.b32.xlu0 %v416, 122
      %v1329 = vpop.permute.xlu0 %1328
      %1330 = vrot.lane.b32.xlu0 %v417, 122
      %v1331 = vpop.permute.xlu0 %1330
      %1332 = vrot.lane.b32.xlu0 %v418, 122
      %v1333 = vpop.permute.xlu0 %1332
      %1334 = vrot.lane.b32.xlu0 %v419, 122
      %v1335 = vpop.permute.xlu0 %1334
      %1336 = vrot.lane.b32.xlu0 %v420, 122
      %v1337 = vpop.permute.xlu0 %1336
      %1338 = vrot.lane.b32.xlu0 %v421, 122
      %v1339 = vpop.permute.xlu0 %1338
      %1340 = vrot.lane.b32.xlu0 %v422, 122
      %v1341 = vpop.permute.xlu0 %1340
      %1342 = vrot.lane.b32.xlu0 %v423, 122
      %v1343 = vpop.permute.xlu0 %1342
      %1344 = vrot.lane.b32.xlu0 %v424, 122
      %v1345 = vpop.permute.xlu0 %1344
      %1346 = vrot.lane.b32.xlu0 %v425, 122
      %v1347 = vpop.permute.xlu0 %1346
      %1348 = vrot.lane.b32.xlu0 %v426, 122
      %v1349 = vpop.permute.xlu0 %1348
      %1350 = vrot.lane.b32.xlu0 %v427, 122
      %v1351 = vpop.permute.xlu0 %1350
      %1352 = vrot.lane.b32.xlu0 %v428, 122
      %v1353 = vpop.permute.xlu0 %1352
      %1354 = vrot.lane.b32.xlu0 %v429, 122
      %v1355 = vpop.permute.xlu0 %1354
      %1356 = vrot.lane.b32.xlu0 %v430, 122
      %v1357 = vpop.permute.xlu0 %1356
      %1358 = vrot.lane.b32.xlu0 %v431, 122
      %v1359 = vpop.permute.xlu0 %1358
      %1360 = vrot.lane.b32.xlu0 %v432, 122
      %v1361 = vpop.permute.xlu0 %1360
      %1362 = vrot.lane.b32.xlu0 %v433, 122
      %v1363 = vpop.permute.xlu0 %1362
      %1364 = vrot.lane.b32.xlu0 %v434, 122
      %v1365 = vpop.permute.xlu0 %1364
      %1366 = vrot.lane.b32.xlu0 %v435, 122
      %v1367 = vpop.permute.xlu0 %1366
      %1368 = vrot.lane.b32.xlu0 %v436, 122
      %v1369 = vpop.permute.xlu0 %1368
      %1370 = vrot.lane.b32.xlu0 %v437, 122
      %v1371 = vpop.permute.xlu0 %1370
      %1372 = vrot.lane.b32.xlu0 %v438, 122
      %v1373 = vpop.permute.xlu0 %1372
      %1374 = vrot.lane.b32.xlu0 %v439, 122
      %v1375 = vpop.permute.xlu0 %1374
      %1376 = vrot.lane.b32.xlu0 %v440, 122
      %v1377 = vpop.permute.xlu0 %1376
      %1378 = vrot.lane.b32.xlu0 %v441, 122
      %v1379 = vpop.permute.xlu0 %1378
      %1380 = vrot.lane.b32.xlu0 %v442, 122
      %v1381 = vpop.permute.xlu0 %1380
      %1382 = vrot.lane.b32.xlu0 %v443, 122
      %v1383 = vpop.permute.xlu0 %1382
      %1384 = vrot.lane.b32.xlu0 %v444, 122
      %v1385 = vpop.permute.xlu0 %1384
      %1386 = vrot.lane.b32.xlu0 %v445, 122
      %v1387 = vpop.permute.xlu0 %1386
      %1388 = vrot.lane.b32.xlu0 %v446, 122
      %v1389 = vpop.permute.xlu0 %1388
      %1390 = vrot.lane.b32.xlu0 %v447, 122
      %v1391 = vpop.permute.xlu0 %1390
      %1392 = vrot.lane.b32.xlu0 %v448, 122
      %v1393 = vpop.permute.xlu0 %1392
      %1394 = vrot.lane.b32.xlu0 %v449, 122
      %v1395 = vpop.permute.xlu0 %1394
      %1396 = vrot.lane.b32.xlu0 %v450, 122
      %v1397 = vpop.permute.xlu0 %1396
      %1398 = vrot.lane.b32.xlu0 %v451, 122
      %v1399 = vpop.permute.xlu0 %1398
      %1400 = vrot.lane.b32.xlu0 %v452, 122
      %v1401 = vpop.permute.xlu0 %1400
      %1402 = vrot.lane.b32.xlu0 %v453, 122
      %v1403 = vpop.permute.xlu0 %1402
      %1404 = vrot.lane.b32.xlu0 %v454, 122
      %v1405 = vpop.permute.xlu0 %1404
      %1406 = vrot.lane.b32.xlu0 %v455, 122
      %v1407 = vpop.permute.xlu0 %1406
      %1408 = vrot.lane.b32.xlu0 %v456, 122
      %v1409 = vpop.permute.xlu0 %1408
      %1410 = vrot.lane.b32.xlu0 %v457, 122
      %v1411 = vpop.permute.xlu0 %1410
      %1412 = vrot.lane.b32.xlu0 %v458, 122
      %v1413 = vpop.permute.xlu0 %1412
      %1414 = vrot.lane.b32.xlu0 %v459, 122
      %v1415 = vpop.permute.xlu0 %1414
      %1416 = vrot.lane.b32.xlu0 %v460, 122
      %v1417 = vpop.permute.xlu0 %1416
      %1418 = vrot.lane.b32.xlu0 %v461, 122
      %v1419 = vpop.permute.xlu0 %1418
      %1420 = vrot.lane.b32.xlu0 %v462, 122
      %v1421 = vpop.permute.xlu0 %1420
      %1422 = vrot.lane.b32.xlu0 %v463, 122
      %v1423 = vpop.permute.xlu0 %1422
      %1424 = vrot.lane.b32.xlu0 %v464, 122
      %v1425 = vpop.permute.xlu0 %1424
      %1426 = vrot.lane.b32.xlu0 %v465, 122
      %v1427 = vpop.permute.xlu0 %1426
      %1428 = vrot.lane.b32.xlu0 %v466, 122
      %v1429 = vpop.permute.xlu0 %1428
      %1430 = vrot.lane.b32.xlu0 %v467, 122
      %v1431 = vpop.permute.xlu0 %1430
      %1432 = vrot.lane.b32.xlu0 %v468, 122
      %v1433 = vpop.permute.xlu0 %1432
      %1434 = vrot.lane.b32.xlu0 %v469, 122
      %v1435 = vpop.permute.xlu0 %1434
      %1436 = vrot.lane.b32.xlu0 %v470, 122
      %v1437 = vpop.permute.xlu0 %1436
      %1438 = vrot.lane.b32.xlu0 %v471, 122
      %v1439 = vpop.permute.xlu0 %1438
      %1440 = vrot.lane.b32.xlu0 %v472, 122
      %v1441 = vpop.permute.xlu0 %1440
      %1442 = vrot.lane.b32.xlu0 %v473, 122
      %v1443 = vpop.permute.xlu0 %1442
      %1444 = vrot.lane.b32.xlu0 %v474, 122
      %v1445 = vpop.permute.xlu0 %1444
      %1446 = vrot.lane.b32.xlu0 %v475, 122
      %v1447 = vpop.permute.xlu0 %1446
      %1448 = vrot.lane.b32.xlu0 %v476, 122
      %v1449 = vpop.permute.xlu0 %1448
      %1450 = vrot.lane.b32.xlu0 %v477, 122
      %v1451 = vpop.permute.xlu0 %1450
      %1452 = vrot.lane.b32.xlu0 %v478, 122
      %v1453 = vpop.permute.xlu0 %1452
      %1454 = vrot.lane.b32.xlu0 %v479, 122
      %v1455 = vpop.permute.xlu0 %1454
      %1456 = vrot.lane.b32.xlu0 %v480, 122
      %v1457 = vpop.permute.xlu0 %1456
      %1458 = vrot.lane.b32.xlu0 %v481, 122
      %v1459 = vpop.permute.xlu0 %1458
      %1460 = vrot.lane.b32.xlu0 %v482, 122
      %v1461 = vpop.permute.xlu0 %1460
      %1462 = vrot.lane.b32.xlu0 %v483, 122
      %v1463 = vpop.permute.xlu0 %1462
      %1464 = vrot.lane.b32.xlu0 %v484, 122
      %v1465 = vpop.permute.xlu0 %1464
      %1466 = vrot.lane.b32.xlu0 %v485, 122
      %v1467 = vpop.permute.xlu0 %1466
      %1468 = vrot.lane.b32.xlu0 %v486, 122
      %v1469 = vpop.permute.xlu0 %1468
      %1470 = vrot.lane.b32.xlu0 %v487, 122
      %v1471 = vpop.permute.xlu0 %1470
      %1472 = vrot.lane.b32.xlu0 %v488, 122
      %v1473 = vpop.permute.xlu0 %1472
      %1474 = vrot.lane.b32.xlu0 %v489, 122
      %v1475 = vpop.permute.xlu0 %1474
      %1476 = vrot.lane.b32.xlu0 %v490, 122
      %v1477 = vpop.permute.xlu0 %1476
      %1478 = vrot.lane.b32.xlu0 %v491, 122
      %v1479 = vpop.permute.xlu0 %1478
      %1480 = vrot.lane.b32.xlu0 %v492, 122
      %v1481 = vpop.permute.xlu0 %1480
      %1482 = vrot.lane.b32.xlu0 %v493, 122
      %v1483 = vpop.permute.xlu0 %1482
      %1484 = vrot.lane.b32.xlu0 %v494, 122
      %v1485 = vpop.permute.xlu0 %1484
      %1486 = vrot.lane.b32.xlu0 %v495, 122
      %v1487 = vpop.permute.xlu0 %1486
      %1488 = vrot.lane.b32.xlu0 %v496, 122
      %v1489 = vpop.permute.xlu0 %1488
      %1490 = vrot.lane.b32.xlu0 %v497, 122
      %v1491 = vpop.permute.xlu0 %1490
      %1492 = vrot.lane.b32.xlu0 %v498, 122
      %v1493 = vpop.permute.xlu0 %1492
      %1494 = vrot.lane.b32.xlu0 %v499, 122
      %v1495 = vpop.permute.xlu0 %1494
      %1496 = vrot.lane.b32.xlu0 %v500, 122
      %v1497 = vpop.permute.xlu0 %1496
      %1498 = vrot.lane.b32.xlu0 %v501, 122
      %v1499 = vpop.permute.xlu0 %1498
      %1500 = vrot.lane.b32.xlu0 %v502, 122
      %v1501 = vpop.permute.xlu0 %1500
      %1502 = vrot.lane.b32.xlu0 %v503, 122
      %v1503 = vpop.permute.xlu0 %1502
      %1504 = vrot.lane.b32.xlu0 %v504, 122
      %v1505 = vpop.permute.xlu0 %1504
      %1506 = vrot.lane.b32.xlu0 %v505, 122
      %v1507 = vpop.permute.xlu0 %1506
      %1508 = vrot.lane.b32.xlu0 %v506, 122
      %v1509 = vpop.permute.xlu0 %1508
      %1510 = vrot.lane.b32.xlu0 %v507, 122
      %v1511 = vpop.permute.xlu0 %1510
      %1512 = vrot.lane.b32.xlu0 %v508, 122
      %v1513 = vpop.permute.xlu0 %1512
      %1514 = vrot.lane.b32.xlu0 %v509, 122
      %v1515 = vpop.permute.xlu0 %1514
      %1516 = vrot.lane.b32.xlu0 %v510, 122
      %v1517 = vpop.permute.xlu0 %1516
      %1518 = vrot.lane.b32.xlu0 %v511, 122
      %v1519 = vpop.permute.xlu0 %1518
      %1520 = vrot.lane.b32.xlu0 %v512, 122
      %v1521 = vpop.permute.xlu0 %1520
      %1522 = vrot.lane.b32.xlu0 %v513, 122
      %v1523 = vpop.permute.xlu0 %1522
      %1524 = vrot.lane.b32.xlu0 %v514, 122
      %v1525 = vpop.permute.xlu0 %1524
      %1526 = vrot.lane.b32.xlu0 %v515, 122
      %v1527 = vpop.permute.xlu0 %1526
      %1528 = vrot.lane.b32.xlu0 %v516, 122
      %v1529 = vpop.permute.xlu0 %1528
      %1530 = vrot.lane.b32.xlu0 %v517, 122
      %v1531 = vpop.permute.xlu0 %1530
      %1532 = vrot.lane.b32.xlu0 %v518, 122
      %v1533 = vpop.permute.xlu0 %1532
      %1534 = vrot.lane.b32.xlu0 %v519, 122
      %v1535 = vpop.permute.xlu0 %1534
      %1536 = vrot.lane.b32.xlu0 %v520, 122
      %v1537 = vpop.permute.xlu0 %1536
      %1538 = vrot.lane.b32.xlu0 %v521, 122
      %v1539 = vpop.permute.xlu0 %1538
      %1540 = vrot.lane.b32.xlu0 %v522, 122
      %v1541 = vpop.permute.xlu0 %1540
      %1542 = vrot.lane.b32.xlu0 %v523, 122
      %v1543 = vpop.permute.xlu0 %1542
      %1544 = vrot.lane.b32.xlu0 %v524, 122
      %v1545 = vpop.permute.xlu0 %1544
      %1546 = vrot.lane.b32.xlu0 %v525, 122
      %v1547 = vpop.permute.xlu0 %1546
      %1548 = vrot.lane.b32.xlu0 %v526, 122
      %v1549 = vpop.permute.xlu0 %1548
      %1550 = vrot.lane.b32.xlu0 %v527, 122
      %v1551 = vpop.permute.xlu0 %1550
      %1552 = vrot.lane.b32.xlu0 %v528, 122
      %v1553 = vpop.permute.xlu0 %1552
      %1682 = vst.msk [vmem:[%s369] sm:$0xff] %vm529, %v1299
      %1683 = vst.msk [vmem:[%s369 + $0x8] sm:$0xff] %vm529, %v1301
      %1684 = vst.msk [vmem:[%s369 + $0x10] sm:$0xff] %vm529, %v1303
      %1685 = vst.msk [vmem:[%s369 + $0x18] sm:$0xff] %vm529, %v1305
      %1686 = vst.msk [vmem:[%s369 + $0x20] sm:$0xff] %vm529, %v1307
      %1687 = vst.msk [vmem:[%s369 + $0x28] sm:$0xff] %vm529, %v1309
      %1688 = vst.msk [vmem:[%s369 + $0x30] sm:$0xff] %vm529, %v1311
      %1689 = vst.msk [vmem:[%s369 + $0x38] sm:$0xff] %vm529, %v1313
      %1690 = vst.msk [vmem:[%s369 + $0x40] sm:$0xff] %vm529, %v1315
      %1691 = vst.msk [vmem:[%s369 + $0x48] sm:$0xff] %vm529, %v1317
      %1692 = vst.msk [vmem:[%s369 + $0x50] sm:$0xff] %vm529, %v1319
      %1693 = vst.msk [vmem:[%s369 + $0x58] sm:$0xff] %vm529, %v1321
      %1694 = vst.msk [vmem:[%s369 + $0x60] sm:$0xff] %vm529, %v1323
      %1695 = vst.msk [vmem:[%s369 + $0x68] sm:$0xff] %vm529, %v1325
      %1696 = vst.msk [vmem:[%s369 + $0x70] sm:$0xff] %vm529, %v1327
      %1697 = vst.msk [vmem:[%s369 + $0x78] sm:$0xff] %vm529, %v1329
      %1698 = vst.msk [vmem:[%s369 + $0x80] sm:$0xff] %vm529, %v1331
      %1699 = vst.msk [vmem:[%s369 + $0x88] sm:$0xff] %vm529, %v1333
      %1700 = vst.msk [vmem:[%s369 + $0x90] sm:$0xff] %vm529, %v1335
      %1701 = vst.msk [vmem:[%s369 + $0x98] sm:$0xff] %vm529, %v1337
      %1702 = vst.msk [vmem:[%s369 + $0xa0] sm:$0xff] %vm529, %v1339
      %1703 = vst.msk [vmem:[%s369 + $0xa8] sm:$0xff] %vm529, %v1341
      %1704 = vst.msk [vmem:[%s369 + $0xb0] sm:$0xff] %vm529, %v1343
      %1705 = vst.msk [vmem:[%s369 + $0xb8] sm:$0xff] %vm529, %v1345
      %1706 = vst.msk [vmem:[%s369 + $0xc0] sm:$0xff] %vm529, %v1347
      %1707 = vst.msk [vmem:[%s369 + $0xc8] sm:$0xff] %vm529, %v1349
      %1708 = vst.msk [vmem:[%s369 + $0xd0] sm:$0xff] %vm529, %v1351
      %1709 = vst.msk [vmem:[%s369 + $0xd8] sm:$0xff] %vm529, %v1353
      %1710 = vst.msk [vmem:[%s369 + $0xe0] sm:$0xff] %vm529, %v1355
      %1711 = vst.msk [vmem:[%s369 + $0xe8] sm:$0xff] %vm529, %v1357
      %1712 = vst.msk [vmem:[%s369 + $0xf0] sm:$0xff] %vm529, %v1359
      %1713 = vst.msk [vmem:[%s369 + $0xf8] sm:$0xff] %vm529, %v1361
      %1714 = vst.msk [vmem:[%s369 + $0x100] sm:$0xff] %vm529, %v1363
      %1715 = vst.msk [vmem:[%s369 + $0x108] sm:$0xff] %vm529, %v1365
      %1716 = vst.msk [vmem:[%s369 + $0x110] sm:$0xff] %vm529, %v1367
      %1717 = vst.msk [vmem:[%s369 + $0x118] sm:$0xff] %vm529, %v1369
      %1718 = vst.msk [vmem:[%s369 + $0x120] sm:$0xff] %vm529, %v1371
      %1719 = vst.msk [vmem:[%s369 + $0x128] sm:$0xff] %vm529, %v1373
      %1720 = vst.msk [vmem:[%s369 + $0x130] sm:$0xff] %vm529, %v1375
      %1721 = vst.msk [vmem:[%s369 + $0x138] sm:$0xff] %vm529, %v1377
      %1722 = vst.msk [vmem:[%s369 + $0x140] sm:$0xff] %vm529, %v1379
      %1723 = vst.msk [vmem:[%s369 + $0x148] sm:$0xff] %vm529, %v1381
      %1724 = vst.msk [vmem:[%s369 + $0x150] sm:$0xff] %vm529, %v1383
      %1725 = vst.msk [vmem:[%s369 + $0x158] sm:$0xff] %vm529, %v1385
      %1726 = vst.msk [vmem:[%s369 + $0x160] sm:$0xff] %vm529, %v1387
      %1727 = vst.msk [vmem:[%s369 + $0x168] sm:$0xff] %vm529, %v1389
      %1728 = vst.msk [vmem:[%s369 + $0x170] sm:$0xff] %vm529, %v1391
      %1729 = vst.msk [vmem:[%s369 + $0x178] sm:$0xff] %vm529, %v1393
      %1730 = vst.msk [vmem:[%s369 + $0x180] sm:$0xff] %vm529, %v1395
      %1731 = vst.msk [vmem:[%s369 + $0x188] sm:$0xff] %vm529, %v1397
      %1732 = vst.msk [vmem:[%s369 + $0x190] sm:$0xff] %vm529, %v1399
      %1733 = vst.msk [vmem:[%s369 + $0x198] sm:$0xff] %vm529, %v1401
      %1734 = vst.msk [vmem:[%s369 + $0x1a0] sm:$0xff] %vm529, %v1403
      %1735 = vst.msk [vmem:[%s369 + $0x1a8] sm:$0xff] %vm529, %v1405
      %1736 = vst.msk [vmem:[%s369 + $0x1b0] sm:$0xff] %vm529, %v1407
      %1737 = vst.msk [vmem:[%s369 + $0x1b8] sm:$0xff] %vm529, %v1409
      %1738 = vst.msk [vmem:[%s369 + $0x1c0] sm:$0xff] %vm529, %v1411
      %1739 = vst.msk [vmem:[%s369 + $0x1c8] sm:$0xff] %vm529, %v1413
      %1740 = vst.msk [vmem:[%s369 + $0x1d0] sm:$0xff] %vm529, %v1415
      %1741 = vst.msk [vmem:[%s369 + $0x1d8] sm:$0xff] %vm529, %v1417
      %1742 = vst.msk [vmem:[%s369 + $0x1e0] sm:$0xff] %vm529, %v1419
      %1743 = vst.msk [vmem:[%s369 + $0x1e8] sm:$0xff] %vm529, %v1421
      %1744 = vst.msk [vmem:[%s369 + $0x1f0] sm:$0xff] %vm529, %v1423
      %1745 = vst.msk [vmem:[%s369 + $0x1f8] sm:$0xff] %vm529, %v1425
      %1746 = vst.msk [vmem:[%s369 + $0x200] sm:$0xff] %vm529, %v1427
      %1747 = vst.msk [vmem:[%s369 + $0x208] sm:$0xff] %vm529, %v1429
      %1748 = vst.msk [vmem:[%s369 + $0x210] sm:$0xff] %vm529, %v1431
      %1749 = vst.msk [vmem:[%s369 + $0x218] sm:$0xff] %vm529, %v1433
      %1750 = vst.msk [vmem:[%s369 + $0x220] sm:$0xff] %vm529, %v1435
      %1751 = vst.msk [vmem:[%s369 + $0x228] sm:$0xff] %vm529, %v1437
      %1752 = vst.msk [vmem:[%s369 + $0x230] sm:$0xff] %vm529, %v1439
      %1753 = vst.msk [vmem:[%s369 + $0x238] sm:$0xff] %vm529, %v1441
      %1754 = vst.msk [vmem:[%s369 + $0x240] sm:$0xff] %vm529, %v1443
      %1755 = vst.msk [vmem:[%s369 + $0x248] sm:$0xff] %vm529, %v1445
      %1756 = vst.msk [vmem:[%s369 + $0x250] sm:$0xff] %vm529, %v1447
      %1757 = vst.msk [vmem:[%s369 + $0x258] sm:$0xff] %vm529, %v1449
      %1758 = vst.msk [vmem:[%s369 + $0x260] sm:$0xff] %vm529, %v1451
      %1759 = vst.msk [vmem:[%s369 + $0x268] sm:$0xff] %vm529, %v1453
      %1760 = vst.msk [vmem:[%s369 + $0x270] sm:$0xff] %vm529, %v1455
      %1761 = vst.msk [vmem:[%s369 + $0x278] sm:$0xff] %vm529, %v1457
      %1762 = vst.msk [vmem:[%s369 + $0x280] sm:$0xff] %vm529, %v1459
      %1763 = vst.msk [vmem:[%s369 + $0x288] sm:$0xff] %vm529, %v1461
      %1764 = vst.msk [vmem:[%s369 + $0x290] sm:$0xff] %vm529, %v1463
      %1765 = vst.msk [vmem:[%s369 + $0x298] sm:$0xff] %vm529, %v1465
      %1766 = vst.msk [vmem:[%s369 + $0x2a0] sm:$0xff] %vm529, %v1467
      %1767 = vst.msk [vmem:[%s369 + $0x2a8] sm:$0xff] %vm529, %v1469
      %1768 = vst.msk [vmem:[%s369 + $0x2b0] sm:$0xff] %vm529, %v1471
      %1769 = vst.msk [vmem:[%s369 + $0x2b8] sm:$0xff] %vm529, %v1473
      %1770 = vst.msk [vmem:[%s369 + $0x2c0] sm:$0xff] %vm529, %v1475
      %1771 = vst.msk [vmem:[%s369 + $0x2c8] sm:$0xff] %vm529, %v1477
      %1772 = vst.msk [vmem:[%s369 + $0x2d0] sm:$0xff] %vm529, %v1479
      %1773 = vst.msk [vmem:[%s369 + $0x2d8] sm:$0xff] %vm529, %v1481
      %1774 = vst.msk [vmem:[%s369 + $0x2e0] sm:$0xff] %vm529, %v1483
      %1775 = vst.msk [vmem:[%s369 + $0x2e8] sm:$0xff] %vm529, %v1485
      %1776 = vst.msk [vmem:[%s369 + $0x2f0] sm:$0xff] %vm529, %v1487
      %1777 = vst.msk [vmem:[%s369 + $0x2f8] sm:$0xff] %vm529, %v1489
      %1778 = vst.msk [vmem:[%s369 + $0x300] sm:$0xff] %vm529, %v1491
      %1779 = vst.msk [vmem:[%s369 + $0x308] sm:$0xff] %vm529, %v1493
      %1780 = vst.msk [vmem:[%s369 + $0x310] sm:$0xff] %vm529, %v1495
      %1781 = vst.msk [vmem:[%s369 + $0x318] sm:$0xff] %vm529, %v1497
      %1782 = vst.msk [vmem:[%s369 + $0x320] sm:$0xff] %vm529, %v1499
      %1783 = vst.msk [vmem:[%s369 + $0x328] sm:$0xff] %vm529, %v1501
      %1784 = vst.msk [vmem:[%s369 + $0x330] sm:$0xff] %vm529, %v1503
      %1785 = vst.msk [vmem:[%s369 + $0x338] sm:$0xff] %vm529, %v1505
      %1786 = vst.msk [vmem:[%s369 + $0x340] sm:$0xff] %vm529, %v1507
      %1787 = vst.msk [vmem:[%s369 + $0x348] sm:$0xff] %vm529, %v1509
      %1788 = vst.msk [vmem:[%s369 + $0x350] sm:$0xff] %vm529, %v1511
      %1789 = vst.msk [vmem:[%s369 + $0x358] sm:$0xff] %vm529, %v1513
      %1790 = vst.msk [vmem:[%s369 + $0x360] sm:$0xff] %vm529, %v1515
      %1791 = vst.msk [vmem:[%s369 + $0x368] sm:$0xff] %vm529, %v1517
      %1792 = vst.msk [vmem:[%s369 + $0x370] sm:$0xff] %vm529, %v1519
      %1793 = vst.msk [vmem:[%s369 + $0x378] sm:$0xff] %vm529, %v1521
      %1794 = vst.msk [vmem:[%s369 + $0x380] sm:$0xff] %vm529, %v1523
      %1795 = vst.msk [vmem:[%s369 + $0x388] sm:$0xff] %vm529, %v1525
      %1796 = vst.msk [vmem:[%s369 + $0x390] sm:$0xff] %vm529, %v1527
      %1797 = vst.msk [vmem:[%s369 + $0x398] sm:$0xff] %vm529, %v1529
      %1798 = vst.msk [vmem:[%s369 + $0x3a0] sm:$0xff] %vm529, %v1531
      %1799 = vst.msk [vmem:[%s369 + $0x3a8] sm:$0xff] %vm529, %v1533
      %1800 = vst.msk [vmem:[%s369 + $0x3b0] sm:$0xff] %vm529, %v1535
      %1801 = vst.msk [vmem:[%s369 + $0x3b8] sm:$0xff] %vm529, %v1537
      %1802 = vst.msk [vmem:[%s369 + $0x3c0] sm:$0xff] %vm529, %v1539
      %1803 = vst.msk [vmem:[%s369 + $0x3c8] sm:$0xff] %vm529, %v1541
      %1804 = vst.msk [vmem:[%s369 + $0x3d0] sm:$0xff] %vm529, %v1543
      %1805 = vst.msk [vmem:[%s369 + $0x3d8] sm:$0xff] %vm529, %v1545
      %1806 = vst.msk [vmem:[%s369 + $0x3e0] sm:$0xff] %vm529, %v1547
      %1807 = vst.msk [vmem:[%s369 + $0x3e8] sm:$0xff] %vm529, %v1549
      %1808 = vst.msk [vmem:[%s369 + $0x3f0] sm:$0xff] %vm529, %v1551
      %1809 = vst.msk [vmem:[%s369 + $0x3f8] sm:$0xff] %vm529, %v1553
      %1810 = vrot.lane.b32.xlu0 %v401, 119
      %v1811 = vpop.permute.xlu0 %1810
      %1812 = vrot.lane.b32.xlu0 %v402, 119
      %v1813 = vpop.permute.xlu0 %1812
      %1814 = vrot.lane.b32.xlu0 %v403, 119
      %v1815 = vpop.permute.xlu0 %1814
      %1816 = vrot.lane.b32.xlu0 %v404, 119
      %v1817 = vpop.permute.xlu0 %1816
      %1818 = vrot.lane.b32.xlu0 %v405, 119
      %v1819 = vpop.permute.xlu0 %1818
      %1820 = vrot.lane.b32.xlu0 %v406, 119
      %v1821 = vpop.permute.xlu0 %1820
      %1822 = vrot.lane.b32.xlu0 %v407, 119
      %v1823 = vpop.permute.xlu0 %1822
      %1824 = vrot.lane.b32.xlu0 %v408, 119
      %v1825 = vpop.permute.xlu0 %1824
      %1826 = vrot.lane.b32.xlu0 %v409, 119
      %v1827 = vpop.permute.xlu0 %1826
      %1828 = vrot.lane.b32.xlu0 %v410, 119
      %v1829 = vpop.permute.xlu0 %1828
      %1830 = vrot.lane.b32.xlu0 %v411, 119
      %v1831 = vpop.permute.xlu0 %1830
      %1832 = vrot.lane.b32.xlu0 %v412, 119
      %v1833 = vpop.permute.xlu0 %1832
      %1834 = vrot.lane.b32.xlu0 %v413, 119
      %v1835 = vpop.permute.xlu0 %1834
      %1836 = vrot.lane.b32.xlu0 %v414, 119
      %v1837 = vpop.permute.xlu0 %1836
      %1838 = vrot.lane.b32.xlu0 %v415, 119
      %v1839 = vpop.permute.xlu0 %1838
      %1840 = vrot.lane.b32.xlu0 %v416, 119
      %v1841 = vpop.permute.xlu0 %1840
      %1842 = vrot.lane.b32.xlu0 %v417, 119
      %v1843 = vpop.permute.xlu0 %1842
      %1844 = vrot.lane.b32.xlu0 %v418, 119
      %v1845 = vpop.permute.xlu0 %1844
      %1846 = vrot.lane.b32.xlu0 %v419, 119
      %v1847 = vpop.permute.xlu0 %1846
      %1848 = vrot.lane.b32.xlu0 %v420, 119
      %v1849 = vpop.permute.xlu0 %1848
      %1850 = vrot.lane.b32.xlu0 %v421, 119
      %v1851 = vpop.permute.xlu0 %1850
      %1852 = vrot.lane.b32.xlu0 %v422, 119
      %v1853 = vpop.permute.xlu0 %1852
      %1854 = vrot.lane.b32.xlu0 %v423, 119
      %v1855 = vpop.permute.xlu0 %1854
      %1856 = vrot.lane.b32.xlu0 %v424, 119
      %v1857 = vpop.permute.xlu0 %1856
      %1858 = vrot.lane.b32.xlu0 %v425, 119
      %v1859 = vpop.permute.xlu0 %1858
      %1860 = vrot.lane.b32.xlu0 %v426, 119
      %v1861 = vpop.permute.xlu0 %1860
      %1862 = vrot.lane.b32.xlu0 %v427, 119
      %v1863 = vpop.permute.xlu0 %1862
      %1864 = vrot.lane.b32.xlu0 %v428, 119
      %v1865 = vpop.permute.xlu0 %1864
      %1866 = vrot.lane.b32.xlu0 %v429, 119
      %v1867 = vpop.permute.xlu0 %1866
      %1868 = vrot.lane.b32.xlu0 %v430, 119
      %v1869 = vpop.permute.xlu0 %1868
      %1870 = vrot.lane.b32.xlu0 %v431, 119
      %v1871 = vpop.permute.xlu0 %1870
      %1872 = vrot.lane.b32.xlu0 %v432, 119
      %v1873 = vpop.permute.xlu0 %1872
      %1874 = vrot.lane.b32.xlu0 %v433, 119
      %v1875 = vpop.permute.xlu0 %1874
      %1876 = vrot.lane.b32.xlu0 %v434, 119
      %v1877 = vpop.permute.xlu0 %1876
      %1878 = vrot.lane.b32.xlu0 %v435, 119
      %v1879 = vpop.permute.xlu0 %1878
      %1880 = vrot.lane.b32.xlu0 %v436, 119
      %v1881 = vpop.permute.xlu0 %1880
      %1882 = vrot.lane.b32.xlu0 %v437, 119
      %v1883 = vpop.permute.xlu0 %1882
      %1884 = vrot.lane.b32.xlu0 %v438, 119
      %v1885 = vpop.permute.xlu0 %1884
      %1886 = vrot.lane.b32.xlu0 %v439, 119
      %v1887 = vpop.permute.xlu0 %1886
      %1888 = vrot.lane.b32.xlu0 %v440, 119
      %v1889 = vpop.permute.xlu0 %1888
      %1890 = vrot.lane.b32.xlu0 %v441, 119
      %v1891 = vpop.permute.xlu0 %1890
      %1892 = vrot.lane.b32.xlu0 %v442, 119
      %v1893 = vpop.permute.xlu0 %1892
      %1894 = vrot.lane.b32.xlu0 %v443, 119
      %v1895 = vpop.permute.xlu0 %1894
      %1896 = vrot.lane.b32.xlu0 %v444, 119
      %v1897 = vpop.permute.xlu0 %1896
      %1898 = vrot.lane.b32.xlu0 %v445, 119
      %v1899 = vpop.permute.xlu0 %1898
      %1900 = vrot.lane.b32.xlu0 %v446, 119
      %v1901 = vpop.permute.xlu0 %1900
      %1902 = vrot.lane.b32.xlu0 %v447, 119
      %v1903 = vpop.permute.xlu0 %1902
      %1904 = vrot.lane.b32.xlu0 %v448, 119
      %v1905 = vpop.permute.xlu0 %1904
      %1906 = vrot.lane.b32.xlu0 %v449, 119
      %v1907 = vpop.permute.xlu0 %1906
      %1908 = vrot.lane.b32.xlu0 %v450, 119
      %v1909 = vpop.permute.xlu0 %1908
      %1910 = vrot.lane.b32.xlu0 %v451, 119
      %v1911 = vpop.permute.xlu0 %1910
      %1912 = vrot.lane.b32.xlu0 %v452, 119
      %v1913 = vpop.permute.xlu0 %1912
      %1914 = vrot.lane.b32.xlu0 %v453, 119
      %v1915 = vpop.permute.xlu0 %1914
      %1916 = vrot.lane.b32.xlu0 %v454, 119
      %v1917 = vpop.permute.xlu0 %1916
      %1918 = vrot.lane.b32.xlu0 %v455, 119
      %v1919 = vpop.permute.xlu0 %1918
      %1920 = vrot.lane.b32.xlu0 %v456, 119
      %v1921 = vpop.permute.xlu0 %1920
      %1922 = vrot.lane.b32.xlu0 %v457, 119
      %v1923 = vpop.permute.xlu0 %1922
      %1924 = vrot.lane.b32.xlu0 %v458, 119
      %v1925 = vpop.permute.xlu0 %1924
      %1926 = vrot.lane.b32.xlu0 %v459, 119
      %v1927 = vpop.permute.xlu0 %1926
      %1928 = vrot.lane.b32.xlu0 %v460, 119
      %v1929 = vpop.permute.xlu0 %1928
      %1930 = vrot.lane.b32.xlu0 %v461, 119
      %v1931 = vpop.permute.xlu0 %1930
      %1932 = vrot.lane.b32.xlu0 %v462, 119
      %v1933 = vpop.permute.xlu0 %1932
      %1934 = vrot.lane.b32.xlu0 %v463, 119
      %v1935 = vpop.permute.xlu0 %1934
      %1936 = vrot.lane.b32.xlu0 %v464, 119
      %v1937 = vpop.permute.xlu0 %1936
      %1938 = vrot.lane.b32.xlu0 %v465, 119
      %v1939 = vpop.permute.xlu0 %1938
      %1940 = vrot.lane.b32.xlu0 %v466, 119
      %v1941 = vpop.permute.xlu0 %1940
      %1942 = vrot.lane.b32.xlu0 %v467, 119
      %v1943 = vpop.permute.xlu0 %1942
      %1944 = vrot.lane.b32.xlu0 %v468, 119
      %v1945 = vpop.permute.xlu0 %1944
      %1946 = vrot.lane.b32.xlu0 %v469, 119
      %v1947 = vpop.permute.xlu0 %1946
      %1948 = vrot.lane.b32.xlu0 %v470, 119
      %v1949 = vpop.permute.xlu0 %1948
      %1950 = vrot.lane.b32.xlu0 %v471, 119
      %v1951 = vpop.permute.xlu0 %1950
      %1952 = vrot.lane.b32.xlu0 %v472, 119
      %v1953 = vpop.permute.xlu0 %1952
      %1954 = vrot.lane.b32.xlu0 %v473, 119
      %v1955 = vpop.permute.xlu0 %1954
      %1956 = vrot.lane.b32.xlu0 %v474, 119
      %v1957 = vpop.permute.xlu0 %1956
      %1958 = vrot.lane.b32.xlu0 %v475, 119
      %v1959 = vpop.permute.xlu0 %1958
      %1960 = vrot.lane.b32.xlu0 %v476, 119
      %v1961 = vpop.permute.xlu0 %1960
      %1962 = vrot.lane.b32.xlu0 %v477, 119
      %v1963 = vpop.permute.xlu0 %1962
      %1964 = vrot.lane.b32.xlu0 %v478, 119
      %v1965 = vpop.permute.xlu0 %1964
      %1966 = vrot.lane.b32.xlu0 %v479, 119
      %v1967 = vpop.permute.xlu0 %1966
      %1968 = vrot.lane.b32.xlu0 %v480, 119
      %v1969 = vpop.permute.xlu0 %1968
      %1970 = vrot.lane.b32.xlu0 %v481, 119
      %v1971 = vpop.permute.xlu0 %1970
      %1972 = vrot.lane.b32.xlu0 %v482, 119
      %v1973 = vpop.permute.xlu0 %1972
      %1974 = vrot.lane.b32.xlu0 %v483, 119
      %v1975 = vpop.permute.xlu0 %1974
      %1976 = vrot.lane.b32.xlu0 %v484, 119
      %v1977 = vpop.permute.xlu0 %1976
      %1978 = vrot.lane.b32.xlu0 %v485, 119
      %v1979 = vpop.permute.xlu0 %1978
      %1980 = vrot.lane.b32.xlu0 %v486, 119
      %v1981 = vpop.permute.xlu0 %1980
      %1982 = vrot.lane.b32.xlu0 %v487, 119
      %v1983 = vpop.permute.xlu0 %1982
      %1984 = vrot.lane.b32.xlu0 %v488, 119
      %v1985 = vpop.permute.xlu0 %1984
      %1986 = vrot.lane.b32.xlu0 %v489, 119
      %v1987 = vpop.permute.xlu0 %1986
      %1988 = vrot.lane.b32.xlu0 %v490, 119
      %v1989 = vpop.permute.xlu0 %1988
      %1990 = vrot.lane.b32.xlu0 %v491, 119
      %v1991 = vpop.permute.xlu0 %1990
      %1992 = vrot.lane.b32.xlu0 %v492, 119
      %v1993 = vpop.permute.xlu0 %1992
      %1994 = vrot.lane.b32.xlu0 %v493, 119
      %v1995 = vpop.permute.xlu0 %1994
      %1996 = vrot.lane.b32.xlu0 %v494, 119
      %v1997 = vpop.permute.xlu0 %1996
      %1998 = vrot.lane.b32.xlu0 %v495, 119
      %v1999 = vpop.permute.xlu0 %1998
      %2000 = vrot.lane.b32.xlu0 %v496, 119
      %v2001 = vpop.permute.xlu0 %2000
      %2002 = vrot.lane.b32.xlu0 %v497, 119
      %v2003 = vpop.permute.xlu0 %2002
      %2004 = vrot.lane.b32.xlu0 %v498, 119
      %v2005 = vpop.permute.xlu0 %2004
      %2006 = vrot.lane.b32.xlu0 %v499, 119
      %v2007 = vpop.permute.xlu0 %2006
      %2008 = vrot.lane.b32.xlu0 %v500, 119
      %v2009 = vpop.permute.xlu0 %2008
      %2010 = vrot.lane.b32.xlu0 %v501, 119
      %v2011 = vpop.permute.xlu0 %2010
      %2012 = vrot.lane.b32.xlu0 %v502, 119
      %v2013 = vpop.permute.xlu0 %2012
      %2014 = vrot.lane.b32.xlu0 %v503, 119
      %v2015 = vpop.permute.xlu0 %2014
      %2016 = vrot.lane.b32.xlu0 %v504, 119
      %v2017 = vpop.permute.xlu0 %2016
      %2018 = vrot.lane.b32.xlu0 %v505, 119
      %v2019 = vpop.permute.xlu0 %2018
      %2020 = vrot.lane.b32.xlu0 %v506, 119
      %v2021 = vpop.permute.xlu0 %2020
      %2022 = vrot.lane.b32.xlu0 %v507, 119
      %v2023 = vpop.permute.xlu0 %2022
      %2024 = vrot.lane.b32.xlu0 %v508, 119
      %v2025 = vpop.permute.xlu0 %2024
      %2026 = vrot.lane.b32.xlu0 %v509, 119
      %v2027 = vpop.permute.xlu0 %2026
      %2028 = vrot.lane.b32.xlu0 %v510, 119
      %v2029 = vpop.permute.xlu0 %2028
      %2030 = vrot.lane.b32.xlu0 %v511, 119
      %v2031 = vpop.permute.xlu0 %2030
      %2032 = vrot.lane.b32.xlu0 %v512, 119
      %v2033 = vpop.permute.xlu0 %2032
      %2034 = vrot.lane.b32.xlu0 %v513, 119
      %v2035 = vpop.permute.xlu0 %2034
      %2036 = vrot.lane.b32.xlu0 %v514, 119
      %v2037 = vpop.permute.xlu0 %2036
      %2038 = vrot.lane.b32.xlu0 %v515, 119
      %v2039 = vpop.permute.xlu0 %2038
      %2040 = vrot.lane.b32.xlu0 %v516, 119
      %v2041 = vpop.permute.xlu0 %2040
      %2042 = vrot.lane.b32.xlu0 %v517, 119
      %v2043 = vpop.permute.xlu0 %2042
      %2044 = vrot.lane.b32.xlu0 %v518, 119
      %v2045 = vpop.permute.xlu0 %2044
      %2046 = vrot.lane.b32.xlu0 %v519, 119
      %v2047 = vpop.permute.xlu0 %2046
      %2048 = vrot.lane.b32.xlu0 %v520, 119
      %v2049 = vpop.permute.xlu0 %2048
      %2050 = vrot.lane.b32.xlu0 %v521, 119
      %v2051 = vpop.permute.xlu0 %2050
      %2052 = vrot.lane.b32.xlu0 %v522, 119
      %v2053 = vpop.permute.xlu0 %2052
      %2054 = vrot.lane.b32.xlu0 %v523, 119
      %v2055 = vpop.permute.xlu0 %2054
      %2056 = vrot.lane.b32.xlu0 %v524, 119
      %v2057 = vpop.permute.xlu0 %2056
      %2058 = vrot.lane.b32.xlu0 %v525, 119
      %v2059 = vpop.permute.xlu0 %2058
      %2060 = vrot.lane.b32.xlu0 %v526, 119
      %v2061 = vpop.permute.xlu0 %2060
      %2062 = vrot.lane.b32.xlu0 %v527, 119
      %v2063 = vpop.permute.xlu0 %2062
      %2064 = vrot.lane.b32.xlu0 %v528, 119
      %v2065 = vpop.permute.xlu0 %2064
      %2194 = vst.msk [vmem:[%s375] sm:$0xff] %vm529, %v1811
      %2195 = vst.msk [vmem:[%s375 + $0x8] sm:$0xff] %vm529, %v1813
      %2196 = vst.msk [vmem:[%s375 + $0x10] sm:$0xff] %vm529, %v1815
      %2197 = vst.msk [vmem:[%s375 + $0x18] sm:$0xff] %vm529, %v1817
      %2198 = vst.msk [vmem:[%s375 + $0x20] sm:$0xff] %vm529, %v1819
      %2199 = vst.msk [vmem:[%s375 + $0x28] sm:$0xff] %vm529, %v1821
      %2200 = vst.msk [vmem:[%s375 + $0x30] sm:$0xff] %vm529, %v1823
      %2201 = vst.msk [vmem:[%s375 + $0x38] sm:$0xff] %vm529, %v1825
      %2202 = vst.msk [vmem:[%s375 + $0x40] sm:$0xff] %vm529, %v1827
      %2203 = vst.msk [vmem:[%s375 + $0x48] sm:$0xff] %vm529, %v1829
      %2204 = vst.msk [vmem:[%s375 + $0x50] sm:$0xff] %vm529, %v1831
      %2205 = vst.msk [vmem:[%s375 + $0x58] sm:$0xff] %vm529, %v1833
      %2206 = vst.msk [vmem:[%s375 + $0x60] sm:$0xff] %vm529, %v1835
      %2207 = vst.msk [vmem:[%s375 + $0x68] sm:$0xff] %vm529, %v1837
      %2208 = vst.msk [vmem:[%s375 + $0x70] sm:$0xff] %vm529, %v1839
      %2209 = vst.msk [vmem:[%s375 + $0x78] sm:$0xff] %vm529, %v1841
      %2210 = vst.msk [vmem:[%s375 + $0x80] sm:$0xff] %vm529, %v1843
      %2211 = vst.msk [vmem:[%s375 + $0x88] sm:$0xff] %vm529, %v1845
      %2212 = vst.msk [vmem:[%s375 + $0x90] sm:$0xff] %vm529, %v1847
      %2213 = vst.msk [vmem:[%s375 + $0x98] sm:$0xff] %vm529, %v1849
      %2214 = vst.msk [vmem:[%s375 + $0xa0] sm:$0xff] %vm529, %v1851
      %2215 = vst.msk [vmem:[%s375 + $0xa8] sm:$0xff] %vm529, %v1853
      %2216 = vst.msk [vmem:[%s375 + $0xb0] sm:$0xff] %vm529, %v1855
      %2217 = vst.msk [vmem:[%s375 + $0xb8] sm:$0xff] %vm529, %v1857
      %2218 = vst.msk [vmem:[%s375 + $0xc0] sm:$0xff] %vm529, %v1859
      %2219 = vst.msk [vmem:[%s375 + $0xc8] sm:$0xff] %vm529, %v1861
      %2220 = vst.msk [vmem:[%s375 + $0xd0] sm:$0xff] %vm529, %v1863
      %2221 = vst.msk [vmem:[%s375 + $0xd8] sm:$0xff] %vm529, %v1865
      %2222 = vst.msk [vmem:[%s375 + $0xe0] sm:$0xff] %vm529, %v1867
      %2223 = vst.msk [vmem:[%s375 + $0xe8] sm:$0xff] %vm529, %v1869
      %2224 = vst.msk [vmem:[%s375 + $0xf0] sm:$0xff] %vm529, %v1871
      %2225 = vst.msk [vmem:[%s375 + $0xf8] sm:$0xff] %vm529, %v1873
      %2226 = vst.msk [vmem:[%s375 + $0x100] sm:$0xff] %vm529, %v1875
      %2227 = vst.msk [vmem:[%s375 + $0x108] sm:$0xff] %vm529, %v1877
      %2228 = vst.msk [vmem:[%s375 + $0x110] sm:$0xff] %vm529, %v1879
      %2229 = vst.msk [vmem:[%s375 + $0x118] sm:$0xff] %vm529, %v1881
      %2230 = vst.msk [vmem:[%s375 + $0x120] sm:$0xff] %vm529, %v1883
      %2231 = vst.msk [vmem:[%s375 + $0x128] sm:$0xff] %vm529, %v1885
      %2232 = vst.msk [vmem:[%s375 + $0x130] sm:$0xff] %vm529, %v1887
      %2233 = vst.msk [vmem:[%s375 + $0x138] sm:$0xff] %vm529, %v1889
      %2234 = vst.msk [vmem:[%s375 + $0x140] sm:$0xff] %vm529, %v1891
      %2235 = vst.msk [vmem:[%s375 + $0x148] sm:$0xff] %vm529, %v1893
      %2236 = vst.msk [vmem:[%s375 + $0x150] sm:$0xff] %vm529, %v1895
      %2237 = vst.msk [vmem:[%s375 + $0x158] sm:$0xff] %vm529, %v1897
      %2238 = vst.msk [vmem:[%s375 + $0x160] sm:$0xff] %vm529, %v1899
      %2239 = vst.msk [vmem:[%s375 + $0x168] sm:$0xff] %vm529, %v1901
      %2240 = vst.msk [vmem:[%s375 + $0x170] sm:$0xff] %vm529, %v1903
      %2241 = vst.msk [vmem:[%s375 + $0x178] sm:$0xff] %vm529, %v1905
      %2242 = vst.msk [vmem:[%s375 + $0x180] sm:$0xff] %vm529, %v1907
      %2243 = vst.msk [vmem:[%s375 + $0x188] sm:$0xff] %vm529, %v1909
      %2244 = vst.msk [vmem:[%s375 + $0x190] sm:$0xff] %vm529, %v1911
      %2245 = vst.msk [vmem:[%s375 + $0x198] sm:$0xff] %vm529, %v1913
      %2246 = vst.msk [vmem:[%s375 + $0x1a0] sm:$0xff] %vm529, %v1915
      %2247 = vst.msk [vmem:[%s375 + $0x1a8] sm:$0xff] %vm529, %v1917
      %2248 = vst.msk [vmem:[%s375 + $0x1b0] sm:$0xff] %vm529, %v1919
      %2249 = vst.msk [vmem:[%s375 + $0x1b8] sm:$0xff] %vm529, %v1921
      %2250 = vst.msk [vmem:[%s375 + $0x1c0] sm:$0xff] %vm529, %v1923
      %2251 = vst.msk [vmem:[%s375 + $0x1c8] sm:$0xff] %vm529, %v1925
      %2252 = vst.msk [vmem:[%s375 + $0x1d0] sm:$0xff] %vm529, %v1927
      %2253 = vst.msk [vmem:[%s375 + $0x1d8] sm:$0xff] %vm529, %v1929
      %2254 = vst.msk [vmem:[%s375 + $0x1e0] sm:$0xff] %vm529, %v1931
      %2255 = vst.msk [vmem:[%s375 + $0x1e8] sm:$0xff] %vm529, %v1933
      %2256 = vst.msk [vmem:[%s375 + $0x1f0] sm:$0xff] %vm529, %v1935
      %2257 = vst.msk [vmem:[%s375 + $0x1f8] sm:$0xff] %vm529, %v1937
      %2258 = vst.msk [vmem:[%s375 + $0x200] sm:$0xff] %vm529, %v1939
      %2259 = vst.msk [vmem:[%s375 + $0x208] sm:$0xff] %vm529, %v1941
      %2260 = vst.msk [vmem:[%s375 + $0x210] sm:$0xff] %vm529, %v1943
      %2261 = vst.msk [vmem:[%s375 + $0x218] sm:$0xff] %vm529, %v1945
      %2262 = vst.msk [vmem:[%s375 + $0x220] sm:$0xff] %vm529, %v1947
      %2263 = vst.msk [vmem:[%s375 + $0x228] sm:$0xff] %vm529, %v1949
      %2264 = vst.msk [vmem:[%s375 + $0x230] sm:$0xff] %vm529, %v1951
      %2265 = vst.msk [vmem:[%s375 + $0x238] sm:$0xff] %vm529, %v1953
      %2266 = vst.msk [vmem:[%s375 + $0x240] sm:$0xff] %vm529, %v1955
      %2267 = vst.msk [vmem:[%s375 + $0x248] sm:$0xff] %vm529, %v1957
      %2268 = vst.msk [vmem:[%s375 + $0x250] sm:$0xff] %vm529, %v1959
      %2269 = vst.msk [vmem:[%s375 + $0x258] sm:$0xff] %vm529, %v1961
      %2270 = vst.msk [vmem:[%s375 + $0x260] sm:$0xff] %vm529, %v1963
      %2271 = vst.msk [vmem:[%s375 + $0x268] sm:$0xff] %vm529, %v1965
      %2272 = vst.msk [vmem:[%s375 + $0x270] sm:$0xff] %vm529, %v1967
      %2273 = vst.msk [vmem:[%s375 + $0x278] sm:$0xff] %vm529, %v1969
      %2274 = vst.msk [vmem:[%s375 + $0x280] sm:$0xff] %vm529, %v1971
      %2275 = vst.msk [vmem:[%s375 + $0x288] sm:$0xff] %vm529, %v1973
      %2276 = vst.msk [vmem:[%s375 + $0x290] sm:$0xff] %vm529, %v1975
      %2277 = vst.msk [vmem:[%s375 + $0x298] sm:$0xff] %vm529, %v1977
      %2278 = vst.msk [vmem:[%s375 + $0x2a0] sm:$0xff] %vm529, %v1979
      %2279 = vst.msk [vmem:[%s375 + $0x2a8] sm:$0xff] %vm529, %v1981
      %2280 = vst.msk [vmem:[%s375 + $0x2b0] sm:$0xff] %vm529, %v1983
      %2281 = vst.msk [vmem:[%s375 + $0x2b8] sm:$0xff] %vm529, %v1985
      %2282 = vst.msk [vmem:[%s375 + $0x2c0] sm:$0xff] %vm529, %v1987
      %2283 = vst.msk [vmem:[%s375 + $0x2c8] sm:$0xff] %vm529, %v1989
      %2284 = vst.msk [vmem:[%s375 + $0x2d0] sm:$0xff] %vm529, %v1991
      %2285 = vst.msk [vmem:[%s375 + $0x2d8] sm:$0xff] %vm529, %v1993
      %2286 = vst.msk [vmem:[%s375 + $0x2e0] sm:$0xff] %vm529, %v1995
      %2287 = vst.msk [vmem:[%s375 + $0x2e8] sm:$0xff] %vm529, %v1997
      %2288 = vst.msk [vmem:[%s375 + $0x2f0] sm:$0xff] %vm529, %v1999
      %2289 = vst.msk [vmem:[%s375 + $0x2f8] sm:$0xff] %vm529, %v2001
      %2290 = vst.msk [vmem:[%s375 + $0x300] sm:$0xff] %vm529, %v2003
      %2291 = vst.msk [vmem:[%s375 + $0x308] sm:$0xff] %vm529, %v2005
      %2292 = vst.msk [vmem:[%s375 + $0x310] sm:$0xff] %vm529, %v2007
      %2293 = vst.msk [vmem:[%s375 + $0x318] sm:$0xff] %vm529, %v2009
      %2294 = vst.msk [vmem:[%s375 + $0x320] sm:$0xff] %vm529, %v2011
      %2295 = vst.msk [vmem:[%s375 + $0x328] sm:$0xff] %vm529, %v2013
      %2296 = vst.msk [vmem:[%s375 + $0x330] sm:$0xff] %vm529, %v2015
      %2297 = vst.msk [vmem:[%s375 + $0x338] sm:$0xff] %vm529, %v2017
      %2298 = vst.msk [vmem:[%s375 + $0x340] sm:$0xff] %vm529, %v2019
      %2299 = vst.msk [vmem:[%s375 + $0x348] sm:$0xff] %vm529, %v2021
      %2300 = vst.msk [vmem:[%s375 + $0x350] sm:$0xff] %vm529, %v2023
      %2301 = vst.msk [vmem:[%s375 + $0x358] sm:$0xff] %vm529, %v2025
      %2302 = vst.msk [vmem:[%s375 + $0x360] sm:$0xff] %vm529, %v2027
      %2303 = vst.msk [vmem:[%s375 + $0x368] sm:$0xff] %vm529, %v2029
      %2304 = vst.msk [vmem:[%s375 + $0x370] sm:$0xff] %vm529, %v2031
      %2305 = vst.msk [vmem:[%s375 + $0x378] sm:$0xff] %vm529, %v2033
      %2306 = vst.msk [vmem:[%s375 + $0x380] sm:$0xff] %vm529, %v2035
      %2307 = vst.msk [vmem:[%s375 + $0x388] sm:$0xff] %vm529, %v2037
      %2308 = vst.msk [vmem:[%s375 + $0x390] sm:$0xff] %vm529, %v2039
      %2309 = vst.msk [vmem:[%s375 + $0x398] sm:$0xff] %vm529, %v2041
      %2310 = vst.msk [vmem:[%s375 + $0x3a0] sm:$0xff] %vm529, %v2043
      %2311 = vst.msk [vmem:[%s375 + $0x3a8] sm:$0xff] %vm529, %v2045
      %2312 = vst.msk [vmem:[%s375 + $0x3b0] sm:$0xff] %vm529, %v2047
      %2313 = vst.msk [vmem:[%s375 + $0x3b8] sm:$0xff] %vm529, %v2049
      %2314 = vst.msk [vmem:[%s375 + $0x3c0] sm:$0xff] %vm529, %v2051
      %2315 = vst.msk [vmem:[%s375 + $0x3c8] sm:$0xff] %vm529, %v2053
      %2316 = vst.msk [vmem:[%s375 + $0x3d0] sm:$0xff] %vm529, %v2055
      %2317 = vst.msk [vmem:[%s375 + $0x3d8] sm:$0xff] %vm529, %v2057
      %2318 = vst.msk [vmem:[%s375 + $0x3e0] sm:$0xff] %vm529, %v2059
      %2319 = vst.msk [vmem:[%s375 + $0x3e8] sm:$0xff] %vm529, %v2061
      %2320 = vst.msk [vmem:[%s375 + $0x3f0] sm:$0xff] %vm529, %v2063
      %2321 = vst.msk [vmem:[%s375 + $0x3f8] sm:$0xff] %vm529, %v2065
      %2322 = vrot.lane.b32.xlu0 %v401, 116
      %v2323 = vpop.permute.xlu0 %2322
      %2324 = vrot.lane.b32.xlu0 %v402, 116
      %v2325 = vpop.permute.xlu0 %2324
      %2326 = vrot.lane.b32.xlu0 %v403, 116
      %v2327 = vpop.permute.xlu0 %2326
      %2328 = vrot.lane.b32.xlu0 %v404, 116
      %v2329 = vpop.permute.xlu0 %2328
      %2330 = vrot.lane.b32.xlu0 %v405, 116
      %v2331 = vpop.permute.xlu0 %2330
      %2332 = vrot.lane.b32.xlu0 %v406, 116
      %v2333 = vpop.permute.xlu0 %2332
      %2334 = vrot.lane.b32.xlu0 %v407, 116
      %v2335 = vpop.permute.xlu0 %2334
      %2336 = vrot.lane.b32.xlu0 %v408, 116
      %v2337 = vpop.permute.xlu0 %2336
      %2338 = vrot.lane.b32.xlu0 %v409, 116
      %v2339 = vpop.permute.xlu0 %2338
      %2340 = vrot.lane.b32.xlu0 %v410, 116
      %v2341 = vpop.permute.xlu0 %2340
      %2342 = vrot.lane.b32.xlu0 %v411, 116
      %v2343 = vpop.permute.xlu0 %2342
      %2344 = vrot.lane.b32.xlu0 %v412, 116
      %v2345 = vpop.permute.xlu0 %2344
      %2346 = vrot.lane.b32.xlu0 %v413, 116
      %v2347 = vpop.permute.xlu0 %2346
      %2348 = vrot.lane.b32.xlu0 %v414, 116
      %v2349 = vpop.permute.xlu0 %2348
      %2350 = vrot.lane.b32.xlu0 %v415, 116
      %v2351 = vpop.permute.xlu0 %2350
      %2352 = vrot.lane.b32.xlu0 %v416, 116
      %v2353 = vpop.permute.xlu0 %2352
      %2354 = vrot.lane.b32.xlu0 %v417, 116
      %v2355 = vpop.permute.xlu0 %2354
      %2356 = vrot.lane.b32.xlu0 %v418, 116
      %v2357 = vpop.permute.xlu0 %2356
      %2358 = vrot.lane.b32.xlu0 %v419, 116
      %v2359 = vpop.permute.xlu0 %2358
      %2360 = vrot.lane.b32.xlu0 %v420, 116
      %v2361 = vpop.permute.xlu0 %2360
      %2362 = vrot.lane.b32.xlu0 %v421, 116
      %v2363 = vpop.permute.xlu0 %2362
      %2364 = vrot.lane.b32.xlu0 %v422, 116
      %v2365 = vpop.permute.xlu0 %2364
      %2366 = vrot.lane.b32.xlu0 %v423, 116
      %v2367 = vpop.permute.xlu0 %2366
      %2368 = vrot.lane.b32.xlu0 %v424, 116
      %v2369 = vpop.permute.xlu0 %2368
      %2370 = vrot.lane.b32.xlu0 %v425, 116
      %v2371 = vpop.permute.xlu0 %2370
      %2372 = vrot.lane.b32.xlu0 %v426, 116
      %v2373 = vpop.permute.xlu0 %2372
      %2374 = vrot.lane.b32.xlu0 %v427, 116
      %v2375 = vpop.permute.xlu0 %2374
      %2376 = vrot.lane.b32.xlu0 %v428, 116
      %v2377 = vpop.permute.xlu0 %2376
      %2378 = vrot.lane.b32.xlu0 %v429, 116
      %v2379 = vpop.permute.xlu0 %2378
      %2380 = vrot.lane.b32.xlu0 %v430, 116
      %v2381 = vpop.permute.xlu0 %2380
      %2382 = vrot.lane.b32.xlu0 %v431, 116
      %v2383 = vpop.permute.xlu0 %2382
      %2384 = vrot.lane.b32.xlu0 %v432, 116
      %v2385 = vpop.permute.xlu0 %2384
      %2386 = vrot.lane.b32.xlu0 %v433, 116
      %v2387 = vpop.permute.xlu0 %2386
      %2388 = vrot.lane.b32.xlu0 %v434, 116
      %v2389 = vpop.permute.xlu0 %2388
      %2390 = vrot.lane.b32.xlu0 %v435, 116
      %v2391 = vpop.permute.xlu0 %2390
      %2392 = vrot.lane.b32.xlu0 %v436, 116
      %v2393 = vpop.permute.xlu0 %2392
      %2394 = vrot.lane.b32.xlu0 %v437, 116
      %v2395 = vpop.permute.xlu0 %2394
      %2396 = vrot.lane.b32.xlu0 %v438, 116
      %v2397 = vpop.permute.xlu0 %2396
      %2398 = vrot.lane.b32.xlu0 %v439, 116
      %v2399 = vpop.permute.xlu0 %2398
      %2400 = vrot.lane.b32.xlu0 %v440, 116
      %v2401 = vpop.permute.xlu0 %2400
      %2402 = vrot.lane.b32.xlu0 %v441, 116
      %v2403 = vpop.permute.xlu0 %2402
      %2404 = vrot.lane.b32.xlu0 %v442, 116
      %v2405 = vpop.permute.xlu0 %2404
      %2406 = vrot.lane.b32.xlu0 %v443, 116
      %v2407 = vpop.permute.xlu0 %2406
      %2408 = vrot.lane.b32.xlu0 %v444, 116
      %v2409 = vpop.permute.xlu0 %2408
      %2410 = vrot.lane.b32.xlu0 %v445, 116
      %v2411 = vpop.permute.xlu0 %2410
      %2412 = vrot.lane.b32.xlu0 %v446, 116
      %v2413 = vpop.permute.xlu0 %2412
      %2414 = vrot.lane.b32.xlu0 %v447, 116
      %v2415 = vpop.permute.xlu0 %2414
      %2416 = vrot.lane.b32.xlu0 %v448, 116
      %v2417 = vpop.permute.xlu0 %2416
      %2418 = vrot.lane.b32.xlu0 %v449, 116
      %v2419 = vpop.permute.xlu0 %2418
      %2420 = vrot.lane.b32.xlu0 %v450, 116
      %v2421 = vpop.permute.xlu0 %2420
      %2422 = vrot.lane.b32.xlu0 %v451, 116
      %v2423 = vpop.permute.xlu0 %2422
      %2424 = vrot.lane.b32.xlu0 %v452, 116
      %v2425 = vpop.permute.xlu0 %2424
      %2426 = vrot.lane.b32.xlu0 %v453, 116
      %v2427 = vpop.permute.xlu0 %2426
      %2428 = vrot.lane.b32.xlu0 %v454, 116
      %v2429 = vpop.permute.xlu0 %2428
      %2430 = vrot.lane.b32.xlu0 %v455, 116
      %v2431 = vpop.permute.xlu0 %2430
      %2432 = vrot.lane.b32.xlu0 %v456, 116
      %v2433 = vpop.permute.xlu0 %2432
      %2434 = vrot.lane.b32.xlu0 %v457, 116
      %v2435 = vpop.permute.xlu0 %2434
      %2436 = vrot.lane.b32.xlu0 %v458, 116
      %v2437 = vpop.permute.xlu0 %2436
      %2438 = vrot.lane.b32.xlu0 %v459, 116
      %v2439 = vpop.permute.xlu0 %2438
      %2440 = vrot.lane.b32.xlu0 %v460, 116
      %v2441 = vpop.permute.xlu0 %2440
      %2442 = vrot.lane.b32.xlu0 %v461, 116
      %v2443 = vpop.permute.xlu0 %2442
      %2444 = vrot.lane.b32.xlu0 %v462, 116
      %v2445 = vpop.permute.xlu0 %2444
      %2446 = vrot.lane.b32.xlu0 %v463, 116
      %v2447 = vpop.permute.xlu0 %2446
      %2448 = vrot.lane.b32.xlu0 %v464, 116
      %v2449 = vpop.permute.xlu0 %2448
      %2450 = vrot.lane.b32.xlu0 %v465, 116
      %v2451 = vpop.permute.xlu0 %2450
      %2452 = vrot.lane.b32.xlu0 %v466, 116
      %v2453 = vpop.permute.xlu0 %2452
      %2454 = vrot.lane.b32.xlu0 %v467, 116
      %v2455 = vpop.permute.xlu0 %2454
      %2456 = vrot.lane.b32.xlu0 %v468, 116
      %v2457 = vpop.permute.xlu0 %2456
      %2458 = vrot.lane.b32.xlu0 %v469, 116
      %v2459 = vpop.permute.xlu0 %2458
      %2460 = vrot.lane.b32.xlu0 %v470, 116
      %v2461 = vpop.permute.xlu0 %2460
      %2462 = vrot.lane.b32.xlu0 %v471, 116
      %v2463 = vpop.permute.xlu0 %2462
      %2464 = vrot.lane.b32.xlu0 %v472, 116
      %v2465 = vpop.permute.xlu0 %2464
      %2466 = vrot.lane.b32.xlu0 %v473, 116
      %v2467 = vpop.permute.xlu0 %2466
      %2468 = vrot.lane.b32.xlu0 %v474, 116
      %v2469 = vpop.permute.xlu0 %2468
      %2470 = vrot.lane.b32.xlu0 %v475, 116
      %v2471 = vpop.permute.xlu0 %2470
      %2472 = vrot.lane.b32.xlu0 %v476, 116
      %v2473 = vpop.permute.xlu0 %2472
      %2474 = vrot.lane.b32.xlu0 %v477, 116
      %v2475 = vpop.permute.xlu0 %2474
      %2476 = vrot.lane.b32.xlu0 %v478, 116
      %v2477 = vpop.permute.xlu0 %2476
      %2478 = vrot.lane.b32.xlu0 %v479, 116
      %v2479 = vpop.permute.xlu0 %2478
      %2480 = vrot.lane.b32.xlu0 %v480, 116
      %v2481 = vpop.permute.xlu0 %2480
      %2482 = vrot.lane.b32.xlu0 %v481, 116
      %v2483 = vpop.permute.xlu0 %2482
      %2484 = vrot.lane.b32.xlu0 %v482, 116
      %v2485 = vpop.permute.xlu0 %2484
      %2486 = vrot.lane.b32.xlu0 %v483, 116
      %v2487 = vpop.permute.xlu0 %2486
      %2488 = vrot.lane.b32.xlu0 %v484, 116
      %v2489 = vpop.permute.xlu0 %2488
      %2490 = vrot.lane.b32.xlu0 %v485, 116
      %v2491 = vpop.permute.xlu0 %2490
      %2492 = vrot.lane.b32.xlu0 %v486, 116
      %v2493 = vpop.permute.xlu0 %2492
      %2494 = vrot.lane.b32.xlu0 %v487, 116
      %v2495 = vpop.permute.xlu0 %2494
      %2496 = vrot.lane.b32.xlu0 %v488, 116
      %v2497 = vpop.permute.xlu0 %2496
      %2498 = vrot.lane.b32.xlu0 %v489, 116
      %v2499 = vpop.permute.xlu0 %2498
      %2500 = vrot.lane.b32.xlu0 %v490, 116
      %v2501 = vpop.permute.xlu0 %2500
      %2502 = vrot.lane.b32.xlu0 %v491, 116
      %v2503 = vpop.permute.xlu0 %2502
      %2504 = vrot.lane.b32.xlu0 %v492, 116
      %v2505 = vpop.permute.xlu0 %2504
      %2506 = vrot.lane.b32.xlu0 %v493, 116
      %v2507 = vpop.permute.xlu0 %2506
      %2508 = vrot.lane.b32.xlu0 %v494, 116
      %v2509 = vpop.permute.xlu0 %2508
      %2510 = vrot.lane.b32.xlu0 %v495, 116
      %v2511 = vpop.permute.xlu0 %2510
      %2512 = vrot.lane.b32.xlu0 %v496, 116
      %v2513 = vpop.permute.xlu0 %2512
      %2514 = vrot.lane.b32.xlu0 %v497, 116
      %v2515 = vpop.permute.xlu0 %2514
      %2516 = vrot.lane.b32.xlu0 %v498, 116
      %v2517 = vpop.permute.xlu0 %2516
      %2518 = vrot.lane.b32.xlu0 %v499, 116
      %v2519 = vpop.permute.xlu0 %2518
      %2520 = vrot.lane.b32.xlu0 %v500, 116
      %v2521 = vpop.permute.xlu0 %2520
      %2522 = vrot.lane.b32.xlu0 %v501, 116
      %v2523 = vpop.permute.xlu0 %2522
      %2524 = vrot.lane.b32.xlu0 %v502, 116
      %v2525 = vpop.permute.xlu0 %2524
      %2526 = vrot.lane.b32.xlu0 %v503, 116
      %v2527 = vpop.permute.xlu0 %2526
      %2528 = vrot.lane.b32.xlu0 %v504, 116
      %v2529 = vpop.permute.xlu0 %2528
      %2530 = vrot.lane.b32.xlu0 %v505, 116
      %v2531 = vpop.permute.xlu0 %2530
      %2532 = vrot.lane.b32.xlu0 %v506, 116
      %v2533 = vpop.permute.xlu0 %2532
      %2534 = vrot.lane.b32.xlu0 %v507, 116
      %v2535 = vpop.permute.xlu0 %2534
      %2536 = vrot.lane.b32.xlu0 %v508, 116
      %v2537 = vpop.permute.xlu0 %2536
      %2538 = vrot.lane.b32.xlu0 %v509, 116
      %v2539 = vpop.permute.xlu0 %2538
      %2540 = vrot.lane.b32.xlu0 %v510, 116
      %v2541 = vpop.permute.xlu0 %2540
      %2542 = vrot.lane.b32.xlu0 %v511, 116
      %v2543 = vpop.permute.xlu0 %2542
      %2544 = vrot.lane.b32.xlu0 %v512, 116
      %v2545 = vpop.permute.xlu0 %2544
      %2546 = vrot.lane.b32.xlu0 %v513, 116
      %v2547 = vpop.permute.xlu0 %2546
      %2548 = vrot.lane.b32.xlu0 %v514, 116
      %v2549 = vpop.permute.xlu0 %2548
      %2550 = vrot.lane.b32.xlu0 %v515, 116
      %v2551 = vpop.permute.xlu0 %2550
      %2552 = vrot.lane.b32.xlu0 %v516, 116
      %v2553 = vpop.permute.xlu0 %2552
      %2554 = vrot.lane.b32.xlu0 %v517, 116
      %v2555 = vpop.permute.xlu0 %2554
      %2556 = vrot.lane.b32.xlu0 %v518, 116
      %v2557 = vpop.permute.xlu0 %2556
      %2558 = vrot.lane.b32.xlu0 %v519, 116
      %v2559 = vpop.permute.xlu0 %2558
      %2560 = vrot.lane.b32.xlu0 %v520, 116
      %v2561 = vpop.permute.xlu0 %2560
      %2562 = vrot.lane.b32.xlu0 %v521, 116
      %v2563 = vpop.permute.xlu0 %2562
      %2564 = vrot.lane.b32.xlu0 %v522, 116
      %v2565 = vpop.permute.xlu0 %2564
      %2566 = vrot.lane.b32.xlu0 %v523, 116
      %v2567 = vpop.permute.xlu0 %2566
      %2568 = vrot.lane.b32.xlu0 %v524, 116
      %v2569 = vpop.permute.xlu0 %2568
      %2570 = vrot.lane.b32.xlu0 %v525, 116
      %v2571 = vpop.permute.xlu0 %2570
      %2572 = vrot.lane.b32.xlu0 %v526, 116
      %v2573 = vpop.permute.xlu0 %2572
      %2574 = vrot.lane.b32.xlu0 %v527, 116
      %v2575 = vpop.permute.xlu0 %2574
      %2576 = vrot.lane.b32.xlu0 %v528, 116
      %v2577 = vpop.permute.xlu0 %2576
      %2706 = vst.msk [vmem:[%s381] sm:$0xff] %vm529, %v2323
      %2707 = vst.msk [vmem:[%s381 + $0x8] sm:$0xff] %vm529, %v2325
      %2708 = vst.msk [vmem:[%s381 + $0x10] sm:$0xff] %vm529, %v2327
      %2709 = vst.msk [vmem:[%s381 + $0x18] sm:$0xff] %vm529, %v2329
      %2710 = vst.msk [vmem:[%s381 + $0x20] sm:$0xff] %vm529, %v2331
      %2711 = vst.msk [vmem:[%s381 + $0x28] sm:$0xff] %vm529, %v2333
      %2712 = vst.msk [vmem:[%s381 + $0x30] sm:$0xff] %vm529, %v2335
      %2713 = vst.msk [vmem:[%s381 + $0x38] sm:$0xff] %vm529, %v2337
      %2714 = vst.msk [vmem:[%s381 + $0x40] sm:$0xff] %vm529, %v2339
      %2715 = vst.msk [vmem:[%s381 + $0x48] sm:$0xff] %vm529, %v2341
      %2716 = vst.msk [vmem:[%s381 + $0x50] sm:$0xff] %vm529, %v2343
      %2717 = vst.msk [vmem:[%s381 + $0x58] sm:$0xff] %vm529, %v2345
      %2718 = vst.msk [vmem:[%s381 + $0x60] sm:$0xff] %vm529, %v2347
      %2719 = vst.msk [vmem:[%s381 + $0x68] sm:$0xff] %vm529, %v2349
      %2720 = vst.msk [vmem:[%s381 + $0x70] sm:$0xff] %vm529, %v2351
      %2721 = vst.msk [vmem:[%s381 + $0x78] sm:$0xff] %vm529, %v2353
      %2722 = vst.msk [vmem:[%s381 + $0x80] sm:$0xff] %vm529, %v2355
      %2723 = vst.msk [vmem:[%s381 + $0x88] sm:$0xff] %vm529, %v2357
      %2724 = vst.msk [vmem:[%s381 + $0x90] sm:$0xff] %vm529, %v2359
      %2725 = vst.msk [vmem:[%s381 + $0x98] sm:$0xff] %vm529, %v2361
      %2726 = vst.msk [vmem:[%s381 + $0xa0] sm:$0xff] %vm529, %v2363
      %2727 = vst.msk [vmem:[%s381 + $0xa8] sm:$0xff] %vm529, %v2365
      %2728 = vst.msk [vmem:[%s381 + $0xb0] sm:$0xff] %vm529, %v2367
      %2729 = vst.msk [vmem:[%s381 + $0xb8] sm:$0xff] %vm529, %v2369
      %2730 = vst.msk [vmem:[%s381 + $0xc0] sm:$0xff] %vm529, %v2371
      %2731 = vst.msk [vmem:[%s381 + $0xc8] sm:$0xff] %vm529, %v2373
      %2732 = vst.msk [vmem:[%s381 + $0xd0] sm:$0xff] %vm529, %v2375
      %2733 = vst.msk [vmem:[%s381 + $0xd8] sm:$0xff] %vm529, %v2377
      %2734 = vst.msk [vmem:[%s381 + $0xe0] sm:$0xff] %vm529, %v2379
      %2735 = vst.msk [vmem:[%s381 + $0xe8] sm:$0xff] %vm529, %v2381
      %2736 = vst.msk [vmem:[%s381 + $0xf0] sm:$0xff] %vm529, %v2383
      %2737 = vst.msk [vmem:[%s381 + $0xf8] sm:$0xff] %vm529, %v2385
      %2738 = vst.msk [vmem:[%s381 + $0x100] sm:$0xff] %vm529, %v2387
      %2739 = vst.msk [vmem:[%s381 + $0x108] sm:$0xff] %vm529, %v2389
      %2740 = vst.msk [vmem:[%s381 + $0x110] sm:$0xff] %vm529, %v2391
      %2741 = vst.msk [vmem:[%s381 + $0x118] sm:$0xff] %vm529, %v2393
      %2742 = vst.msk [vmem:[%s381 + $0x120] sm:$0xff] %vm529, %v2395
      %2743 = vst.msk [vmem:[%s381 + $0x128] sm:$0xff] %vm529, %v2397
      %2744 = vst.msk [vmem:[%s381 + $0x130] sm:$0xff] %vm529, %v2399
      %2745 = vst.msk [vmem:[%s381 + $0x138] sm:$0xff] %vm529, %v2401
      %2746 = vst.msk [vmem:[%s381 + $0x140] sm:$0xff] %vm529, %v2403
      %2747 = vst.msk [vmem:[%s381 + $0x148] sm:$0xff] %vm529, %v2405
      %2748 = vst.msk [vmem:[%s381 + $0x150] sm:$0xff] %vm529, %v2407
      %2749 = vst.msk [vmem:[%s381 + $0x158] sm:$0xff] %vm529, %v2409
      %2750 = vst.msk [vmem:[%s381 + $0x160] sm:$0xff] %vm529, %v2411
      %2751 = vst.msk [vmem:[%s381 + $0x168] sm:$0xff] %vm529, %v2413
      %2752 = vst.msk [vmem:[%s381 + $0x170] sm:$0xff] %vm529, %v2415
      %2753 = vst.msk [vmem:[%s381 + $0x178] sm:$0xff] %vm529, %v2417
      %2754 = vst.msk [vmem:[%s381 + $0x180] sm:$0xff] %vm529, %v2419
      %2755 = vst.msk [vmem:[%s381 + $0x188] sm:$0xff] %vm529, %v2421
      %2756 = vst.msk [vmem:[%s381 + $0x190] sm:$0xff] %vm529, %v2423
      %2757 = vst.msk [vmem:[%s381 + $0x198] sm:$0xff] %vm529, %v2425
      %2758 = vst.msk [vmem:[%s381 + $0x1a0] sm:$0xff] %vm529, %v2427
      %2759 = vst.msk [vmem:[%s381 + $0x1a8] sm:$0xff] %vm529, %v2429
      %2760 = vst.msk [vmem:[%s381 + $0x1b0] sm:$0xff] %vm529, %v2431
      %2761 = vst.msk [vmem:[%s381 + $0x1b8] sm:$0xff] %vm529, %v2433
      %2762 = vst.msk [vmem:[%s381 + $0x1c0] sm:$0xff] %vm529, %v2435
      %2763 = vst.msk [vmem:[%s381 + $0x1c8] sm:$0xff] %vm529, %v2437
      %2764 = vst.msk [vmem:[%s381 + $0x1d0] sm:$0xff] %vm529, %v2439
      %2765 = vst.msk [vmem:[%s381 + $0x1d8] sm:$0xff] %vm529, %v2441
      %2766 = vst.msk [vmem:[%s381 + $0x1e0] sm:$0xff] %vm529, %v2443
      %2767 = vst.msk [vmem:[%s381 + $0x1e8] sm:$0xff] %vm529, %v2445
      %2768 = vst.msk [vmem:[%s381 + $0x1f0] sm:$0xff] %vm529, %v2447
      %2769 = vst.msk [vmem:[%s381 + $0x1f8] sm:$0xff] %vm529, %v2449
      %2770 = vst.msk [vmem:[%s381 + $0x200] sm:$0xff] %vm529, %v2451
      %2771 = vst.msk [vmem:[%s381 + $0x208] sm:$0xff] %vm529, %v2453
      %2772 = vst.msk [vmem:[%s381 + $0x210] sm:$0xff] %vm529, %v2455
      %2773 = vst.msk [vmem:[%s381 + $0x218] sm:$0xff] %vm529, %v2457
      %2774 = vst.msk [vmem:[%s381 + $0x220] sm:$0xff] %vm529, %v2459
      %2775 = vst.msk [vmem:[%s381 + $0x228] sm:$0xff] %vm529, %v2461
      %2776 = vst.msk [vmem:[%s381 + $0x230] sm:$0xff] %vm529, %v2463
      %2777 = vst.msk [vmem:[%s381 + $0x238] sm:$0xff] %vm529, %v2465
      %2778 = vst.msk [vmem:[%s381 + $0x240] sm:$0xff] %vm529, %v2467
      %2779 = vst.msk [vmem:[%s381 + $0x248] sm:$0xff] %vm529, %v2469
      %2780 = vst.msk [vmem:[%s381 + $0x250] sm:$0xff] %vm529, %v2471
      %2781 = vst.msk [vmem:[%s381 + $0x258] sm:$0xff] %vm529, %v2473
      %2782 = vst.msk [vmem:[%s381 + $0x260] sm:$0xff] %vm529, %v2475
      %2783 = vst.msk [vmem:[%s381 + $0x268] sm:$0xff] %vm529, %v2477
      %2784 = vst.msk [vmem:[%s381 + $0x270] sm:$0xff] %vm529, %v2479
      %2785 = vst.msk [vmem:[%s381 + $0x278] sm:$0xff] %vm529, %v2481
      %2786 = vst.msk [vmem:[%s381 + $0x280] sm:$0xff] %vm529, %v2483
      %2787 = vst.msk [vmem:[%s381 + $0x288] sm:$0xff] %vm529, %v2485
      %2788 = vst.msk [vmem:[%s381 + $0x290] sm:$0xff] %vm529, %v2487
      %2789 = vst.msk [vmem:[%s381 + $0x298] sm:$0xff] %vm529, %v2489
      %2790 = vst.msk [vmem:[%s381 + $0x2a0] sm:$0xff] %vm529, %v2491
      %2791 = vst.msk [vmem:[%s381 + $0x2a8] sm:$0xff] %vm529, %v2493
      %2792 = vst.msk [vmem:[%s381 + $0x2b0] sm:$0xff] %vm529, %v2495
      %2793 = vst.msk [vmem:[%s381 + $0x2b8] sm:$0xff] %vm529, %v2497
      %2794 = vst.msk [vmem:[%s381 + $0x2c0] sm:$0xff] %vm529, %v2499
      %2795 = vst.msk [vmem:[%s381 + $0x2c8] sm:$0xff] %vm529, %v2501
      %2796 = vst.msk [vmem:[%s381 + $0x2d0] sm:$0xff] %vm529, %v2503
      %2797 = vst.msk [vmem:[%s381 + $0x2d8] sm:$0xff] %vm529, %v2505
      %2798 = vst.msk [vmem:[%s381 + $0x2e0] sm:$0xff] %vm529, %v2507
      %2799 = vst.msk [vmem:[%s381 + $0x2e8] sm:$0xff] %vm529, %v2509
      %2800 = vst.msk [vmem:[%s381 + $0x2f0] sm:$0xff] %vm529, %v2511
      %2801 = vst.msk [vmem:[%s381 + $0x2f8] sm:$0xff] %vm529, %v2513
      %2802 = vst.msk [vmem:[%s381 + $0x300] sm:$0xff] %vm529, %v2515
      %2803 = vst.msk [vmem:[%s381 + $0x308] sm:$0xff] %vm529, %v2517
      %2804 = vst.msk [vmem:[%s381 + $0x310] sm:$0xff] %vm529, %v2519
      %2805 = vst.msk [vmem:[%s381 + $0x318] sm:$0xff] %vm529, %v2521
      %2806 = vst.msk [vmem:[%s381 + $0x320] sm:$0xff] %vm529, %v2523
      %2807 = vst.msk [vmem:[%s381 + $0x328] sm:$0xff] %vm529, %v2525
      %2808 = vst.msk [vmem:[%s381 + $0x330] sm:$0xff] %vm529, %v2527
      %2809 = vst.msk [vmem:[%s381 + $0x338] sm:$0xff] %vm529, %v2529
      %2810 = vst.msk [vmem:[%s381 + $0x340] sm:$0xff] %vm529, %v2531
      %2811 = vst.msk [vmem:[%s381 + $0x348] sm:$0xff] %vm529, %v2533
      %2812 = vst.msk [vmem:[%s381 + $0x350] sm:$0xff] %vm529, %v2535
      %2813 = vst.msk [vmem:[%s381 + $0x358] sm:$0xff] %vm529, %v2537
      %2814 = vst.msk [vmem:[%s381 + $0x360] sm:$0xff] %vm529, %v2539
      %2815 = vst.msk [vmem:[%s381 + $0x368] sm:$0xff] %vm529, %v2541
      %2816 = vst.msk [vmem:[%s381 + $0x370] sm:$0xff] %vm529, %v2543
      %2817 = vst.msk [vmem:[%s381 + $0x378] sm:$0xff] %vm529, %v2545
      %2818 = vst.msk [vmem:[%s381 + $0x380] sm:$0xff] %vm529, %v2547
      %2819 = vst.msk [vmem:[%s381 + $0x388] sm:$0xff] %vm529, %v2549
      %2820 = vst.msk [vmem:[%s381 + $0x390] sm:$0xff] %vm529, %v2551
      %2821 = vst.msk [vmem:[%s381 + $0x398] sm:$0xff] %vm529, %v2553
      %2822 = vst.msk [vmem:[%s381 + $0x3a0] sm:$0xff] %vm529, %v2555
      %2823 = vst.msk [vmem:[%s381 + $0x3a8] sm:$0xff] %vm529, %v2557
      %2824 = vst.msk [vmem:[%s381 + $0x3b0] sm:$0xff] %vm529, %v2559
      %2825 = vst.msk [vmem:[%s381 + $0x3b8] sm:$0xff] %vm529, %v2561
      %2826 = vst.msk [vmem:[%s381 + $0x3c0] sm:$0xff] %vm529, %v2563
      %2827 = vst.msk [vmem:[%s381 + $0x3c8] sm:$0xff] %vm529, %v2565
      %2828 = vst.msk [vmem:[%s381 + $0x3d0] sm:$0xff] %vm529, %v2567
      %2829 = vst.msk [vmem:[%s381 + $0x3d8] sm:$0xff] %vm529, %v2569
      %2830 = vst.msk [vmem:[%s381 + $0x3e0] sm:$0xff] %vm529, %v2571
      %2831 = vst.msk [vmem:[%s381 + $0x3e8] sm:$0xff] %vm529, %v2573
      %2832 = vst.msk [vmem:[%s381 + $0x3f0] sm:$0xff] %vm529, %v2575
      %2833 = vst.msk [vmem:[%s381 + $0x3f8] sm:$0xff] %vm529, %v2577
      %2834 = vrot.lane.b32.xlu0 %v401, 113
      %v2835 = vpop.permute.xlu0 %2834
      %2836 = vrot.lane.b32.xlu0 %v402, 113
      %v2837 = vpop.permute.xlu0 %2836
      %2838 = vrot.lane.b32.xlu0 %v403, 113
      %v2839 = vpop.permute.xlu0 %2838
      %2840 = vrot.lane.b32.xlu0 %v404, 113
      %v2841 = vpop.permute.xlu0 %2840
      %2842 = vrot.lane.b32.xlu0 %v405, 113
      %v2843 = vpop.permute.xlu0 %2842
      %2844 = vrot.lane.b32.xlu0 %v406, 113
      %v2845 = vpop.permute.xlu0 %2844
      %2846 = vrot.lane.b32.xlu0 %v407, 113
      %v2847 = vpop.permute.xlu0 %2846
      %2848 = vrot.lane.b32.xlu0 %v408, 113
      %v2849 = vpop.permute.xlu0 %2848
      %2850 = vrot.lane.b32.xlu0 %v409, 113
      %v2851 = vpop.permute.xlu0 %2850
      %2852 = vrot.lane.b32.xlu0 %v410, 113
      %v2853 = vpop.permute.xlu0 %2852
      %2854 = vrot.lane.b32.xlu0 %v411, 113
      %v2855 = vpop.permute.xlu0 %2854
      %2856 = vrot.lane.b32.xlu0 %v412, 113
      %v2857 = vpop.permute.xlu0 %2856
      %2858 = vrot.lane.b32.xlu0 %v413, 113
      %v2859 = vpop.permute.xlu0 %2858
      %2860 = vrot.lane.b32.xlu0 %v414, 113
      %v2861 = vpop.permute.xlu0 %2860
      %2862 = vrot.lane.b32.xlu0 %v415, 113
      %v2863 = vpop.permute.xlu0 %2862
      %2864 = vrot.lane.b32.xlu0 %v416, 113
      %v2865 = vpop.permute.xlu0 %2864
      %2866 = vrot.lane.b32.xlu0 %v417, 113
      %v2867 = vpop.permute.xlu0 %2866
      %2868 = vrot.lane.b32.xlu0 %v418, 113
      %v2869 = vpop.permute.xlu0 %2868
      %2870 = vrot.lane.b32.xlu0 %v419, 113
      %v2871 = vpop.permute.xlu0 %2870
      %2872 = vrot.lane.b32.xlu0 %v420, 113
      %v2873 = vpop.permute.xlu0 %2872
      %2874 = vrot.lane.b32.xlu0 %v421, 113
      %v2875 = vpop.permute.xlu0 %2874
      %2876 = vrot.lane.b32.xlu0 %v422, 113
      %v2877 = vpop.permute.xlu0 %2876
      %2878 = vrot.lane.b32.xlu0 %v423, 113
      %v2879 = vpop.permute.xlu0 %2878
      %2880 = vrot.lane.b32.xlu0 %v424, 113
      %v2881 = vpop.permute.xlu0 %2880
      %2882 = vrot.lane.b32.xlu0 %v425, 113
      %v2883 = vpop.permute.xlu0 %2882
      %2884 = vrot.lane.b32.xlu0 %v426, 113
      %v2885 = vpop.permute.xlu0 %2884
      %2886 = vrot.lane.b32.xlu0 %v427, 113
      %v2887 = vpop.permute.xlu0 %2886
      %2888 = vrot.lane.b32.xlu0 %v428, 113
      %v2889 = vpop.permute.xlu0 %2888
      %2890 = vrot.lane.b32.xlu0 %v429, 113
      %v2891 = vpop.permute.xlu0 %2890
      %2892 = vrot.lane.b32.xlu0 %v430, 113
      %v2893 = vpop.permute.xlu0 %2892
      %2894 = vrot.lane.b32.xlu0 %v431, 113
      %v2895 = vpop.permute.xlu0 %2894
      %2896 = vrot.lane.b32.xlu0 %v432, 113
      %v2897 = vpop.permute.xlu0 %2896
      %2898 = vrot.lane.b32.xlu0 %v433, 113
      %v2899 = vpop.permute.xlu0 %2898
      %2900 = vrot.lane.b32.xlu0 %v434, 113
      %v2901 = vpop.permute.xlu0 %2900
      %2902 = vrot.lane.b32.xlu0 %v435, 113
      %v2903 = vpop.permute.xlu0 %2902
      %2904 = vrot.lane.b32.xlu0 %v436, 113
      %v2905 = vpop.permute.xlu0 %2904
      %2906 = vrot.lane.b32.xlu0 %v437, 113
      %v2907 = vpop.permute.xlu0 %2906
      %2908 = vrot.lane.b32.xlu0 %v438, 113
      %v2909 = vpop.permute.xlu0 %2908
      %2910 = vrot.lane.b32.xlu0 %v439, 113
      %v2911 = vpop.permute.xlu0 %2910
      %2912 = vrot.lane.b32.xlu0 %v440, 113
      %v2913 = vpop.permute.xlu0 %2912
      %2914 = vrot.lane.b32.xlu0 %v441, 113
      %v2915 = vpop.permute.xlu0 %2914
      %2916 = vrot.lane.b32.xlu0 %v442, 113
      %v2917 = vpop.permute.xlu0 %2916
      %2918 = vrot.lane.b32.xlu0 %v443, 113
      %v2919 = vpop.permute.xlu0 %2918
      %2920 = vrot.lane.b32.xlu0 %v444, 113
      %v2921 = vpop.permute.xlu0 %2920
      %2922 = vrot.lane.b32.xlu0 %v445, 113
      %v2923 = vpop.permute.xlu0 %2922
      %2924 = vrot.lane.b32.xlu0 %v446, 113
      %v2925 = vpop.permute.xlu0 %2924
      %2926 = vrot.lane.b32.xlu0 %v447, 113
      %v2927 = vpop.permute.xlu0 %2926
      %2928 = vrot.lane.b32.xlu0 %v448, 113
      %v2929 = vpop.permute.xlu0 %2928
      %2930 = vrot.lane.b32.xlu0 %v449, 113
      %v2931 = vpop.permute.xlu0 %2930
      %2932 = vrot.lane.b32.xlu0 %v450, 113
      %v2933 = vpop.permute.xlu0 %2932
      %2934 = vrot.lane.b32.xlu0 %v451, 113
      %v2935 = vpop.permute.xlu0 %2934
      %2936 = vrot.lane.b32.xlu0 %v452, 113
      %v2937 = vpop.permute.xlu0 %2936
      %2938 = vrot.lane.b32.xlu0 %v453, 113
      %v2939 = vpop.permute.xlu0 %2938
      %2940 = vrot.lane.b32.xlu0 %v454, 113
      %v2941 = vpop.permute.xlu0 %2940
      %2942 = vrot.lane.b32.xlu0 %v455, 113
      %v2943 = vpop.permute.xlu0 %2942
      %2944 = vrot.lane.b32.xlu0 %v456, 113
      %v2945 = vpop.permute.xlu0 %2944
      %2946 = vrot.lane.b32.xlu0 %v457, 113
      %v2947 = vpop.permute.xlu0 %2946
      %2948 = vrot.lane.b32.xlu0 %v458, 113
      %v2949 = vpop.permute.xlu0 %2948
      %2950 = vrot.lane.b32.xlu0 %v459, 113
      %v2951 = vpop.permute.xlu0 %2950
      %2952 = vrot.lane.b32.xlu0 %v460, 113
      %v2953 = vpop.permute.xlu0 %2952
      %2954 = vrot.lane.b32.xlu0 %v461, 113
      %v2955 = vpop.permute.xlu0 %2954
      %2956 = vrot.lane.b32.xlu0 %v462, 113
      %v2957 = vpop.permute.xlu0 %2956
      %2958 = vrot.lane.b32.xlu0 %v463, 113
      %v2959 = vpop.permute.xlu0 %2958
      %2960 = vrot.lane.b32.xlu0 %v464, 113
      %v2961 = vpop.permute.xlu0 %2960
      %2962 = vrot.lane.b32.xlu0 %v465, 113
      %v2963 = vpop.permute.xlu0 %2962
      %2964 = vrot.lane.b32.xlu0 %v466, 113
      %v2965 = vpop.permute.xlu0 %2964
      %2966 = vrot.lane.b32.xlu0 %v467, 113
      %v2967 = vpop.permute.xlu0 %2966
      %2968 = vrot.lane.b32.xlu0 %v468, 113
      %v2969 = vpop.permute.xlu0 %2968
      %2970 = vrot.lane.b32.xlu0 %v469, 113
      %v2971 = vpop.permute.xlu0 %2970
      %2972 = vrot.lane.b32.xlu0 %v470, 113
      %v2973 = vpop.permute.xlu0 %2972
      %2974 = vrot.lane.b32.xlu0 %v471, 113
      %v2975 = vpop.permute.xlu0 %2974
      %2976 = vrot.lane.b32.xlu0 %v472, 113
      %v2977 = vpop.permute.xlu0 %2976
      %2978 = vrot.lane.b32.xlu0 %v473, 113
      %v2979 = vpop.permute.xlu0 %2978
      %2980 = vrot.lane.b32.xlu0 %v474, 113
      %v2981 = vpop.permute.xlu0 %2980
      %2982 = vrot.lane.b32.xlu0 %v475, 113
      %v2983 = vpop.permute.xlu0 %2982
      %2984 = vrot.lane.b32.xlu0 %v476, 113
      %v2985 = vpop.permute.xlu0 %2984
      %2986 = vrot.lane.b32.xlu0 %v477, 113
      %v2987 = vpop.permute.xlu0 %2986
      %2988 = vrot.lane.b32.xlu0 %v478, 113
      %v2989 = vpop.permute.xlu0 %2988
      %2990 = vrot.lane.b32.xlu0 %v479, 113
      %v2991 = vpop.permute.xlu0 %2990
      %2992 = vrot.lane.b32.xlu0 %v480, 113
      %v2993 = vpop.permute.xlu0 %2992
      %2994 = vrot.lane.b32.xlu0 %v481, 113
      %v2995 = vpop.permute.xlu0 %2994
      %2996 = vrot.lane.b32.xlu0 %v482, 113
      %v2997 = vpop.permute.xlu0 %2996
      %2998 = vrot.lane.b32.xlu0 %v483, 113
      %v2999 = vpop.permute.xlu0 %2998
      %3000 = vrot.lane.b32.xlu0 %v484, 113
      %v3001 = vpop.permute.xlu0 %3000
      %3002 = vrot.lane.b32.xlu0 %v485, 113
      %v3003 = vpop.permute.xlu0 %3002
      %3004 = vrot.lane.b32.xlu0 %v486, 113
      %v3005 = vpop.permute.xlu0 %3004
      %3006 = vrot.lane.b32.xlu0 %v487, 113
      %v3007 = vpop.permute.xlu0 %3006
      %3008 = vrot.lane.b32.xlu0 %v488, 113
      %v3009 = vpop.permute.xlu0 %3008
      %3010 = vrot.lane.b32.xlu0 %v489, 113
      %v3011 = vpop.permute.xlu0 %3010
      %3012 = vrot.lane.b32.xlu0 %v490, 113
      %v3013 = vpop.permute.xlu0 %3012
      %3014 = vrot.lane.b32.xlu0 %v491, 113
      %v3015 = vpop.permute.xlu0 %3014
      %3016 = vrot.lane.b32.xlu0 %v492, 113
      %v3017 = vpop.permute.xlu0 %3016
      %3018 = vrot.lane.b32.xlu0 %v493, 113
      %v3019 = vpop.permute.xlu0 %3018
      %3020 = vrot.lane.b32.xlu0 %v494, 113
      %v3021 = vpop.permute.xlu0 %3020
      %3022 = vrot.lane.b32.xlu0 %v495, 113
      %v3023 = vpop.permute.xlu0 %3022
      %3024 = vrot.lane.b32.xlu0 %v496, 113
      %v3025 = vpop.permute.xlu0 %3024
      %3026 = vrot.lane.b32.xlu0 %v497, 113
      %v3027 = vpop.permute.xlu0 %3026
      %3028 = vrot.lane.b32.xlu0 %v498, 113
      %v3029 = vpop.permute.xlu0 %3028
      %3030 = vrot.lane.b32.xlu0 %v499, 113
      %v3031 = vpop.permute.xlu0 %3030
      %3032 = vrot.lane.b32.xlu0 %v500, 113
      %v3033 = vpop.permute.xlu0 %3032
      %3034 = vrot.lane.b32.xlu0 %v501, 113
      %v3035 = vpop.permute.xlu0 %3034
      %3036 = vrot.lane.b32.xlu0 %v502, 113
      %v3037 = vpop.permute.xlu0 %3036
      %3038 = vrot.lane.b32.xlu0 %v503, 113
      %v3039 = vpop.permute.xlu0 %3038
      %3040 = vrot.lane.b32.xlu0 %v504, 113
      %v3041 = vpop.permute.xlu0 %3040
      %3042 = vrot.lane.b32.xlu0 %v505, 113
      %v3043 = vpop.permute.xlu0 %3042
      %3044 = vrot.lane.b32.xlu0 %v506, 113
      %v3045 = vpop.permute.xlu0 %3044
      %3046 = vrot.lane.b32.xlu0 %v507, 113
      %v3047 = vpop.permute.xlu0 %3046
      %3048 = vrot.lane.b32.xlu0 %v508, 113
      %v3049 = vpop.permute.xlu0 %3048
      %3050 = vrot.lane.b32.xlu0 %v509, 113
      %v3051 = vpop.permute.xlu0 %3050
      %3052 = vrot.lane.b32.xlu0 %v510, 113
      %v3053 = vpop.permute.xlu0 %3052
      %3054 = vrot.lane.b32.xlu0 %v511, 113
      %v3055 = vpop.permute.xlu0 %3054
      %3056 = vrot.lane.b32.xlu0 %v512, 113
      %v3057 = vpop.permute.xlu0 %3056
      %3058 = vrot.lane.b32.xlu0 %v513, 113
      %v3059 = vpop.permute.xlu0 %3058
      %3060 = vrot.lane.b32.xlu0 %v514, 113
      %v3061 = vpop.permute.xlu0 %3060
      %3062 = vrot.lane.b32.xlu0 %v515, 113
      %v3063 = vpop.permute.xlu0 %3062
      %3064 = vrot.lane.b32.xlu0 %v516, 113
      %v3065 = vpop.permute.xlu0 %3064
      %3066 = vrot.lane.b32.xlu0 %v517, 113
      %v3067 = vpop.permute.xlu0 %3066
      %3068 = vrot.lane.b32.xlu0 %v518, 113
      %v3069 = vpop.permute.xlu0 %3068
      %3070 = vrot.lane.b32.xlu0 %v519, 113
      %v3071 = vpop.permute.xlu0 %3070
      %3072 = vrot.lane.b32.xlu0 %v520, 113
      %v3073 = vpop.permute.xlu0 %3072
      %3074 = vrot.lane.b32.xlu0 %v521, 113
      %v3075 = vpop.permute.xlu0 %3074
      %3076 = vrot.lane.b32.xlu0 %v522, 113
      %v3077 = vpop.permute.xlu0 %3076
      %3078 = vrot.lane.b32.xlu0 %v523, 113
      %v3079 = vpop.permute.xlu0 %3078
      %3080 = vrot.lane.b32.xlu0 %v524, 113
      %v3081 = vpop.permute.xlu0 %3080
      %3082 = vrot.lane.b32.xlu0 %v525, 113
      %v3083 = vpop.permute.xlu0 %3082
      %3084 = vrot.lane.b32.xlu0 %v526, 113
      %v3085 = vpop.permute.xlu0 %3084
      %3086 = vrot.lane.b32.xlu0 %v527, 113
      %v3087 = vpop.permute.xlu0 %3086
      %3088 = vrot.lane.b32.xlu0 %v528, 113
      %v3089 = vpop.permute.xlu0 %3088
      %vm3218 = vcmask 15360
      %3219 = vst.msk [vmem:[%s387] sm:$0xff] %vm3218, %v2835
      %3220 = vst.msk [vmem:[%s387 + $0x8] sm:$0xff] %vm3218, %v2837
      %3221 = vst.msk [vmem:[%s387 + $0x10] sm:$0xff] %vm3218, %v2839
      %3222 = vst.msk [vmem:[%s387 + $0x18] sm:$0xff] %vm3218, %v2841
      %3223 = vst.msk [vmem:[%s387 + $0x20] sm:$0xff] %vm3218, %v2843
      %3224 = vst.msk [vmem:[%s387 + $0x28] sm:$0xff] %vm3218, %v2845
      %3225 = vst.msk [vmem:[%s387 + $0x30] sm:$0xff] %vm3218, %v2847
      %3226 = vst.msk [vmem:[%s387 + $0x38] sm:$0xff] %vm3218, %v2849
      %3227 = vst.msk [vmem:[%s387 + $0x40] sm:$0xff] %vm3218, %v2851
      %3228 = vst.msk [vmem:[%s387 + $0x48] sm:$0xff] %vm3218, %v2853
      %3229 = vst.msk [vmem:[%s387 + $0x50] sm:$0xff] %vm3218, %v2855
      %3230 = vst.msk [vmem:[%s387 + $0x58] sm:$0xff] %vm3218, %v2857
      %3231 = vst.msk [vmem:[%s387 + $0x60] sm:$0xff] %vm3218, %v2859
      %3232 = vst.msk [vmem:[%s387 + $0x68] sm:$0xff] %vm3218, %v2861
      %3233 = vst.msk [vmem:[%s387 + $0x70] sm:$0xff] %vm3218, %v2863
      %3234 = vst.msk [vmem:[%s387 + $0x78] sm:$0xff] %vm3218, %v2865
      %3235 = vst.msk [vmem:[%s387 + $0x80] sm:$0xff] %vm3218, %v2867
      %3236 = vst.msk [vmem:[%s387 + $0x88] sm:$0xff] %vm3218, %v2869
      %3237 = vst.msk [vmem:[%s387 + $0x90] sm:$0xff] %vm3218, %v2871
      %3238 = vst.msk [vmem:[%s387 + $0x98] sm:$0xff] %vm3218, %v2873
      %3239 = vst.msk [vmem:[%s387 + $0xa0] sm:$0xff] %vm3218, %v2875
      %3240 = vst.msk [vmem:[%s387 + $0xa8] sm:$0xff] %vm3218, %v2877
      %3241 = vst.msk [vmem:[%s387 + $0xb0] sm:$0xff] %vm3218, %v2879
      %3242 = vst.msk [vmem:[%s387 + $0xb8] sm:$0xff] %vm3218, %v2881
      %3243 = vst.msk [vmem:[%s387 + $0xc0] sm:$0xff] %vm3218, %v2883
      %3244 = vst.msk [vmem:[%s387 + $0xc8] sm:$0xff] %vm3218, %v2885
      %3245 = vst.msk [vmem:[%s387 + $0xd0] sm:$0xff] %vm3218, %v2887
      %3246 = vst.msk [vmem:[%s387 + $0xd8] sm:$0xff] %vm3218, %v2889
      %3247 = vst.msk [vmem:[%s387 + $0xe0] sm:$0xff] %vm3218, %v2891
      %3248 = vst.msk [vmem:[%s387 + $0xe8] sm:$0xff] %vm3218, %v2893
      %3249 = vst.msk [vmem:[%s387 + $0xf0] sm:$0xff] %vm3218, %v2895
      %3250 = vst.msk [vmem:[%s387 + $0xf8] sm:$0xff] %vm3218, %v2897
      %3251 = vst.msk [vmem:[%s387 + $0x100] sm:$0xff] %vm3218, %v2899
      %3252 = vst.msk [vmem:[%s387 + $0x108] sm:$0xff] %vm3218, %v2901
      %3253 = vst.msk [vmem:[%s387 + $0x110] sm:$0xff] %vm3218, %v2903
      %3254 = vst.msk [vmem:[%s387 + $0x118] sm:$0xff] %vm3218, %v2905
      %3255 = vst.msk [vmem:[%s387 + $0x120] sm:$0xff] %vm3218, %v2907
      %3256 = vst.msk [vmem:[%s387 + $0x128] sm:$0xff] %vm3218, %v2909
      %3257 = vst.msk [vmem:[%s387 + $0x130] sm:$0xff] %vm3218, %v2911
      %3258 = vst.msk [vmem:[%s387 + $0x138] sm:$0xff] %vm3218, %v2913
      %3259 = vst.msk [vmem:[%s387 + $0x140] sm:$0xff] %vm3218, %v2915
      %3260 = vst.msk [vmem:[%s387 + $0x148] sm:$0xff] %vm3218, %v2917
      %3261 = vst.msk [vmem:[%s387 + $0x150] sm:$0xff] %vm3218, %v2919
      %3262 = vst.msk [vmem:[%s387 + $0x158] sm:$0xff] %vm3218, %v2921
      %3263 = vst.msk [vmem:[%s387 + $0x160] sm:$0xff] %vm3218, %v2923
      %3264 = vst.msk [vmem:[%s387 + $0x168] sm:$0xff] %vm3218, %v2925
      %3265 = vst.msk [vmem:[%s387 + $0x170] sm:$0xff] %vm3218, %v2927
      %3266 = vst.msk [vmem:[%s387 + $0x178] sm:$0xff] %vm3218, %v2929
      %3267 = vst.msk [vmem:[%s387 + $0x180] sm:$0xff] %vm3218, %v2931
      %3268 = vst.msk [vmem:[%s387 + $0x188] sm:$0xff] %vm3218, %v2933
      %3269 = vst.msk [vmem:[%s387 + $0x190] sm:$0xff] %vm3218, %v2935
      %3270 = vst.msk [vmem:[%s387 + $0x198] sm:$0xff] %vm3218, %v2937
      %3271 = vst.msk [vmem:[%s387 + $0x1a0] sm:$0xff] %vm3218, %v2939
      %3272 = vst.msk [vmem:[%s387 + $0x1a8] sm:$0xff] %vm3218, %v2941
      %3273 = vst.msk [vmem:[%s387 + $0x1b0] sm:$0xff] %vm3218, %v2943
      %3274 = vst.msk [vmem:[%s387 + $0x1b8] sm:$0xff] %vm3218, %v2945
      %3275 = vst.msk [vmem:[%s387 + $0x1c0] sm:$0xff] %vm3218, %v2947
      %3276 = vst.msk [vmem:[%s387 + $0x1c8] sm:$0xff] %vm3218, %v2949
      %3277 = vst.msk [vmem:[%s387 + $0x1d0] sm:$0xff] %vm3218, %v2951
      %3278 = vst.msk [vmem:[%s387 + $0x1d8] sm:$0xff] %vm3218, %v2953
      %3279 = vst.msk [vmem:[%s387 + $0x1e0] sm:$0xff] %vm3218, %v2955
      %3280 = vst.msk [vmem:[%s387 + $0x1e8] sm:$0xff] %vm3218, %v2957
      %3281 = vst.msk [vmem:[%s387 + $0x1f0] sm:$0xff] %vm3218, %v2959
      %3282 = vst.msk [vmem:[%s387 + $0x1f8] sm:$0xff] %vm3218, %v2961
      %3283 = vst.msk [vmem:[%s387 + $0x200] sm:$0xff] %vm3218, %v2963
      %3284 = vst.msk [vmem:[%s387 + $0x208] sm:$0xff] %vm3218, %v2965
      %3285 = vst.msk [vmem:[%s387 + $0x210] sm:$0xff] %vm3218, %v2967
      %3286 = vst.msk [vmem:[%s387 + $0x218] sm:$0xff] %vm3218, %v2969
      %3287 = vst.msk [vmem:[%s387 + $0x220] sm:$0xff] %vm3218, %v2971
      %3288 = vst.msk [vmem:[%s387 + $0x228] sm:$0xff] %vm3218, %v2973
      %3289 = vst.msk [vmem:[%s387 + $0x230] sm:$0xff] %vm3218, %v2975
      %3290 = vst.msk [vmem:[%s387 + $0x238] sm:$0xff] %vm3218, %v2977
      %3291 = vst.msk [vmem:[%s387 + $0x240] sm:$0xff] %vm3218, %v2979
      %3292 = vst.msk [vmem:[%s387 + $0x248] sm:$0xff] %vm3218, %v2981
      %3293 = vst.msk [vmem:[%s387 + $0x250] sm:$0xff] %vm3218, %v2983
      %3294 = vst.msk [vmem:[%s387 + $0x258] sm:$0xff] %vm3218, %v2985
      %3295 = vst.msk [vmem:[%s387 + $0x260] sm:$0xff] %vm3218, %v2987
      %3296 = vst.msk [vmem:[%s387 + $0x268] sm:$0xff] %vm3218, %v2989
      %3297 = vst.msk [vmem:[%s387 + $0x270] sm:$0xff] %vm3218, %v2991
      %3298 = vst.msk [vmem:[%s387 + $0x278] sm:$0xff] %vm3218, %v2993
      %3299 = vst.msk [vmem:[%s387 + $0x280] sm:$0xff] %vm3218, %v2995
      %3300 = vst.msk [vmem:[%s387 + $0x288] sm:$0xff] %vm3218, %v2997
      %3301 = vst.msk [vmem:[%s387 + $0x290] sm:$0xff] %vm3218, %v2999
      %3302 = vst.msk [vmem:[%s387 + $0x298] sm:$0xff] %vm3218, %v3001
      %3303 = vst.msk [vmem:[%s387 + $0x2a0] sm:$0xff] %vm3218, %v3003
      %3304 = vst.msk [vmem:[%s387 + $0x2a8] sm:$0xff] %vm3218, %v3005
      %3305 = vst.msk [vmem:[%s387 + $0x2b0] sm:$0xff] %vm3218, %v3007
      %3306 = vst.msk [vmem:[%s387 + $0x2b8] sm:$0xff] %vm3218, %v3009
      %3307 = vst.msk [vmem:[%s387 + $0x2c0] sm:$0xff] %vm3218, %v3011
      %3308 = vst.msk [vmem:[%s387 + $0x2c8] sm:$0xff] %vm3218, %v3013
      %3309 = vst.msk [vmem:[%s387 + $0x2d0] sm:$0xff] %vm3218, %v3015
      %3310 = vst.msk [vmem:[%s387 + $0x2d8] sm:$0xff] %vm3218, %v3017
      %3311 = vst.msk [vmem:[%s387 + $0x2e0] sm:$0xff] %vm3218, %v3019
      %3312 = vst.msk [vmem:[%s387 + $0x2e8] sm:$0xff] %vm3218, %v3021
      %3313 = vst.msk [vmem:[%s387 + $0x2f0] sm:$0xff] %vm3218, %v3023
      %3314 = vst.msk [vmem:[%s387 + $0x2f8] sm:$0xff] %vm3218, %v3025
      %3315 = vst.msk [vmem:[%s387 + $0x300] sm:$0xff] %vm3218, %v3027
      %3316 = vst.msk [vmem:[%s387 + $0x308] sm:$0xff] %vm3218, %v3029
      %3317 = vst.msk [vmem:[%s387 + $0x310] sm:$0xff] %vm3218, %v3031
      %3318 = vst.msk [vmem:[%s387 + $0x318] sm:$0xff] %vm3218, %v3033
      %3319 = vst.msk [vmem:[%s387 + $0x320] sm:$0xff] %vm3218, %v3035
      %3320 = vst.msk [vmem:[%s387 + $0x328] sm:$0xff] %vm3218, %v3037
      %3321 = vst.msk [vmem:[%s387 + $0x330] sm:$0xff] %vm3218, %v3039
      %3322 = vst.msk [vmem:[%s387 + $0x338] sm:$0xff] %vm3218, %v3041
      %3323 = vst.msk [vmem:[%s387 + $0x340] sm:$0xff] %vm3218, %v3043
      %3324 = vst.msk [vmem:[%s387 + $0x348] sm:$0xff] %vm3218, %v3045
      %3325 = vst.msk [vmem:[%s387 + $0x350] sm:$0xff] %vm3218, %v3047
      %3326 = vst.msk [vmem:[%s387 + $0x358] sm:$0xff] %vm3218, %v3049
      %3327 = vst.msk [vmem:[%s387 + $0x360] sm:$0xff] %vm3218, %v3051
      %3328 = vst.msk [vmem:[%s387 + $0x368] sm:$0xff] %vm3218, %v3053
      %3329 = vst.msk [vmem:[%s387 + $0x370] sm:$0xff] %vm3218, %v3055
      %3330 = vst.msk [vmem:[%s387 + $0x378] sm:$0xff] %vm3218, %v3057
      %3331 = vst.msk [vmem:[%s387 + $0x380] sm:$0xff] %vm3218, %v3059
      %3332 = vst.msk [vmem:[%s387 + $0x388] sm:$0xff] %vm3218, %v3061
      %3333 = vst.msk [vmem:[%s387 + $0x390] sm:$0xff] %vm3218, %v3063
      %3334 = vst.msk [vmem:[%s387 + $0x398] sm:$0xff] %vm3218, %v3065
      %3335 = vst.msk [vmem:[%s387 + $0x3a0] sm:$0xff] %vm3218, %v3067
      %3336 = vst.msk [vmem:[%s387 + $0x3a8] sm:$0xff] %vm3218, %v3069
      %3337 = vst.msk [vmem:[%s387 + $0x3b0] sm:$0xff] %vm3218, %v3071
      %3338 = vst.msk [vmem:[%s387 + $0x3b8] sm:$0xff] %vm3218, %v3073
      %3339 = vst.msk [vmem:[%s387 + $0x3c0] sm:$0xff] %vm3218, %v3075
      %3340 = vst.msk [vmem:[%s387 + $0x3c8] sm:$0xff] %vm3218, %v3077
      %3341 = vst.msk [vmem:[%s387 + $0x3d0] sm:$0xff] %vm3218, %v3079
      %3342 = vst.msk [vmem:[%s387 + $0x3d8] sm:$0xff] %vm3218, %v3081
      %3343 = vst.msk [vmem:[%s387 + $0x3e0] sm:$0xff] %vm3218, %v3083
      %3344 = vst.msk [vmem:[%s387 + $0x3e8] sm:$0xff] %vm3218, %v3085
      %3345 = vst.msk [vmem:[%s387 + $0x3f0] sm:$0xff] %vm3218, %v3087
      %3346 = vst.msk [vmem:[%s387 + $0x3f8] sm:$0xff] %vm3218, %v3089
      %3347 = vrot.lane.b32.xlu0 %v401, 111
      %v3348 = vpop.permute.xlu0 %3347
      %3349 = vrot.lane.b32.xlu0 %v402, 111
      %v3350 = vpop.permute.xlu0 %3349
      %3351 = vrot.lane.b32.xlu0 %v403, 111
      %v3352 = vpop.permute.xlu0 %3351
      %3353 = vrot.lane.b32.xlu0 %v404, 111
      %v3354 = vpop.permute.xlu0 %3353
      %3355 = vrot.lane.b32.xlu0 %v405, 111
      %v3356 = vpop.permute.xlu0 %3355
      %3357 = vrot.lane.b32.xlu0 %v406, 111
      %v3358 = vpop.permute.xlu0 %3357
      %3359 = vrot.lane.b32.xlu0 %v407, 111
      %v3360 = vpop.permute.xlu0 %3359
      %3361 = vrot.lane.b32.xlu0 %v408, 111
      %v3362 = vpop.permute.xlu0 %3361
      %3363 = vrot.lane.b32.xlu0 %v409, 111
      %v3364 = vpop.permute.xlu0 %3363
      %3365 = vrot.lane.b32.xlu0 %v410, 111
      %v3366 = vpop.permute.xlu0 %3365
      %3367 = vrot.lane.b32.xlu0 %v411, 111
      %v3368 = vpop.permute.xlu0 %3367
      %3369 = vrot.lane.b32.xlu0 %v412, 111
      %v3370 = vpop.permute.xlu0 %3369
      %3371 = vrot.lane.b32.xlu0 %v413, 111
      %v3372 = vpop.permute.xlu0 %3371
      %3373 = vrot.lane.b32.xlu0 %v414, 111
      %v3374 = vpop.permute.xlu0 %3373
      %3375 = vrot.lane.b32.xlu0 %v415, 111
      %v3376 = vpop.permute.xlu0 %3375
      %3377 = vrot.lane.b32.xlu0 %v416, 111
      %v3378 = vpop.permute.xlu0 %3377
      %3379 = vrot.lane.b32.xlu0 %v417, 111
      %v3380 = vpop.permute.xlu0 %3379
      %3381 = vrot.lane.b32.xlu0 %v418, 111
      %v3382 = vpop.permute.xlu0 %3381
      %3383 = vrot.lane.b32.xlu0 %v419, 111
      %v3384 = vpop.permute.xlu0 %3383
      %3385 = vrot.lane.b32.xlu0 %v420, 111
      %v3386 = vpop.permute.xlu0 %3385
      %3387 = vrot.lane.b32.xlu0 %v421, 111
      %v3388 = vpop.permute.xlu0 %3387
      %3389 = vrot.lane.b32.xlu0 %v422, 111
      %v3390 = vpop.permute.xlu0 %3389
      %3391 = vrot.lane.b32.xlu0 %v423, 111
      %v3392 = vpop.permute.xlu0 %3391
      %3393 = vrot.lane.b32.xlu0 %v424, 111
      %v3394 = vpop.permute.xlu0 %3393
      %3395 = vrot.lane.b32.xlu0 %v425, 111
      %v3396 = vpop.permute.xlu0 %3395
      %3397 = vrot.lane.b32.xlu0 %v426, 111
      %v3398 = vpop.permute.xlu0 %3397
      %3399 = vrot.lane.b32.xlu0 %v427, 111
      %v3400 = vpop.permute.xlu0 %3399
      %3401 = vrot.lane.b32.xlu0 %v428, 111
      %v3402 = vpop.permute.xlu0 %3401
      %3403 = vrot.lane.b32.xlu0 %v429, 111
      %v3404 = vpop.permute.xlu0 %3403
      %3405 = vrot.lane.b32.xlu0 %v430, 111
      %v3406 = vpop.permute.xlu0 %3405
      %3407 = vrot.lane.b32.xlu0 %v431, 111
      %v3408 = vpop.permute.xlu0 %3407
      %3409 = vrot.lane.b32.xlu0 %v432, 111
      %v3410 = vpop.permute.xlu0 %3409
      %3411 = vrot.lane.b32.xlu0 %v433, 111
      %v3412 = vpop.permute.xlu0 %3411
      %3413 = vrot.lane.b32.xlu0 %v434, 111
      %v3414 = vpop.permute.xlu0 %3413
      %3415 = vrot.lane.b32.xlu0 %v435, 111
      %v3416 = vpop.permute.xlu0 %3415
      %3417 = vrot.lane.b32.xlu0 %v436, 111
      %v3418 = vpop.permute.xlu0 %3417
      %3419 = vrot.lane.b32.xlu0 %v437, 111
      %v3420 = vpop.permute.xlu0 %3419
      %3421 = vrot.lane.b32.xlu0 %v438, 111
      %v3422 = vpop.permute.xlu0 %3421
      %3423 = vrot.lane.b32.xlu0 %v439, 111
      %v3424 = vpop.permute.xlu0 %3423
      %3425 = vrot.lane.b32.xlu0 %v440, 111
      %v3426 = vpop.permute.xlu0 %3425
      %3427 = vrot.lane.b32.xlu0 %v441, 111
      %v3428 = vpop.permute.xlu0 %3427
      %3429 = vrot.lane.b32.xlu0 %v442, 111
      %v3430 = vpop.permute.xlu0 %3429
      %3431 = vrot.lane.b32.xlu0 %v443, 111
      %v3432 = vpop.permute.xlu0 %3431
      %3433 = vrot.lane.b32.xlu0 %v444, 111
      %v3434 = vpop.permute.xlu0 %3433
      %3435 = vrot.lane.b32.xlu0 %v445, 111
      %v3436 = vpop.permute.xlu0 %3435
      %3437 = vrot.lane.b32.xlu0 %v446, 111
      %v3438 = vpop.permute.xlu0 %3437
      %3439 = vrot.lane.b32.xlu0 %v447, 111
      %v3440 = vpop.permute.xlu0 %3439
      %3441 = vrot.lane.b32.xlu0 %v448, 111
      %v3442 = vpop.permute.xlu0 %3441
      %3443 = vrot.lane.b32.xlu0 %v449, 111
      %v3444 = vpop.permute.xlu0 %3443
      %3445 = vrot.lane.b32.xlu0 %v450, 111
      %v3446 = vpop.permute.xlu0 %3445
      %3447 = vrot.lane.b32.xlu0 %v451, 111
      %v3448 = vpop.permute.xlu0 %3447
      %3449 = vrot.lane.b32.xlu0 %v452, 111
      %v3450 = vpop.permute.xlu0 %3449
      %3451 = vrot.lane.b32.xlu0 %v453, 111
      %v3452 = vpop.permute.xlu0 %3451
      %3453 = vrot.lane.b32.xlu0 %v454, 111
      %v3454 = vpop.permute.xlu0 %3453
      %3455 = vrot.lane.b32.xlu0 %v455, 111
      %v3456 = vpop.permute.xlu0 %3455
      %3457 = vrot.lane.b32.xlu0 %v456, 111
      %v3458 = vpop.permute.xlu0 %3457
      %3459 = vrot.lane.b32.xlu0 %v457, 111
      %v3460 = vpop.permute.xlu0 %3459
      %3461 = vrot.lane.b32.xlu0 %v458, 111
      %v3462 = vpop.permute.xlu0 %3461
      %3463 = vrot.lane.b32.xlu0 %v459, 111
      %v3464 = vpop.permute.xlu0 %3463
      %3465 = vrot.lane.b32.xlu0 %v460, 111
      %v3466 = vpop.permute.xlu0 %3465
      %3467 = vrot.lane.b32.xlu0 %v461, 111
      %v3468 = vpop.permute.xlu0 %3467
      %3469 = vrot.lane.b32.xlu0 %v462, 111
      %v3470 = vpop.permute.xlu0 %3469
      %3471 = vrot.lane.b32.xlu0 %v463, 111
      %v3472 = vpop.permute.xlu0 %3471
      %3473 = vrot.lane.b32.xlu0 %v464, 111
      %v3474 = vpop.permute.xlu0 %3473
      %3475 = vrot.lane.b32.xlu0 %v465, 111
      %v3476 = vpop.permute.xlu0 %3475
      %3477 = vrot.lane.b32.xlu0 %v466, 111
      %v3478 = vpop.permute.xlu0 %3477
      %3479 = vrot.lane.b32.xlu0 %v467, 111
      %v3480 = vpop.permute.xlu0 %3479
      %3481 = vrot.lane.b32.xlu0 %v468, 111
      %v3482 = vpop.permute.xlu0 %3481
      %3483 = vrot.lane.b32.xlu0 %v469, 111
      %v3484 = vpop.permute.xlu0 %3483
      %3485 = vrot.lane.b32.xlu0 %v470, 111
      %v3486 = vpop.permute.xlu0 %3485
      %3487 = vrot.lane.b32.xlu0 %v471, 111
      %v3488 = vpop.permute.xlu0 %3487
      %3489 = vrot.lane.b32.xlu0 %v472, 111
      %v3490 = vpop.permute.xlu0 %3489
      %3491 = vrot.lane.b32.xlu0 %v473, 111
      %v3492 = vpop.permute.xlu0 %3491
      %3493 = vrot.lane.b32.xlu0 %v474, 111
      %v3494 = vpop.permute.xlu0 %3493
      %3495 = vrot.lane.b32.xlu0 %v475, 111
      %v3496 = vpop.permute.xlu0 %3495
      %3497 = vrot.lane.b32.xlu0 %v476, 111
      %v3498 = vpop.permute.xlu0 %3497
      %3499 = vrot.lane.b32.xlu0 %v477, 111
      %v3500 = vpop.permute.xlu0 %3499
      %3501 = vrot.lane.b32.xlu0 %v478, 111
      %v3502 = vpop.permute.xlu0 %3501
      %3503 = vrot.lane.b32.xlu0 %v479, 111
      %v3504 = vpop.permute.xlu0 %3503
      %3505 = vrot.lane.b32.xlu0 %v480, 111
      %v3506 = vpop.permute.xlu0 %3505
      %3507 = vrot.lane.b32.xlu0 %v481, 111
      %v3508 = vpop.permute.xlu0 %3507
      %3509 = vrot.lane.b32.xlu0 %v482, 111
      %v3510 = vpop.permute.xlu0 %3509
      %3511 = vrot.lane.b32.xlu0 %v483, 111
      %v3512 = vpop.permute.xlu0 %3511
      %3513 = vrot.lane.b32.xlu0 %v484, 111
      %v3514 = vpop.permute.xlu0 %3513
      %3515 = vrot.lane.b32.xlu0 %v485, 111
      %v3516 = vpop.permute.xlu0 %3515
      %3517 = vrot.lane.b32.xlu0 %v486, 111
      %v3518 = vpop.permute.xlu0 %3517
      %3519 = vrot.lane.b32.xlu0 %v487, 111
      %v3520 = vpop.permute.xlu0 %3519
      %3521 = vrot.lane.b32.xlu0 %v488, 111
      %v3522 = vpop.permute.xlu0 %3521
      %3523 = vrot.lane.b32.xlu0 %v489, 111
      %v3524 = vpop.permute.xlu0 %3523
      %3525 = vrot.lane.b32.xlu0 %v490, 111
      %v3526 = vpop.permute.xlu0 %3525
      %3527 = vrot.lane.b32.xlu0 %v491, 111
      %v3528 = vpop.permute.xlu0 %3527
      %3529 = vrot.lane.b32.xlu0 %v492, 111
      %v3530 = vpop.permute.xlu0 %3529
      %3531 = vrot.lane.b32.xlu0 %v493, 111
      %v3532 = vpop.permute.xlu0 %3531
      %3533 = vrot.lane.b32.xlu0 %v494, 111
      %v3534 = vpop.permute.xlu0 %3533
      %3535 = vrot.lane.b32.xlu0 %v495, 111
      %v3536 = vpop.permute.xlu0 %3535
      %3537 = vrot.lane.b32.xlu0 %v496, 111
      %v3538 = vpop.permute.xlu0 %3537
      %3539 = vrot.lane.b32.xlu0 %v497, 111
      %v3540 = vpop.permute.xlu0 %3539
      %3541 = vrot.lane.b32.xlu0 %v498, 111
      %v3542 = vpop.permute.xlu0 %3541
      %3543 = vrot.lane.b32.xlu0 %v499, 111
      %v3544 = vpop.permute.xlu0 %3543
      %3545 = vrot.lane.b32.xlu0 %v500, 111
      %v3546 = vpop.permute.xlu0 %3545
      %3547 = vrot.lane.b32.xlu0 %v501, 111
      %v3548 = vpop.permute.xlu0 %3547
      %3549 = vrot.lane.b32.xlu0 %v502, 111
      %v3550 = vpop.permute.xlu0 %3549
      %3551 = vrot.lane.b32.xlu0 %v503, 111
      %v3552 = vpop.permute.xlu0 %3551
      %3553 = vrot.lane.b32.xlu0 %v504, 111
      %v3554 = vpop.permute.xlu0 %3553
      %3555 = vrot.lane.b32.xlu0 %v505, 111
      %v3556 = vpop.permute.xlu0 %3555
      %3557 = vrot.lane.b32.xlu0 %v506, 111
      %v3558 = vpop.permute.xlu0 %3557
      %3559 = vrot.lane.b32.xlu0 %v507, 111
      %v3560 = vpop.permute.xlu0 %3559
      %3561 = vrot.lane.b32.xlu0 %v508, 111
      %v3562 = vpop.permute.xlu0 %3561
      %3563 = vrot.lane.b32.xlu0 %v509, 111
      %v3564 = vpop.permute.xlu0 %3563
      %3565 = vrot.lane.b32.xlu0 %v510, 111
      %v3566 = vpop.permute.xlu0 %3565
      %3567 = vrot.lane.b32.xlu0 %v511, 111
      %v3568 = vpop.permute.xlu0 %3567
      %3569 = vrot.lane.b32.xlu0 %v512, 111
      %v3570 = vpop.permute.xlu0 %3569
      %3571 = vrot.lane.b32.xlu0 %v513, 111
      %v3572 = vpop.permute.xlu0 %3571
      %3573 = vrot.lane.b32.xlu0 %v514, 111
      %v3574 = vpop.permute.xlu0 %3573
      %3575 = vrot.lane.b32.xlu0 %v515, 111
      %v3576 = vpop.permute.xlu0 %3575
      %3577 = vrot.lane.b32.xlu0 %v516, 111
      %v3578 = vpop.permute.xlu0 %3577
      %3579 = vrot.lane.b32.xlu0 %v517, 111
      %v3580 = vpop.permute.xlu0 %3579
      %3581 = vrot.lane.b32.xlu0 %v518, 111
      %v3582 = vpop.permute.xlu0 %3581
      %3583 = vrot.lane.b32.xlu0 %v519, 111
      %v3584 = vpop.permute.xlu0 %3583
      %3585 = vrot.lane.b32.xlu0 %v520, 111
      %v3586 = vpop.permute.xlu0 %3585
      %3587 = vrot.lane.b32.xlu0 %v521, 111
      %v3588 = vpop.permute.xlu0 %3587
      %3589 = vrot.lane.b32.xlu0 %v522, 111
      %v3590 = vpop.permute.xlu0 %3589
      %3591 = vrot.lane.b32.xlu0 %v523, 111
      %v3592 = vpop.permute.xlu0 %3591
      %3593 = vrot.lane.b32.xlu0 %v524, 111
      %v3594 = vpop.permute.xlu0 %3593
      %3595 = vrot.lane.b32.xlu0 %v525, 111
      %v3596 = vpop.permute.xlu0 %3595
      %3597 = vrot.lane.b32.xlu0 %v526, 111
      %v3598 = vpop.permute.xlu0 %3597
      %3599 = vrot.lane.b32.xlu0 %v527, 111
      %v3600 = vpop.permute.xlu0 %3599
      %3601 = vrot.lane.b32.xlu0 %v528, 111
      %v3602 = vpop.permute.xlu0 %3601
      %3731 = vst.msk [vmem:[%s393] sm:$0xff] %vm3218, %v3348
      %3732 = vst.msk [vmem:[%s393 + $0x8] sm:$0xff] %vm3218, %v3350
      %3733 = vst.msk [vmem:[%s393 + $0x10] sm:$0xff] %vm3218, %v3352
      %3734 = vst.msk [vmem:[%s393 + $0x18] sm:$0xff] %vm3218, %v3354
      %3735 = vst.msk [vmem:[%s393 + $0x20] sm:$0xff] %vm3218, %v3356
      %3736 = vst.msk [vmem:[%s393 + $0x28] sm:$0xff] %vm3218, %v3358
      %3737 = vst.msk [vmem:[%s393 + $0x30] sm:$0xff] %vm3218, %v3360
      %3738 = vst.msk [vmem:[%s393 + $0x38] sm:$0xff] %vm3218, %v3362
      %3739 = vst.msk [vmem:[%s393 + $0x40] sm:$0xff] %vm3218, %v3364
      %3740 = vst.msk [vmem:[%s393 + $0x48] sm:$0xff] %vm3218, %v3366
      %3741 = vst.msk [vmem:[%s393 + $0x50] sm:$0xff] %vm3218, %v3368
      %3742 = vst.msk [vmem:[%s393 + $0x58] sm:$0xff] %vm3218, %v3370
      %3743 = vst.msk [vmem:[%s393 + $0x60] sm:$0xff] %vm3218, %v3372
      %3744 = vst.msk [vmem:[%s393 + $0x68] sm:$0xff] %vm3218, %v3374
      %3745 = vst.msk [vmem:[%s393 + $0x70] sm:$0xff] %vm3218, %v3376
      %3746 = vst.msk [vmem:[%s393 + $0x78] sm:$0xff] %vm3218, %v3378
      %3747 = vst.msk [vmem:[%s393 + $0x80] sm:$0xff] %vm3218, %v3380
      %3748 = vst.msk [vmem:[%s393 + $0x88] sm:$0xff] %vm3218, %v3382
      %3749 = vst.msk [vmem:[%s393 + $0x90] sm:$0xff] %vm3218, %v3384
      %3750 = vst.msk [vmem:[%s393 + $0x98] sm:$0xff] %vm3218, %v3386
      %3751 = vst.msk [vmem:[%s393 + $0xa0] sm:$0xff] %vm3218, %v3388
      %3752 = vst.msk [vmem:[%s393 + $0xa8] sm:$0xff] %vm3218, %v3390
      %3753 = vst.msk [vmem:[%s393 + $0xb0] sm:$0xff] %vm3218, %v3392
      %3754 = vst.msk [vmem:[%s393 + $0xb8] sm:$0xff] %vm3218, %v3394
      %3755 = vst.msk [vmem:[%s393 + $0xc0] sm:$0xff] %vm3218, %v3396
      %3756 = vst.msk [vmem:[%s393 + $0xc8] sm:$0xff] %vm3218, %v3398
      %3757 = vst.msk [vmem:[%s393 + $0xd0] sm:$0xff] %vm3218, %v3400
      %3758 = vst.msk [vmem:[%s393 + $0xd8] sm:$0xff] %vm3218, %v3402
      %3759 = vst.msk [vmem:[%s393 + $0xe0] sm:$0xff] %vm3218, %v3404
      %3760 = vst.msk [vmem:[%s393 + $0xe8] sm:$0xff] %vm3218, %v3406
      %3761 = vst.msk [vmem:[%s393 + $0xf0] sm:$0xff] %vm3218, %v3408
      %3762 = vst.msk [vmem:[%s393 + $0xf8] sm:$0xff] %vm3218, %v3410
      %3763 = vst.msk [vmem:[%s393 + $0x100] sm:$0xff] %vm3218, %v3412
      %3764 = vst.msk [vmem:[%s393 + $0x108] sm:$0xff] %vm3218, %v3414
      %3765 = vst.msk [vmem:[%s393 + $0x110] sm:$0xff] %vm3218, %v3416
      %3766 = vst.msk [vmem:[%s393 + $0x118] sm:$0xff] %vm3218, %v3418
      %3767 = vst.msk [vmem:[%s393 + $0x120] sm:$0xff] %vm3218, %v3420
      %3768 = vst.msk [vmem:[%s393 + $0x128] sm:$0xff] %vm3218, %v3422
      %3769 = vst.msk [vmem:[%s393 + $0x130] sm:$0xff] %vm3218, %v3424
      %3770 = vst.msk [vmem:[%s393 + $0x138] sm:$0xff] %vm3218, %v3426
      %3771 = vst.msk [vmem:[%s393 + $0x140] sm:$0xff] %vm3218, %v3428
      %3772 = vst.msk [vmem:[%s393 + $0x148] sm:$0xff] %vm3218, %v3430
      %3773 = vst.msk [vmem:[%s393 + $0x150] sm:$0xff] %vm3218, %v3432
      %3774 = vst.msk [vmem:[%s393 + $0x158] sm:$0xff] %vm3218, %v3434
      %3775 = vst.msk [vmem:[%s393 + $0x160] sm:$0xff] %vm3218, %v3436
      %3776 = vst.msk [vmem:[%s393 + $0x168] sm:$0xff] %vm3218, %v3438
      %3777 = vst.msk [vmem:[%s393 + $0x170] sm:$0xff] %vm3218, %v3440
      %3778 = vst.msk [vmem:[%s393 + $0x178] sm:$0xff] %vm3218, %v3442
      %3779 = vst.msk [vmem:[%s393 + $0x180] sm:$0xff] %vm3218, %v3444
      %3780 = vst.msk [vmem:[%s393 + $0x188] sm:$0xff] %vm3218, %v3446
      %3781 = vst.msk [vmem:[%s393 + $0x190] sm:$0xff] %vm3218, %v3448
      %3782 = vst.msk [vmem:[%s393 + $0x198] sm:$0xff] %vm3218, %v3450
      %3783 = vst.msk [vmem:[%s393 + $0x1a0] sm:$0xff] %vm3218, %v3452
      %3784 = vst.msk [vmem:[%s393 + $0x1a8] sm:$0xff] %vm3218, %v3454
      %3785 = vst.msk [vmem:[%s393 + $0x1b0] sm:$0xff] %vm3218, %v3456
      %3786 = vst.msk [vmem:[%s393 + $0x1b8] sm:$0xff] %vm3218, %v3458
      %3787 = vst.msk [vmem:[%s393 + $0x1c0] sm:$0xff] %vm3218, %v3460
      %3788 = vst.msk [vmem:[%s393 + $0x1c8] sm:$0xff] %vm3218, %v3462
      %3789 = vst.msk [vmem:[%s393 + $0x1d0] sm:$0xff] %vm3218, %v3464
      %3790 = vst.msk [vmem:[%s393 + $0x1d8] sm:$0xff] %vm3218, %v3466
      %3791 = vst.msk [vmem:[%s393 + $0x1e0] sm:$0xff] %vm3218, %v3468
      %3792 = vst.msk [vmem:[%s393 + $0x1e8] sm:$0xff] %vm3218, %v3470
      %3793 = vst.msk [vmem:[%s393 + $0x1f0] sm:$0xff] %vm3218, %v3472
      %3794 = vst.msk [vmem:[%s393 + $0x1f8] sm:$0xff] %vm3218, %v3474
      %3795 = vst.msk [vmem:[%s393 + $0x200] sm:$0xff] %vm3218, %v3476
      %3796 = vst.msk [vmem:[%s393 + $0x208] sm:$0xff] %vm3218, %v3478
      %3797 = vst.msk [vmem:[%s393 + $0x210] sm:$0xff] %vm3218, %v3480
      %3798 = vst.msk [vmem:[%s393 + $0x218] sm:$0xff] %vm3218, %v3482
      %3799 = vst.msk [vmem:[%s393 + $0x220] sm:$0xff] %vm3218, %v3484
      %3800 = vst.msk [vmem:[%s393 + $0x228] sm:$0xff] %vm3218, %v3486
      %3801 = vst.msk [vmem:[%s393 + $0x230] sm:$0xff] %vm3218, %v3488
      %3802 = vst.msk [vmem:[%s393 + $0x238] sm:$0xff] %vm3218, %v3490
      %3803 = vst.msk [vmem:[%s393 + $0x240] sm:$0xff] %vm3218, %v3492
      %3804 = vst.msk [vmem:[%s393 + $0x248] sm:$0xff] %vm3218, %v3494
      %3805 = vst.msk [vmem:[%s393 + $0x250] sm:$0xff] %vm3218, %v3496
      %3806 = vst.msk [vmem:[%s393 + $0x258] sm:$0xff] %vm3218, %v3498
      %3807 = vst.msk [vmem:[%s393 + $0x260] sm:$0xff] %vm3218, %v3500
      %3808 = vst.msk [vmem:[%s393 + $0x268] sm:$0xff] %vm3218, %v3502
      %3809 = vst.msk [vmem:[%s393 + $0x270] sm:$0xff] %vm3218, %v3504
      %3810 = vst.msk [vmem:[%s393 + $0x278] sm:$0xff] %vm3218, %v3506
      %3811 = vst.msk [vmem:[%s393 + $0x280] sm:$0xff] %vm3218, %v3508
      %3812 = vst.msk [vmem:[%s393 + $0x288] sm:$0xff] %vm3218, %v3510
      %3813 = vst.msk [vmem:[%s393 + $0x290] sm:$0xff] %vm3218, %v3512
      %3814 = vst.msk [vmem:[%s393 + $0x298] sm:$0xff] %vm3218, %v3514
      %3815 = vst.msk [vmem:[%s393 + $0x2a0] sm:$0xff] %vm3218, %v3516
      %3816 = vst.msk [vmem:[%s393 + $0x2a8] sm:$0xff] %vm3218, %v3518
      %3817 = vst.msk [vmem:[%s393 + $0x2b0] sm:$0xff] %vm3218, %v3520
      %3818 = vst.msk [vmem:[%s393 + $0x2b8] sm:$0xff] %vm3218, %v3522
      %3819 = vst.msk [vmem:[%s393 + $0x2c0] sm:$0xff] %vm3218, %v3524
      %3820 = vst.msk [vmem:[%s393 + $0x2c8] sm:$0xff] %vm3218, %v3526
      %3821 = vst.msk [vmem:[%s393 + $0x2d0] sm:$0xff] %vm3218, %v3528
      %3822 = vst.msk [vmem:[%s393 + $0x2d8] sm:$0xff] %vm3218, %v3530
      %3823 = vst.msk [vmem:[%s393 + $0x2e0] sm:$0xff] %vm3218, %v3532
      %3824 = vst.msk [vmem:[%s393 + $0x2e8] sm:$0xff] %vm3218, %v3534
      %3825 = vst.msk [vmem:[%s393 + $0x2f0] sm:$0xff] %vm3218, %v3536
      %3826 = vst.msk [vmem:[%s393 + $0x2f8] sm:$0xff] %vm3218, %v3538
      %3827 = vst.msk [vmem:[%s393 + $0x300] sm:$0xff] %vm3218, %v3540
      %3828 = vst.msk [vmem:[%s393 + $0x308] sm:$0xff] %vm3218, %v3542
      %3829 = vst.msk [vmem:[%s393 + $0x310] sm:$0xff] %vm3218, %v3544
      %3830 = vst.msk [vmem:[%s393 + $0x318] sm:$0xff] %vm3218, %v3546
      %3831 = vst.msk [vmem:[%s393 + $0x320] sm:$0xff] %vm3218, %v3548
      %3832 = vst.msk [vmem:[%s393 + $0x328] sm:$0xff] %vm3218, %v3550
      %3833 = vst.msk [vmem:[%s393 + $0x330] sm:$0xff] %vm3218, %v3552
      %3834 = vst.msk [vmem:[%s393 + $0x338] sm:$0xff] %vm3218, %v3554
      %3835 = vst.msk [vmem:[%s393 + $0x340] sm:$0xff] %vm3218, %v3556
      %3836 = vst.msk [vmem:[%s393 + $0x348] sm:$0xff] %vm3218, %v3558
      %3837 = vst.msk [vmem:[%s393 + $0x350] sm:$0xff] %vm3218, %v3560
      %3838 = vst.msk [vmem:[%s393 + $0x358] sm:$0xff] %vm3218, %v3562
      %3839 = vst.msk [vmem:[%s393 + $0x360] sm:$0xff] %vm3218, %v3564
      %3840 = vst.msk [vmem:[%s393 + $0x368] sm:$0xff] %vm3218, %v3566
      %3841 = vst.msk [vmem:[%s393 + $0x370] sm:$0xff] %vm3218, %v3568
      %3842 = vst.msk [vmem:[%s393 + $0x378] sm:$0xff] %vm3218, %v3570
      %3843 = vst.msk [vmem:[%s393 + $0x380] sm:$0xff] %vm3218, %v3572
      %3844 = vst.msk [vmem:[%s393 + $0x388] sm:$0xff] %vm3218, %v3574
      %3845 = vst.msk [vmem:[%s393 + $0x390] sm:$0xff] %vm3218, %v3576
      %3846 = vst.msk [vmem:[%s393 + $0x398] sm:$0xff] %vm3218, %v3578
      %3847 = vst.msk [vmem:[%s393 + $0x3a0] sm:$0xff] %vm3218, %v3580
      %3848 = vst.msk [vmem:[%s393 + $0x3a8] sm:$0xff] %vm3218, %v3582
      %3849 = vst.msk [vmem:[%s393 + $0x3b0] sm:$0xff] %vm3218, %v3584
      %3850 = vst.msk [vmem:[%s393 + $0x3b8] sm:$0xff] %vm3218, %v3586
      %3851 = vst.msk [vmem:[%s393 + $0x3c0] sm:$0xff] %vm3218, %v3588
      %3852 = vst.msk [vmem:[%s393 + $0x3c8] sm:$0xff] %vm3218, %v3590
      %3853 = vst.msk [vmem:[%s393 + $0x3d0] sm:$0xff] %vm3218, %v3592
      %3854 = vst.msk [vmem:[%s393 + $0x3d8] sm:$0xff] %vm3218, %v3594
      %3855 = vst.msk [vmem:[%s393 + $0x3e0] sm:$0xff] %vm3218, %v3596
      %3856 = vst.msk [vmem:[%s393 + $0x3e8] sm:$0xff] %vm3218, %v3598
      %3857 = vst.msk [vmem:[%s393 + $0x3f0] sm:$0xff] %vm3218, %v3600
      %3858 = vst.msk [vmem:[%s393 + $0x3f8] sm:$0xff] %vm3218, %v3602
      %3859 = vrot.lane.b32.xlu0 %v401, 109
      %v3860 = vpop.permute.xlu0 %3859
      %3861 = vrot.lane.b32.xlu0 %v402, 109
      %v3862 = vpop.permute.xlu0 %3861
      %3863 = vrot.lane.b32.xlu0 %v403, 109
      %v3864 = vpop.permute.xlu0 %3863
      %3865 = vrot.lane.b32.xlu0 %v404, 109
      %v3866 = vpop.permute.xlu0 %3865
      %3867 = vrot.lane.b32.xlu0 %v405, 109
      %v3868 = vpop.permute.xlu0 %3867
      %3869 = vrot.lane.b32.xlu0 %v406, 109
      %v3870 = vpop.permute.xlu0 %3869
      %3871 = vrot.lane.b32.xlu0 %v407, 109
      %v3872 = vpop.permute.xlu0 %3871
      %3873 = vrot.lane.b32.xlu0 %v408, 109
      %v3874 = vpop.permute.xlu0 %3873
      %3875 = vrot.lane.b32.xlu0 %v409, 109
      %v3876 = vpop.permute.xlu0 %3875
      %3877 = vrot.lane.b32.xlu0 %v410, 109
      %v3878 = vpop.permute.xlu0 %3877
      %3879 = vrot.lane.b32.xlu0 %v411, 109
      %v3880 = vpop.permute.xlu0 %3879
      %3881 = vrot.lane.b32.xlu0 %v412, 109
      %v3882 = vpop.permute.xlu0 %3881
      %3883 = vrot.lane.b32.xlu0 %v413, 109
      %v3884 = vpop.permute.xlu0 %3883
      %3885 = vrot.lane.b32.xlu0 %v414, 109
      %v3886 = vpop.permute.xlu0 %3885
      %3887 = vrot.lane.b32.xlu0 %v415, 109
      %v3888 = vpop.permute.xlu0 %3887
      %3889 = vrot.lane.b32.xlu0 %v416, 109
      %v3890 = vpop.permute.xlu0 %3889
      %3891 = vrot.lane.b32.xlu0 %v417, 109
      %v3892 = vpop.permute.xlu0 %3891
      %3893 = vrot.lane.b32.xlu0 %v418, 109
      %v3894 = vpop.permute.xlu0 %3893
      %3895 = vrot.lane.b32.xlu0 %v419, 109
      %v3896 = vpop.permute.xlu0 %3895
      %3897 = vrot.lane.b32.xlu0 %v420, 109
      %v3898 = vpop.permute.xlu0 %3897
      %3899 = vrot.lane.b32.xlu0 %v421, 109
      %v3900 = vpop.permute.xlu0 %3899
      %3901 = vrot.lane.b32.xlu0 %v422, 109
      %v3902 = vpop.permute.xlu0 %3901
      %3903 = vrot.lane.b32.xlu0 %v423, 109
      %v3904 = vpop.permute.xlu0 %3903
      %3905 = vrot.lane.b32.xlu0 %v424, 109
      %v3906 = vpop.permute.xlu0 %3905
      %3907 = vrot.lane.b32.xlu0 %v425, 109
      %v3908 = vpop.permute.xlu0 %3907
      %3909 = vrot.lane.b32.xlu0 %v426, 109
      %v3910 = vpop.permute.xlu0 %3909
      %3911 = vrot.lane.b32.xlu0 %v427, 109
      %v3912 = vpop.permute.xlu0 %3911
      %3913 = vrot.lane.b32.xlu0 %v428, 109
      %v3914 = vpop.permute.xlu0 %3913
      %3915 = vrot.lane.b32.xlu0 %v429, 109
      %v3916 = vpop.permute.xlu0 %3915
      %3917 = vrot.lane.b32.xlu0 %v430, 109
      %v3918 = vpop.permute.xlu0 %3917
      %3919 = vrot.lane.b32.xlu0 %v431, 109
      %v3920 = vpop.permute.xlu0 %3919
      %3921 = vrot.lane.b32.xlu0 %v432, 109
      %v3922 = vpop.permute.xlu0 %3921
      %3923 = vrot.lane.b32.xlu0 %v433, 109
      %v3924 = vpop.permute.xlu0 %3923
      %3925 = vrot.lane.b32.xlu0 %v434, 109
      %v3926 = vpop.permute.xlu0 %3925
      %3927 = vrot.lane.b32.xlu0 %v435, 109
      %v3928 = vpop.permute.xlu0 %3927
      %3929 = vrot.lane.b32.xlu0 %v436, 109
      %v3930 = vpop.permute.xlu0 %3929
      %3931 = vrot.lane.b32.xlu0 %v437, 109
      %v3932 = vpop.permute.xlu0 %3931
      %3933 = vrot.lane.b32.xlu0 %v438, 109
      %v3934 = vpop.permute.xlu0 %3933
      %3935 = vrot.lane.b32.xlu0 %v439, 109
      %v3936 = vpop.permute.xlu0 %3935
      %3937 = vrot.lane.b32.xlu0 %v440, 109
      %v3938 = vpop.permute.xlu0 %3937
      %3939 = vrot.lane.b32.xlu0 %v441, 109
      %v3940 = vpop.permute.xlu0 %3939
      %3941 = vrot.lane.b32.xlu0 %v442, 109
      %v3942 = vpop.permute.xlu0 %3941
      %3943 = vrot.lane.b32.xlu0 %v443, 109
      %v3944 = vpop.permute.xlu0 %3943
      %3945 = vrot.lane.b32.xlu0 %v444, 109
      %v3946 = vpop.permute.xlu0 %3945
      %3947 = vrot.lane.b32.xlu0 %v445, 109
      %v3948 = vpop.permute.xlu0 %3947
      %3949 = vrot.lane.b32.xlu0 %v446, 109
      %v3950 = vpop.permute.xlu0 %3949
      %3951 = vrot.lane.b32.xlu0 %v447, 109
      %v3952 = vpop.permute.xlu0 %3951
      %3953 = vrot.lane.b32.xlu0 %v448, 109
      %v3954 = vpop.permute.xlu0 %3953
      %3955 = vrot.lane.b32.xlu0 %v449, 109
      %v3956 = vpop.permute.xlu0 %3955
      %3957 = vrot.lane.b32.xlu0 %v450, 109
      %v3958 = vpop.permute.xlu0 %3957
      %3959 = vrot.lane.b32.xlu0 %v451, 109
      %v3960 = vpop.permute.xlu0 %3959
      %3961 = vrot.lane.b32.xlu0 %v452, 109
      %v3962 = vpop.permute.xlu0 %3961
      %3963 = vrot.lane.b32.xlu0 %v453, 109
      %v3964 = vpop.permute.xlu0 %3963
      %3965 = vrot.lane.b32.xlu0 %v454, 109
      %v3966 = vpop.permute.xlu0 %3965
      %3967 = vrot.lane.b32.xlu0 %v455, 109
      %v3968 = vpop.permute.xlu0 %3967
      %3969 = vrot.lane.b32.xlu0 %v456, 109
      %v3970 = vpop.permute.xlu0 %3969
      %3971 = vrot.lane.b32.xlu0 %v457, 109
      %v3972 = vpop.permute.xlu0 %3971
      %3973 = vrot.lane.b32.xlu0 %v458, 109
      %v3974 = vpop.permute.xlu0 %3973
      %3975 = vrot.lane.b32.xlu0 %v459, 109
      %v3976 = vpop.permute.xlu0 %3975
      %3977 = vrot.lane.b32.xlu0 %v460, 109
      %v3978 = vpop.permute.xlu0 %3977
      %3979 = vrot.lane.b32.xlu0 %v461, 109
      %v3980 = vpop.permute.xlu0 %3979
      %3981 = vrot.lane.b32.xlu0 %v462, 109
      %v3982 = vpop.permute.xlu0 %3981
      %3983 = vrot.lane.b32.xlu0 %v463, 109
      %v3984 = vpop.permute.xlu0 %3983
      %3985 = vrot.lane.b32.xlu0 %v464, 109
      %v3986 = vpop.permute.xlu0 %3985
      %3987 = vrot.lane.b32.xlu0 %v465, 109
      %v3988 = vpop.permute.xlu0 %3987
      %3989 = vrot.lane.b32.xlu0 %v466, 109
      %v3990 = vpop.permute.xlu0 %3989
      %3991 = vrot.lane.b32.xlu0 %v467, 109
      %v3992 = vpop.permute.xlu0 %3991
      %3993 = vrot.lane.b32.xlu0 %v468, 109
      %v3994 = vpop.permute.xlu0 %3993
      %3995 = vrot.lane.b32.xlu0 %v469, 109
      %v3996 = vpop.permute.xlu0 %3995
      %3997 = vrot.lane.b32.xlu0 %v470, 109
      %v3998 = vpop.permute.xlu0 %3997
      %3999 = vrot.lane.b32.xlu0 %v471, 109
      %v4000 = vpop.permute.xlu0 %3999
      %4001 = vrot.lane.b32.xlu0 %v472, 109
      %v4002 = vpop.permute.xlu0 %4001
      %4003 = vrot.lane.b32.xlu0 %v473, 109
      %v4004 = vpop.permute.xlu0 %4003
      %4005 = vrot.lane.b32.xlu0 %v474, 109
      %v4006 = vpop.permute.xlu0 %4005
      %4007 = vrot.lane.b32.xlu0 %v475, 109
      %v4008 = vpop.permute.xlu0 %4007
      %4009 = vrot.lane.b32.xlu0 %v476, 109
      %v4010 = vpop.permute.xlu0 %4009
      %4011 = vrot.lane.b32.xlu0 %v477, 109
      %v4012 = vpop.permute.xlu0 %4011
      %4013 = vrot.lane.b32.xlu0 %v478, 109
      %v4014 = vpop.permute.xlu0 %4013
      %4015 = vrot.lane.b32.xlu0 %v479, 109
      %v4016 = vpop.permute.xlu0 %4015
      %4017 = vrot.lane.b32.xlu0 %v480, 109
      %v4018 = vpop.permute.xlu0 %4017
      %4019 = vrot.lane.b32.xlu0 %v481, 109
      %v4020 = vpop.permute.xlu0 %4019
      %4021 = vrot.lane.b32.xlu0 %v482, 109
      %v4022 = vpop.permute.xlu0 %4021
      %4023 = vrot.lane.b32.xlu0 %v483, 109
      %v4024 = vpop.permute.xlu0 %4023
      %4025 = vrot.lane.b32.xlu0 %v484, 109
      %v4026 = vpop.permute.xlu0 %4025
      %4027 = vrot.lane.b32.xlu0 %v485, 109
      %v4028 = vpop.permute.xlu0 %4027
      %4029 = vrot.lane.b32.xlu0 %v486, 109
      %v4030 = vpop.permute.xlu0 %4029
      %4031 = vrot.lane.b32.xlu0 %v487, 109
      %v4032 = vpop.permute.xlu0 %4031
      %4033 = vrot.lane.b32.xlu0 %v488, 109
      %v4034 = vpop.permute.xlu0 %4033
      %4035 = vrot.lane.b32.xlu0 %v489, 109
      %v4036 = vpop.permute.xlu0 %4035
      %4037 = vrot.lane.b32.xlu0 %v490, 109
      %v4038 = vpop.permute.xlu0 %4037
      %4039 = vrot.lane.b32.xlu0 %v491, 109
      %v4040 = vpop.permute.xlu0 %4039
      %4041 = vrot.lane.b32.xlu0 %v492, 109
      %v4042 = vpop.permute.xlu0 %4041
      %4043 = vrot.lane.b32.xlu0 %v493, 109
      %v4044 = vpop.permute.xlu0 %4043
      %4045 = vrot.lane.b32.xlu0 %v494, 109
      %v4046 = vpop.permute.xlu0 %4045
      %4047 = vrot.lane.b32.xlu0 %v495, 109
      %v4048 = vpop.permute.xlu0 %4047
      %4049 = vrot.lane.b32.xlu0 %v496, 109
      %v4050 = vpop.permute.xlu0 %4049
      %4051 = vrot.lane.b32.xlu0 %v497, 109
      %v4052 = vpop.permute.xlu0 %4051
      %4053 = vrot.lane.b32.xlu0 %v498, 109
      %v4054 = vpop.permute.xlu0 %4053
      %4055 = vrot.lane.b32.xlu0 %v499, 109
      %v4056 = vpop.permute.xlu0 %4055
      %4057 = vrot.lane.b32.xlu0 %v500, 109
      %v4058 = vpop.permute.xlu0 %4057
      %4059 = vrot.lane.b32.xlu0 %v501, 109
      %v4060 = vpop.permute.xlu0 %4059
      %4061 = vrot.lane.b32.xlu0 %v502, 109
      %v4062 = vpop.permute.xlu0 %4061
      %4063 = vrot.lane.b32.xlu0 %v503, 109
      %v4064 = vpop.permute.xlu0 %4063
      %4065 = vrot.lane.b32.xlu0 %v504, 109
      %v4066 = vpop.permute.xlu0 %4065
      %4067 = vrot.lane.b32.xlu0 %v505, 109
      %v4068 = vpop.permute.xlu0 %4067
      %4069 = vrot.lane.b32.xlu0 %v506, 109
      %v4070 = vpop.permute.xlu0 %4069
      %4071 = vrot.lane.b32.xlu0 %v507, 109
      %v4072 = vpop.permute.xlu0 %4071
      %4073 = vrot.lane.b32.xlu0 %v508, 109
      %v4074 = vpop.permute.xlu0 %4073
      %4075 = vrot.lane.b32.xlu0 %v509, 109
      %v4076 = vpop.permute.xlu0 %4075
      %4077 = vrot.lane.b32.xlu0 %v510, 109
      %v4078 = vpop.permute.xlu0 %4077
      %4079 = vrot.lane.b32.xlu0 %v511, 109
      %v4080 = vpop.permute.xlu0 %4079
      %4081 = vrot.lane.b32.xlu0 %v512, 109
      %v4082 = vpop.permute.xlu0 %4081
      %4083 = vrot.lane.b32.xlu0 %v513, 109
      %v4084 = vpop.permute.xlu0 %4083
      %4085 = vrot.lane.b32.xlu0 %v514, 109
      %v4086 = vpop.permute.xlu0 %4085
      %4087 = vrot.lane.b32.xlu0 %v515, 109
      %v4088 = vpop.permute.xlu0 %4087
      %4089 = vrot.lane.b32.xlu0 %v516, 109
      %v4090 = vpop.permute.xlu0 %4089
      %4091 = vrot.lane.b32.xlu0 %v517, 109
      %v4092 = vpop.permute.xlu0 %4091
      %4093 = vrot.lane.b32.xlu0 %v518, 109
      %v4094 = vpop.permute.xlu0 %4093
      %4095 = vrot.lane.b32.xlu0 %v519, 109
      %v4096 = vpop.permute.xlu0 %4095
      %4097 = vrot.lane.b32.xlu0 %v520, 109
      %v4098 = vpop.permute.xlu0 %4097
      %4099 = vrot.lane.b32.xlu0 %v521, 109
      %v4100 = vpop.permute.xlu0 %4099
      %4101 = vrot.lane.b32.xlu0 %v522, 109
      %v4102 = vpop.permute.xlu0 %4101
      %4103 = vrot.lane.b32.xlu0 %v523, 109
      %v4104 = vpop.permute.xlu0 %4103
      %4105 = vrot.lane.b32.xlu0 %v524, 109
      %v4106 = vpop.permute.xlu0 %4105
      %4107 = vrot.lane.b32.xlu0 %v525, 109
      %v4108 = vpop.permute.xlu0 %4107
      %4109 = vrot.lane.b32.xlu0 %v526, 109
      %v4110 = vpop.permute.xlu0 %4109
      %4111 = vrot.lane.b32.xlu0 %v527, 109
      %v4112 = vpop.permute.xlu0 %4111
      %4113 = vrot.lane.b32.xlu0 %v528, 109
      %v4114 = vpop.permute.xlu0 %4113
      %4243 = vst.msk [vmem:[%s399] sm:$0xff] %vm3218, %v3860
      %4244 = vst.msk [vmem:[%s399 + $0x8] sm:$0xff] %vm3218, %v3862
      %4245 = vst.msk [vmem:[%s399 + $0x10] sm:$0xff] %vm3218, %v3864
      %4246 = vst.msk [vmem:[%s399 + $0x18] sm:$0xff] %vm3218, %v3866
      %4247 = vst.msk [vmem:[%s399 + $0x20] sm:$0xff] %vm3218, %v3868
      %4248 = vst.msk [vmem:[%s399 + $0x28] sm:$0xff] %vm3218, %v3870
      %4249 = vst.msk [vmem:[%s399 + $0x30] sm:$0xff] %vm3218, %v3872
      %4250 = vst.msk [vmem:[%s399 + $0x38] sm:$0xff] %vm3218, %v3874
      %4251 = vst.msk [vmem:[%s399 + $0x40] sm:$0xff] %vm3218, %v3876
      %4252 = vst.msk [vmem:[%s399 + $0x48] sm:$0xff] %vm3218, %v3878
      %4253 = vst.msk [vmem:[%s399 + $0x50] sm:$0xff] %vm3218, %v3880
      %4254 = vst.msk [vmem:[%s399 + $0x58] sm:$0xff] %vm3218, %v3882
      %4255 = vst.msk [vmem:[%s399 + $0x60] sm:$0xff] %vm3218, %v3884
      %4256 = vst.msk [vmem:[%s399 + $0x68] sm:$0xff] %vm3218, %v3886
      %4257 = vst.msk [vmem:[%s399 + $0x70] sm:$0xff] %vm3218, %v3888
      %4258 = vst.msk [vmem:[%s399 + $0x78] sm:$0xff] %vm3218, %v3890
      %4259 = vst.msk [vmem:[%s399 + $0x80] sm:$0xff] %vm3218, %v3892
      %4260 = vst.msk [vmem:[%s399 + $0x88] sm:$0xff] %vm3218, %v3894
      %4261 = vst.msk [vmem:[%s399 + $0x90] sm:$0xff] %vm3218, %v3896
      %4262 = vst.msk [vmem:[%s399 + $0x98] sm:$0xff] %vm3218, %v3898
      %4263 = vst.msk [vmem:[%s399 + $0xa0] sm:$0xff] %vm3218, %v3900
      %4264 = vst.msk [vmem:[%s399 + $0xa8] sm:$0xff] %vm3218, %v3902
      %4265 = vst.msk [vmem:[%s399 + $0xb0] sm:$0xff] %vm3218, %v3904
      %4266 = vst.msk [vmem:[%s399 + $0xb8] sm:$0xff] %vm3218, %v3906
      %4267 = vst.msk [vmem:[%s399 + $0xc0] sm:$0xff] %vm3218, %v3908
      %4268 = vst.msk [vmem:[%s399 + $0xc8] sm:$0xff] %vm3218, %v3910
      %4269 = vst.msk [vmem:[%s399 + $0xd0] sm:$0xff] %vm3218, %v3912
      %4270 = vst.msk [vmem:[%s399 + $0xd8] sm:$0xff] %vm3218, %v3914
      %4271 = vst.msk [vmem:[%s399 + $0xe0] sm:$0xff] %vm3218, %v3916
      %4272 = vst.msk [vmem:[%s399 + $0xe8] sm:$0xff] %vm3218, %v3918
      %4273 = vst.msk [vmem:[%s399 + $0xf0] sm:$0xff] %vm3218, %v3920
      %4274 = vst.msk [vmem:[%s399 + $0xf8] sm:$0xff] %vm3218, %v3922
      %4275 = vst.msk [vmem:[%s399 + $0x100] sm:$0xff] %vm3218, %v3924
      %4276 = vst.msk [vmem:[%s399 + $0x108] sm:$0xff] %vm3218, %v3926
      %4277 = vst.msk [vmem:[%s399 + $0x110] sm:$0xff] %vm3218, %v3928
      %4278 = vst.msk [vmem:[%s399 + $0x118] sm:$0xff] %vm3218, %v3930
      %4279 = vst.msk [vmem:[%s399 + $0x120] sm:$0xff] %vm3218, %v3932
      %4280 = vst.msk [vmem:[%s399 + $0x128] sm:$0xff] %vm3218, %v3934
      %4281 = vst.msk [vmem:[%s399 + $0x130] sm:$0xff] %vm3218, %v3936
      %4282 = vst.msk [vmem:[%s399 + $0x138] sm:$0xff] %vm3218, %v3938
      %4283 = vst.msk [vmem:[%s399 + $0x140] sm:$0xff] %vm3218, %v3940
      %4284 = vst.msk [vmem:[%s399 + $0x148] sm:$0xff] %vm3218, %v3942
      %4285 = vst.msk [vmem:[%s399 + $0x150] sm:$0xff] %vm3218, %v3944
      %4286 = vst.msk [vmem:[%s399 + $0x158] sm:$0xff] %vm3218, %v3946
      %4287 = vst.msk [vmem:[%s399 + $0x160] sm:$0xff] %vm3218, %v3948
      %4288 = vst.msk [vmem:[%s399 + $0x168] sm:$0xff] %vm3218, %v3950
      %4289 = vst.msk [vmem:[%s399 + $0x170] sm:$0xff] %vm3218, %v3952
      %4290 = vst.msk [vmem:[%s399 + $0x178] sm:$0xff] %vm3218, %v3954
      %4291 = vst.msk [vmem:[%s399 + $0x180] sm:$0xff] %vm3218, %v3956
      %4292 = vst.msk [vmem:[%s399 + $0x188] sm:$0xff] %vm3218, %v3958
      %4293 = vst.msk [vmem:[%s399 + $0x190] sm:$0xff] %vm3218, %v3960
      %4294 = vst.msk [vmem:[%s399 + $0x198] sm:$0xff] %vm3218, %v3962
      %4295 = vst.msk [vmem:[%s399 + $0x1a0] sm:$0xff] %vm3218, %v3964
      %4296 = vst.msk [vmem:[%s399 + $0x1a8] sm:$0xff] %vm3218, %v3966
      %4297 = vst.msk [vmem:[%s399 + $0x1b0] sm:$0xff] %vm3218, %v3968
      %4298 = vst.msk [vmem:[%s399 + $0x1b8] sm:$0xff] %vm3218, %v3970
      %4299 = vst.msk [vmem:[%s399 + $0x1c0] sm:$0xff] %vm3218, %v3972
      %4300 = vst.msk [vmem:[%s399 + $0x1c8] sm:$0xff] %vm3218, %v3974
      %4301 = vst.msk [vmem:[%s399 + $0x1d0] sm:$0xff] %vm3218, %v3976
      %4302 = vst.msk [vmem:[%s399 + $0x1d8] sm:$0xff] %vm3218, %v3978
      %4303 = vst.msk [vmem:[%s399 + $0x1e0] sm:$0xff] %vm3218, %v3980
      %4304 = vst.msk [vmem:[%s399 + $0x1e8] sm:$0xff] %vm3218, %v3982
      %4305 = vst.msk [vmem:[%s399 + $0x1f0] sm:$0xff] %vm3218, %v3984
      %4306 = vst.msk [vmem:[%s399 + $0x1f8] sm:$0xff] %vm3218, %v3986
      %4307 = vst.msk [vmem:[%s399 + $0x200] sm:$0xff] %vm3218, %v3988
      %4308 = vst.msk [vmem:[%s399 + $0x208] sm:$0xff] %vm3218, %v3990
      %4309 = vst.msk [vmem:[%s399 + $0x210] sm:$0xff] %vm3218, %v3992
      %4310 = vst.msk [vmem:[%s399 + $0x218] sm:$0xff] %vm3218, %v3994
      %4311 = vst.msk [vmem:[%s399 + $0x220] sm:$0xff] %vm3218, %v3996
      %4312 = vst.msk [vmem:[%s399 + $0x228] sm:$0xff] %vm3218, %v3998
      %4313 = vst.msk [vmem:[%s399 + $0x230] sm:$0xff] %vm3218, %v4000
      %4314 = vst.msk [vmem:[%s399 + $0x238] sm:$0xff] %vm3218, %v4002
      %4315 = vst.msk [vmem:[%s399 + $0x240] sm:$0xff] %vm3218, %v4004
      %4316 = vst.msk [vmem:[%s399 + $0x248] sm:$0xff] %vm3218, %v4006
      %4317 = vst.msk [vmem:[%s399 + $0x250] sm:$0xff] %vm3218, %v4008
      %4318 = vst.msk [vmem:[%s399 + $0x258] sm:$0xff] %vm3218, %v4010
      %4319 = vst.msk [vmem:[%s399 + $0x260] sm:$0xff] %vm3218, %v4012
      %4320 = vst.msk [vmem:[%s399 + $0x268] sm:$0xff] %vm3218, %v4014
      %4321 = vst.msk [vmem:[%s399 + $0x270] sm:$0xff] %vm3218, %v4016
      %4322 = vst.msk [vmem:[%s399 + $0x278] sm:$0xff] %vm3218, %v4018
      %4323 = vst.msk [vmem:[%s399 + $0x280] sm:$0xff] %vm3218, %v4020
      %4324 = vst.msk [vmem:[%s399 + $0x288] sm:$0xff] %vm3218, %v4022
      %4325 = vst.msk [vmem:[%s399 + $0x290] sm:$0xff] %vm3218, %v4024
      %4326 = vst.msk [vmem:[%s399 + $0x298] sm:$0xff] %vm3218, %v4026
      %4327 = vst.msk [vmem:[%s399 + $0x2a0] sm:$0xff] %vm3218, %v4028
      %4328 = vst.msk [vmem:[%s399 + $0x2a8] sm:$0xff] %vm3218, %v4030
      %4329 = vst.msk [vmem:[%s399 + $0x2b0] sm:$0xff] %vm3218, %v4032
      %4330 = vst.msk [vmem:[%s399 + $0x2b8] sm:$0xff] %vm3218, %v4034
      %4331 = vst.msk [vmem:[%s399 + $0x2c0] sm:$0xff] %vm3218, %v4036
      %4332 = vst.msk [vmem:[%s399 + $0x2c8] sm:$0xff] %vm3218, %v4038
      %4333 = vst.msk [vmem:[%s399 + $0x2d0] sm:$0xff] %vm3218, %v4040
      %4334 = vst.msk [vmem:[%s399 + $0x2d8] sm:$0xff] %vm3218, %v4042
      %4335 = vst.msk [vmem:[%s399 + $0x2e0] sm:$0xff] %vm3218, %v4044
      %4336 = vst.msk [vmem:[%s399 + $0x2e8] sm:$0xff] %vm3218, %v4046
      %4337 = vst.msk [vmem:[%s399 + $0x2f0] sm:$0xff] %vm3218, %v4048
      %4338 = vst.msk [vmem:[%s399 + $0x2f8] sm:$0xff] %vm3218, %v4050
      %4339 = vst.msk [vmem:[%s399 + $0x300] sm:$0xff] %vm3218, %v4052
      %4340 = vst.msk [vmem:[%s399 + $0x308] sm:$0xff] %vm3218, %v4054
      %4341 = vst.msk [vmem:[%s399 + $0x310] sm:$0xff] %vm3218, %v4056
      %4342 = vst.msk [vmem:[%s399 + $0x318] sm:$0xff] %vm3218, %v4058
      %4343 = vst.msk [vmem:[%s399 + $0x320] sm:$0xff] %vm3218, %v4060
      %4344 = vst.msk [vmem:[%s399 + $0x328] sm:$0xff] %vm3218, %v4062
      %4345 = vst.msk [vmem:[%s399 + $0x330] sm:$0xff] %vm3218, %v4064
      %4346 = vst.msk [vmem:[%s399 + $0x338] sm:$0xff] %vm3218, %v4066
      %4347 = vst.msk [vmem:[%s399 + $0x340] sm:$0xff] %vm3218, %v4068
      %4348 = vst.msk [vmem:[%s399 + $0x348] sm:$0xff] %vm3218, %v4070
      %4349 = vst.msk [vmem:[%s399 + $0x350] sm:$0xff] %vm3218, %v4072
      %4350 = vst.msk [vmem:[%s399 + $0x358] sm:$0xff] %vm3218, %v4074
      %4351 = vst.msk [vmem:[%s399 + $0x360] sm:$0xff] %vm3218, %v4076
      %4352 = vst.msk [vmem:[%s399 + $0x368] sm:$0xff] %vm3218, %v4078
      %4353 = vst.msk [vmem:[%s399 + $0x370] sm:$0xff] %vm3218, %v4080
      %4354 = vst.msk [vmem:[%s399 + $0x378] sm:$0xff] %vm3218, %v4082
      %4355 = vst.msk [vmem:[%s399 + $0x380] sm:$0xff] %vm3218, %v4084
      %4356 = vst.msk [vmem:[%s399 + $0x388] sm:$0xff] %vm3218, %v4086
      %4357 = vst.msk [vmem:[%s399 + $0x390] sm:$0xff] %vm3218, %v4088
      %4358 = vst.msk [vmem:[%s399 + $0x398] sm:$0xff] %vm3218, %v4090
      %4359 = vst.msk [vmem:[%s399 + $0x3a0] sm:$0xff] %vm3218, %v4092
      %4360 = vst.msk [vmem:[%s399 + $0x3a8] sm:$0xff] %vm3218, %v4094
      %4361 = vst.msk [vmem:[%s399 + $0x3b0] sm:$0xff] %vm3218, %v4096
      %4362 = vst.msk [vmem:[%s399 + $0x3b8] sm:$0xff] %vm3218, %v4098
      %4363 = vst.msk [vmem:[%s399 + $0x3c0] sm:$0xff] %vm3218, %v4100
      %4364 = vst.msk [vmem:[%s399 + $0x3c8] sm:$0xff] %vm3218, %v4102
      %4365 = vst.msk [vmem:[%s399 + $0x3d0] sm:$0xff] %vm3218, %v4104
      %4366 = vst.msk [vmem:[%s399 + $0x3d8] sm:$0xff] %vm3218, %v4106
      %4367 = vst.msk [vmem:[%s399 + $0x3e0] sm:$0xff] %vm3218, %v4108
      %4368 = vst.msk [vmem:[%s399 + $0x3e8] sm:$0xff] %vm3218, %v4110
      %4369 = vst.msk [vmem:[%s399 + $0x3f0] sm:$0xff] %vm3218, %v4112
      %4370 = vst.msk [vmem:[%s399 + $0x3f8] sm:$0xff] %vm3218, %v4114
      %s4371 = smul.u32 128, %s20
      %p4372 = scmp.lt.s32.totalorder %s4371, 255
      %s4373 = scalar_select %p4372, %s4371, 255
      %s4374 = smul.addr %s4373, 8
      %s4375 = scalar_lea.vmem %s1, %s4374
      %s4376 = smul.u32 128, %s20
      %p4377 = scmp.lt.s32.totalorder %s4376, 255
      %s4378 = scalar_select %p4377, %s4376, 255
      %s4379 = smul.addr %s4378, 8
      %s4380 = scalar_lea.vmem %s2, %s4379
      %s4381 = smul.u32 128, %s20
      %p4382 = scmp.lt.s32.totalorder %s4381, 255
      %s4383 = scalar_select %p4382, %s4381, 255
      %s4384 = smul.addr %s4383, 8
      %s4385 = scalar_lea.vmem %s3, %s4384
      %s4386 = smul.u32 128, %s20
      %p4387 = scmp.lt.s32.totalorder %s4386, 255
      %s4388 = scalar_select %p4387, %s4386, 255
      %s4389 = smul.addr %s4388, 8
      %s4390 = scalar_lea.vmem %s4, %s4389
      %s4391 = smul.u32 128, %s20
      %p4392 = scmp.lt.s32.totalorder %s4391, 255
      %s4393 = scalar_select %p4392, %s4391, 255
      %s4394 = smul.addr %s4393, 8
      %s4395 = scalar_lea.vmem %s5, %s4394
      %s4396 = smul.u32 128, %s20
      %p4397 = scmp.lt.s32.totalorder %s4396, 255
      %s4398 = scalar_select %p4397, %s4396, 255
      %s4399 = smul.addr %s4398, 8
      %s4400 = scalar_lea.vmem %s6, %s4399
      %s4401 = smul.u32 128, %s20
      %p4402 = scmp.lt.s32.totalorder %s4401, 255
      %s4403 = scalar_select %p4402, %s4401, 255
      %s4404 = smul.addr %s4403, 8
      %s4405 = scalar_lea.vmem %s7, %s4404
      %s4406 = smul.u32 128, %s20
      %p4407 = scmp.lt.s32.totalorder %s4406, 255
      %s4408 = scalar_select %p4407, %s4406, 255
      %s4409 = smul.addr %s4408, 8
      %s4410 = scalar_lea.vmem %s8, %s4409
      // Predicated region
      $region25: #{tpu_custom_call.1} parent=23 // pred_check
        %p4411 = pneg %p64
      $region26: #{tpu_custom_call.1} parent=23 // pred_check_branch
        %4413 = sbr.rel (%p4411) target = $region28
      $region27: #{tpu_custom_call.1} parent=23 // pred_region
        %s4414 = smul.u32 128, %s20
      $region28: #{tpu_custom_call.1} parent=23 // pred_fallthru
        _
      // Predicated region
      $region29: #{tpu_custom_call.1} parent=23 // pred_check
        %p4415 = pneg %p90
      $region30: #{tpu_custom_call.1} parent=23 // pred_check_branch
        %4417 = sbr.rel (%p4415) target = $region32
      $region31: #{tpu_custom_call.1} parent=23 // pred_region
        %s4418 = smul.u32 128, %s20
      $region32: #{tpu_custom_call.1} parent=23 // pred_fallthru
        _
      // Predicated region
      $region33: #{tpu_custom_call.1} parent=23 // pred_check
        %p4419 = pneg %p116
      $region34: #{tpu_custom_call.1} parent=23 // pred_check_branch
        %4421 = sbr.rel (%p4419) target = $region36
      $region35: #{tpu_custom_call.1} parent=23 // pred_region
        %s4422 = smul.u32 128, %s20
      $region36: #{tpu_custom_call.1} parent=23 // pred_fallthru
        _
      // Predicated region
      $region37: #{tpu_custom_call.1} parent=23 // pred_check
        %p4423 = pneg %p142
      $region38: #{tpu_custom_call.1} parent=23 // pred_check_branch
        %4425 = sbr.rel (%p4423) target = $region40
      $region39: #{tpu_custom_call.1} parent=23 // pred_region
        %s4426 = smul.u32 128, %s20
      $region40: #{tpu_custom_call.1} parent=23 // pred_fallthru
        _
      // Predicated region
      $region41: #{tpu_custom_call.1} parent=23 // pred_check
        %p4427 = pneg %p168
      $region42: #{tpu_custom_call.1} parent=23 // pred_check_branch
        %4429 = sbr.rel (%p4427) target = $region44
      $region43: #{tpu_custom_call.1} parent=23 // pred_region
        %s4430 = smul.u32 128, %s20
      $region44: #{tpu_custom_call.1} parent=23 // pred_fallthru
        _
      // Predicated region
      $region45: #{tpu_custom_call.1} parent=23 // pred_check
        %p4431 = pneg %p194
      $region46: #{tpu_custom_call.1} parent=23 // pred_check_branch
        %4433 = sbr.rel (%p4431) target = $region48
      $region47: #{tpu_custom_call.1} parent=23 // pred_region
        %s4434 = smul.u32 128, %s20
      $region48: #{tpu_custom_call.1} parent=23 // pred_fallthru
        _
      // Predicated region
      $region49: #{tpu_custom_call.1} parent=23 // pred_check
        %p4435 = pneg %p220
      $region50: #{tpu_custom_call.1} parent=23 // pred_check_branch
        %4437 = sbr.rel (%p4435) target = $region52
      $region51: #{tpu_custom_call.1} parent=23 // pred_region
        %s4438 = smul.u32 128, %s20
      $region52: #{tpu_custom_call.1} parent=23 // pred_fallthru
        _
      // Predicated region
      $region53: #{tpu_custom_call.1} parent=23 // pred_check
        %p4439 = pneg %p246
      $region54: #{tpu_custom_call.1} parent=23 // pred_check_branch
        %4441 = sbr.rel (%p4439) target = $region56
      $region55: #{tpu_custom_call.1} parent=23 // pred_region
        %s4442 = smul.u32 128, %s20
      $region56: #{tpu_custom_call.1} parent=23 // pred_fallthru
        _
    $region24: #{tpu_custom_call.1} parent=5 // pred_fallthru
      _
    %p4443 = scmp.le.s32.totalorder 2, %s15
    // Predicated region
    $region57: #{tpu_custom_call.1} parent=5 // pred_check
      %p4444 = pneg %p4443
    $region58: #{tpu_custom_call.1} parent=5 // pred_check_branch
      %4446 = sbr.rel (%p4444) target = $region60
    $region59: #{tpu_custom_call.1} parent=5 // pred_region
      %s4447 = ssub.s32 %s15, 2
      // Predicated region
      $region61: #{tpu_custom_call.1} parent=59 // pred_check
        %p4448 = pneg %p70
      $region62: #{tpu_custom_call.1} parent=59 // pred_check_branch
        %4450 = sbr.rel (%p4448) target = $region64
      $region63: #{tpu_custom_call.1} parent=59 // pred_region
        %s4451 = smul.u32 128, %s21
        %p4452 = scmp.lt.s32.totalorder %s4451, 255
        %s4453 = scalar_select %p4452, %s4451, 255
        %s4454 = smul.addr %s4453, 8
        %s4455 = scalar_lea.vmem %s1, %s4454
      $region64: #{tpu_custom_call.1} parent=59 // pred_fallthru
        _
      // Predicated region
      $region65: #{tpu_custom_call.1} parent=59 // pred_check
        %p4456 = pneg %p96
      $region66: #{tpu_custom_call.1} parent=59 // pred_check_branch
        %4458 = sbr.rel (%p4456) target = $region68
      $region67: #{tpu_custom_call.1} parent=59 // pred_region
        %s4459 = smul.u32 128, %s21
        %p4460 = scmp.lt.s32.totalorder %s4459, 255
        %s4461 = scalar_select %p4460, %s4459, 255
        %s4462 = smul.addr %s4461, 8
        %s4463 = scalar_lea.vmem %s2, %s4462
      $region68: #{tpu_custom_call.1} parent=59 // pred_fallthru
        _
      // Predicated region
      $region69: #{tpu_custom_call.1} parent=59 // pred_check
        %p4464 = pneg %p122
      $region70: #{tpu_custom_call.1} parent=59 // pred_check_branch
        %4466 = sbr.rel (%p4464) target = $region72
      $region71: #{tpu_custom_call.1} parent=59 // pred_region
        %s4467 = smul.u32 128, %s21
        %p4468 = scmp.lt.s32.totalorder %s4467, 255
        %s4469 = scalar_select %p4468, %s4467, 255
        %s4470 = smul.addr %s4469, 8
        %s4471 = scalar_lea.vmem %s3, %s4470
      $region72: #{tpu_custom_call.1} parent=59 // pred_fallthru
        _
      // Predicated region
      $region73: #{tpu_custom_call.1} parent=59 // pred_check
        %p4472 = pneg %p148
      $region74: #{tpu_custom_call.1} parent=59 // pred_check_branch
        %4474 = sbr.rel (%p4472) target = $region76
      $region75: #{tpu_custom_call.1} parent=59 // pred_region
        %s4475 = smul.u32 128, %s21
        %p4476 = scmp.lt.s32.totalorder %s4475, 255
        %s4477 = scalar_select %p4476, %s4475, 255
        %s4478 = smul.addr %s4477, 8
        %s4479 = scalar_lea.vmem %s4, %s4478
      $region76: #{tpu_custom_call.1} parent=59 // pred_fallthru
        _
      // Predicated region
      $region77: #{tpu_custom_call.1} parent=59 // pred_check
        %p4480 = pneg %p174
      $region78: #{tpu_custom_call.1} parent=59 // pred_check_branch
        %4482 = sbr.rel (%p4480) target = $region80
      $region79: #{tpu_custom_call.1} parent=59 // pred_region
        %s4483 = smul.u32 128, %s21
        %p4484 = scmp.lt.s32.totalorder %s4483, 255
        %s4485 = scalar_select %p4484, %s4483, 255
        %s4486 = smul.addr %s4485, 8
        %s4487 = scalar_lea.vmem %s5, %s4486
      $region80: #{tpu_custom_call.1} parent=59 // pred_fallthru
        _
      // Predicated region
      $region81: #{tpu_custom_call.1} parent=59 // pred_check
        %p4488 = pneg %p200
      $region82: #{tpu_custom_call.1} parent=59 // pred_check_branch
        %4490 = sbr.rel (%p4488) target = $region84
      $region83: #{tpu_custom_call.1} parent=59 // pred_region
        %s4491 = smul.u32 128, %s21
        %p4492 = scmp.lt.s32.totalorder %s4491, 255
        %s4493 = scalar_select %p4492, %s4491, 255
        %s4494 = smul.addr %s4493, 8
        %s4495 = scalar_lea.vmem %s6, %s4494
      $region84: #{tpu_custom_call.1} parent=59 // pred_fallthru
        _
      // Predicated region
      $region85: #{tpu_custom_call.1} parent=59 // pred_check
        %p4496 = pneg %p226
      $region86: #{tpu_custom_call.1} parent=59 // pred_check_branch
        %4498 = sbr.rel (%p4496) target = $region88
      $region87: #{tpu_custom_call.1} parent=59 // pred_region
        %s4499 = smul.u32 128, %s21
        %p4500 = scmp.lt.s32.totalorder %s4499, 255
        %s4501 = scalar_select %p4500, %s4499, 255
        %s4502 = smul.addr %s4501, 8
        %s4503 = scalar_lea.vmem %s7, %s4502
      $region88: #{tpu_custom_call.1} parent=59 // pred_fallthru
        _
      // Predicated region
      $region89: #{tpu_custom_call.1} parent=59 // pred_check
        %p4504 = pneg %p252
      $region90: #{tpu_custom_call.1} parent=59 // pred_check_branch
        %4506 = sbr.rel (%p4504) target = $region92
      $region91: #{tpu_custom_call.1} parent=59 // pred_region
        %s4507 = smul.u32 128, %s21
        %p4508 = scmp.lt.s32.totalorder %s4507, 255
        %s4509 = scalar_select %p4508, %s4507, 255
        %s4510 = smul.addr %s4509, 8
        %s4511 = scalar_lea.vmem %s8, %s4510
      $region92: #{tpu_custom_call.1} parent=59 // pred_fallthru
        _
    $region60: #{tpu_custom_call.1} parent=5 // pred_fallthru
      _
  $region6: #{tpu_custom_call.1} parent=0 // loop_footer
    %s19 = sadd.s32 1, %s15
  $region7: #{tpu_custom_call.1} parent=0 // loop_footer_branch
    %14 = sbr.rel target = $region3
  $region8: #{tpu_custom_call.1} parent=0 // loop_exit
    _

</llo_original>
